<compile_context>
chip_gen: v6e
topology: v6e:2x2x1
jax: 0.10.0
libtpu: 0.0.40
codegen_flags: <defaults>
</compile_context>

<pallas_src>
import math
import jax
import jax.numpy as jnp
from jax import lax
from jax.experimental import pallas as pl
from jax.experimental.pallas import tpu as pltpu

# Model hyper-parameters (d_model / heads == 64 is required by
# structure_layer_norm = LayerNorm(64) in the reference module).
B, S, D, H, DH, F = 2, 8, 128, 2, 64, 256
EPS = 1e-6

# lane offsets inside the packed bf16 weight slab  [D, 3D | D | F]
_W_QKV_LO, _W_QKV_HI = 0, 3 * D          # fused Wq|Wk|Wv
_W_O_LO,   _W_O_HI   = 3 * D, 4 * D      # final_linear
_W_1_LO,   _W_1_HI   = 4 * D, 4 * D + F  # FFN w_1
_PVEC_W = 3 * D                          # f32 bias / LayerNorm slab width (384)


def _layer_norm(x, g, b):
    mu = jnp.mean(x, axis=-1, keepdims=True)
    var = jnp.mean((x - mu) ** 2, axis=-1, keepdims=True)
    return (x - mu) * lax.rsqrt(var + EPS) * g + b


def encoder_layer_kernel(x_ref, r_ref, mb_ref, wbig_ref, w2_ref, p_ref, out_ref):
    f32, bf16 = jnp.float32, jnp.bfloat16

    b_, s_, _, dh_ = r_ref.shape          # static Python ints
    d_ = x_ref.shape[-1]
    h_ = d_ // dh_

    x = x_ref[...]                         # [B*S, D] f32 (batch folded in sublanes)
    p = p_ref[...]                         # [10, 384] f32 packed biases / LN params

    bqkv = p[0:1, :3 * d_]
    bo   = p[1:2, :d_]
    b1   = p[2:3, :F]
    b2   = p[3:4, :d_]
    att_g, att_b = p[4:5, :d_], p[5:6, :d_]
    ffn_g, ffn_b = p[6:7, :d_], p[7:8, :d_]
    st_g,  st_b  = p[8:9, :dh_], p[9:10, :dh_]

    # --- att_layer_norm(inputs) + fused QKV projection (one MXU dot) ---------
    xn = _layer_norm(x, att_g, att_b).astype(bf16)                   # [BS, D]
    qkv = jnp.dot(xn, wbig_ref[:, _W_QKV_LO:_W_QKV_HI],
                  preferred_element_type=f32) + bqkv                 # [BS, 3D] f32

    scale = 1.0 / math.sqrt(dh_)
    q = (qkv[:, :d_] * scale).astype(bf16)                           # [BS, D]
    k = qkv[:, d_:2 * d_].astype(bf16)
    v = qkv[:, 2 * d_:3 * d_].astype(bf16)

    # --- structure_layer_norm (f32 stats) + ONE hoisted [b,k,q,c]->[b,q,k,c] --
    rn = _layer_norm(r_ref[...].astype(f32), st_g, st_b)             # [B, k, q, c]
    rn_qk = jnp.swapaxes(rn.astype(bf16), 1, 2)                      # [B, q, k, c]

    ctx_rows = []
    for b in range(b_):                                              # B=2: static unroll
        row = slice(b * s_, (b + 1) * s_)
        q_b, k_b, v_b = q[row], k[row], v[row]                       # [S, D] bf16
        rqk = rn_qk[b]                                               # [q, k, c] bf16
        mb_b = mb_ref[b]                                             # [S, S] f32 mask bias

        # relation (key-side) bias, both heads in one q-batched MXU dot:
        #   rel_s[q,h,k] = sum_c q[q,h,c] * rn[b,k,q,c]
        q3 = q_b.reshape(s_, h_, dh_)
        rel_s = jnp.einsum('qhc,qkc->qhk', q3, rqk,
                           preferred_element_type=f32)               # [q, h, k]

        attn_heads, ctx_heads = [], []
        for h in range(h_):                                          # H=2: static unroll
            cs = slice(h * dh_, (h + 1) * dh_)                       # head = lane slice
            sc = lax.dot_general(q_b[:, cs], k_b[:, cs],
                                 (((1,), (1,)), ((), ())),
                                 preferred_element_type=f32)         # [q, k] content
            sc = sc + rel_s[:, h, :] + mb_b
            m = jnp.max(sc, axis=-1, keepdims=True)
            e = jnp.exp(sc - m)
            attn = (e * pl.reciprocal(jnp.sum(e, axis=-1, keepdims=True),
                                      approx=True)).astype(bf16)     # [q, k]
            attn_heads.append(attn)
            # content context, plain 2-D MXU dot (dropout == identity in eval)
            ctx_heads.append(lax.dot_general(attn, v_b[:, cs],
                                             (((1,), (0,)), ((), ())),
                                             preferred_element_type=f32))

        # relation (value-side) bias, both heads in one q-batched MXU dot:
        #   rel_c[q,h,c] = sum_k attn[q,h,k] * rn[b,k,q,c]
        attn3 = jnp.stack(attn_heads, axis=1)                        # [q, h, k] bf16
        rel_c = jnp.einsum('qhk,qkc->qhc', attn3, rqk,
                           preferred_element_type=f32)               # [q, h, c]

        ctx_rows.append(jnp.concatenate(ctx_heads, axis=-1)
                        + rel_c.reshape(s_, d_))                     # [S, D] f32

    ctx = jnp.concatenate(ctx_rows, axis=0).astype(bf16)             # [BS, D]

    # --- output projection + residual -----------------------------------------
    attn_out = jnp.dot(ctx, wbig_ref[:, _W_O_LO:_W_O_HI],
                       preferred_element_type=f32) + bo
    h1 = attn_out + x                                # dropout == identity (eval mode)

    # --- ffn_layer_norm + PositionwiseFeedForward + residual -------------------
    h1n = _layer_norm(h1, ffn_g, ffn_b).astype(bf16)
    ff = jnp.dot(h1n, wbig_ref[:, _W_1_LO:_W_1_HI],
                 preferred_element_type=f32) + b1
    ff = jnp.maximum(ff, 0.0).astype(bf16)                           # ReLU
    ff = jnp.dot(ff, w2_ref[...], preferred_element_type=f32) + b2

    out_ref[...] = (ff + h1).astype(out_ref.dtype)


def init_params(key):
    """Packed parameters: bf16 weight slab [D, 3D+D+F] (Wq|Wk|Wv|Wo|W1),
    bf16 FFN output weight [F, D], and one f32 bias/LayerNorm slab [10, 384]."""
    ks = jax.random.split(key, 8)
    std = 0.05
    wq = std * jax.random.normal(ks[0], (D, D), jnp.float32)
    wk = std * jax.random.normal(ks[1], (D, D), jnp.float32)
    wv = std * jax.random.normal(ks[2], (D, D), jnp.float32)
    wo = std * jax.random.normal(ks[3], (D, D), jnp.float32)
    w1 = std * jax.random.normal(ks[4], (D, F), jnp.float32)
    w2 = std * jax.random.normal(ks[5], (F, D), jnp.float32)
    bqkv = std * jax.random.normal(ks[6], (3 * D,), jnp.float32)
    bofs = std * jax.random.normal(ks[7], (2 * D + F,), jnp.float32)
    bo, b1, b2 = bofs[:D], bofs[D:D + F], bofs[D + F:]

    w_big = jnp.concatenate([wq, wk, wv, wo, w1], axis=1).astype(jnp.bfloat16)
    w2_b = w2.astype(jnp.bfloat16)

    def row(vec):
        out = jnp.zeros((_PVEC_W,), jnp.float32)
        return out.at[:vec.shape[0]].set(vec)

    pvec = jnp.stack([
        row(bqkv),                           # 0: fused q|k|v bias       [3D]
        row(bo),                             # 1: final_linear bias      [D]
        row(b1),                             # 2: FFN w_1 bias           [F]
        row(b2),                             # 3: FFN w_2 bias           [D]
        row(jnp.ones((D,), jnp.float32)),    # 4: att_layer_norm gamma
        row(jnp.zeros((D,), jnp.float32)),   # 5: att_layer_norm beta
        row(jnp.ones((D,), jnp.float32)),    # 6: ffn_layer_norm gamma
        row(jnp.zeros((D,), jnp.float32)),   # 7: ffn_layer_norm beta
        row(jnp.ones((DH,), jnp.float32)),   # 8: structure_layer_norm gamma
        row(jnp.zeros((DH,), jnp.float32)),  # 9: structure_layer_norm beta
    ])
    return w_big, w2_b, pvec


def transformer_encoder_layer(inputs, structure, mask, params):
    """inputs [B,S,D] f32, structure [B,S,S,64] f32 (raw structure[b,k,q,c]),
    mask [B,S,S] int (nonzero = masked)."""
    b_, s_, d_ = inputs.shape
    w_big, w2, pvec = params

    # Batch folded into the sublane axis: one [B*S, D] operand for every MXU dot.
    x2d = inputs.reshape(b_ * s_, d_)
    # Structure carried in bf16 (dominant HBM read / VMEM resident); LayerNorm
    # statistics are computed in f32 inside the kernel.
    r_bf16 = structure.astype(jnp.bfloat16)
    # Additive padding-mask bias precomputed once (0 / -1e18).
    mask_bias = jnp.where(mask != 0, -1e18, 0.0).astype(jnp.float32)

    flops = (2 * b_ * s_ * d_ * (3 * d_)           # fused QKV projection
             + 2 * b_ * s_ * d_ * d_               # output projection
             + 4 * b_ * s_ * d_ * F                # FFN (two matmuls)
             + 8 * b_ * s_ * s_ * d_)              # content + relation scores/ctx
    transcendentals = b_ * H * s_ * s_ + 3 * b_ * s_
    bytes_accessed = (x2d.size * 4 + r_bf16.size * 2 + mask_bias.size * 4
                      + w_big.size * 2 + w2.size * 2 + pvec.size * 4
                      + b_ * s_ * d_ * 4)

    vmem_specs = [pl.BlockSpec(memory_space=pltpu.MemorySpace.VMEM)
                  for _ in range(6)]
    out2d = pl.pallas_call(
        encoder_layer_kernel,
        out_shape=jax.ShapeDtypeStruct((b_ * s_, d_), jnp.float32),
        in_specs=vmem_specs,
        out_specs=pl.BlockSpec(memory_space=pltpu.MemorySpace.VMEM),
        cost_estimate=pl.CostEstimate(flops=flops,
                                      transcendentals=transcendentals,
                                      bytes_accessed=bytes_accessed),
    )(x2d, r_bf16, mask_bias, w_big, w2, pvec)
    # TODO(synk): on v7x (2 TensorCores) shard over batch with grid=(B,) and
    # dimension_semantics=("parallel",); for large S, q-tile the [S,S,64]
    # structure block (grid over query blocks, pl.Buffered(1) on the weight
    # slabs, explicit vmem_limit_bytes) so it fits the 64 MiB VMEM.
    return out2d.reshape(b_, s_, d_)


if __name__ == "__main__":
    key = jax.random.PRNGKey(0)
    k_in, k_st, k_p = jax.random.split(key, 3)

    inputs = jax.random.normal(k_in, (B, S, D), jnp.float32)
    structure = jax.random.normal(k_st, (B, S, S, DH), jnp.float32)

    # padding mask: batch 0 is full length, batch 1 has its last 2 keys padded
    lengths = jnp.array([S, S - 2])
    key_pad = jnp.arange(S)[None, :] >= lengths[:, None]          # [B, S]
    mask = jnp.broadcast_to(key_pad[:, None, :], (B, S, S)).astype(jnp.int32)

    params = init_params(k_p)

    out = transformer_encoder_layer(inputs, structure, mask, params)
    jax.block_until_ready(out)
    assert out.shape == (B, S, D) and out.dtype == jnp.float32
    assert bool(jnp.all(jnp.isfinite(out)))
    # TODO(synk): nn.Dropout is stochastic at train time; implemented here as
    # eval-mode identity (inference semantics).
    print("KERNEL_OK")
</pallas_src>

<mosaic_0001>
module attributes {stable_mosaic.version = 11 : i64} {
  func.func @encoder_layer_kernel(%arg0: memref<16x128xf32, #tpu.memory_space<vmem>>, %arg1: memref<2x8x8x64xbf16, #tpu.memory_space<vmem>>, %arg2: memref<2x8x8xf32, #tpu.memory_space<vmem>>, %arg3: memref<128x768xbf16, #tpu.memory_space<vmem>>, %arg4: memref<256x128xbf16, #tpu.memory_space<vmem>>, %arg5: memref<10x384xf32, #tpu.memory_space<vmem>>, %arg6: memref<16x128xf32, #tpu.memory_space<vmem>>) attributes {dimension_semantics = [], scalar_prefetch = 0 : i64, scratch_operands = 0 : i64, tpu.core_type = #tpu.core_type<tc>} {
    %c0 = arith.constant 0 : index
    %c0_0 = arith.constant 0 : index
    %0 = vector.load %arg0[%c0, %c0_0] : memref<16x128xf32, #tpu.memory_space<vmem>>, vector<16x128xf32>
    %c0_1 = arith.constant 0 : index
    %c0_2 = arith.constant 0 : index
    %1 = vector.load %arg5[%c0_1, %c0_2] : memref<10x384xf32, #tpu.memory_space<vmem>>, vector<10x384xf32>
    %2 = vector.extract_strided_slice %1 {offsets = [0, 0], sizes = [1, 384], strides = [1, 1]} : vector<10x384xf32> to vector<1x384xf32>
    %3 = vector.extract_strided_slice %1 {offsets = [1, 0], sizes = [1, 128], strides = [1, 1]} : vector<10x384xf32> to vector<1x128xf32>
    %4 = vector.extract_strided_slice %1 {offsets = [2, 0], sizes = [1, 256], strides = [1, 1]} : vector<10x384xf32> to vector<1x256xf32>
    %5 = vector.extract_strided_slice %1 {offsets = [3, 0], sizes = [1, 128], strides = [1, 1]} : vector<10x384xf32> to vector<1x128xf32>
    %6 = vector.extract_strided_slice %1 {offsets = [4, 0], sizes = [1, 128], strides = [1, 1]} : vector<10x384xf32> to vector<1x128xf32>
    %7 = vector.extract_strided_slice %1 {offsets = [5, 0], sizes = [1, 128], strides = [1, 1]} : vector<10x384xf32> to vector<1x128xf32>
    %8 = vector.extract_strided_slice %1 {offsets = [6, 0], sizes = [1, 128], strides = [1, 1]} : vector<10x384xf32> to vector<1x128xf32>
    %9 = vector.extract_strided_slice %1 {offsets = [7, 0], sizes = [1, 128], strides = [1, 1]} : vector<10x384xf32> to vector<1x128xf32>
    %10 = vector.extract_strided_slice %1 {offsets = [8, 0], sizes = [1, 64], strides = [1, 1]} : vector<10x384xf32> to vector<1x64xf32>
    %11 = vector.extract_strided_slice %1 {offsets = [9, 0], sizes = [1, 64], strides = [1, 1]} : vector<10x384xf32> to vector<1x64xf32>
    %cst = arith.constant dense<0.000000e+00> : vector<16xf32>
    %12 = vector.multi_reduction <add>, %0, %cst [1] : vector<16x128xf32> to vector<16xf32>
    %13 = vector.shape_cast %12 : vector<16xf32> to vector<16x1xf32>
    %cst_3 = arith.constant 1.280000e+02 : f32
    %14 = vector.broadcast %cst_3 : f32 to vector<16x1xf32>
    %15 = arith.divf %13, %14 : vector<16x1xf32>
    %16 = vector.broadcast %15 : vector<16x1xf32> to vector<16x128xf32>
    %17 = arith.subf %0, %16 : vector<16x128xf32>
    %18 = arith.mulf %17, %17 : vector<16x128xf32>
    %cst_4 = arith.constant dense<0.000000e+00> : vector<16xf32>
    %19 = vector.multi_reduction <add>, %18, %cst_4 [1] : vector<16x128xf32> to vector<16xf32>
    %20 = vector.shape_cast %19 : vector<16xf32> to vector<16x1xf32>
    %cst_5 = arith.constant 1.280000e+02 : f32
    %21 = vector.broadcast %cst_5 : f32 to vector<16x1xf32>
    %22 = arith.divf %20, %21 : vector<16x1xf32>
    %23 = vector.broadcast %15 : vector<16x1xf32> to vector<16x128xf32>
    %24 = arith.subf %0, %23 : vector<16x128xf32>
    %cst_6 = arith.constant 9.99999997E-7 : f32
    %25 = vector.broadcast %cst_6 : f32 to vector<16x1xf32>
    %26 = arith.addf %22, %25 : vector<16x1xf32>
    %27 = math.rsqrt %26 : vector<16x1xf32>
    %28 = vector.broadcast %27 : vector<16x1xf32> to vector<16x128xf32>
    %29 = arith.mulf %24, %28 : vector<16x128xf32>
    %30 = vector.broadcast %6 : vector<1x128xf32> to vector<16x128xf32>
    %31 = arith.mulf %29, %30 : vector<16x128xf32>
    %32 = vector.broadcast %7 : vector<1x128xf32> to vector<16x128xf32>
    %33 = arith.addf %31, %32 : vector<16x128xf32>
    %34 = arith.truncf %33 : vector<16x128xf32> to vector<16x128xbf16>
    %c0_7 = arith.constant 0 : index
    %c0_8 = arith.constant 0 : index
    %35 = vector.load %arg3[%c0_7, %c0_8] : memref<128x768xbf16, #tpu.memory_space<vmem>>, vector<128x384xbf16>
    %cst_9 = arith.constant dense<0.000000e+00> : vector<16x384xf32>
    %36 = tpu.matmul %34, %35, %cst_9 {dimension_numbers = #tpu.dot_dimension_numbers<[1], [0], [0], [1], [0, 0, 1, 1], [], []>} : vector<16x128xbf16>, vector<128x384xbf16>, vector<16x384xf32> -> vector<16x384xf32>
    %37 = vector.broadcast %2 : vector<1x384xf32> to vector<16x384xf32>
    %38 = arith.addf %36, %37 : vector<16x384xf32>
    %39 = vector.extract_strided_slice %38 {offsets = [0, 0], sizes = [16, 128], strides = [1, 1]} : vector<16x384xf32> to vector<16x128xf32>
    %cst_10 = arith.constant 1.250000e-01 : f32
    %40 = vector.broadcast %cst_10 : f32 to vector<16x128xf32>
    %41 = arith.mulf %39, %40 : vector<16x128xf32>
    %42 = arith.truncf %41 : vector<16x128xf32> to vector<16x128xbf16>
    %43 = vector.extract_strided_slice %38 {offsets = [0, 128], sizes = [16, 128], strides = [1, 1]} : vector<16x384xf32> to vector<16x128xf32>
    %44 = arith.truncf %43 : vector<16x128xf32> to vector<16x128xbf16>
    %45 = vector.extract_strided_slice %38 {offsets = [0, 256], sizes = [16, 128], strides = [1, 1]} : vector<16x384xf32> to vector<16x128xf32>
    %46 = arith.truncf %45 : vector<16x128xf32> to vector<16x128xbf16>
    %c0_11 = arith.constant 0 : index
    %c0_12 = arith.constant 0 : index
    %c0_13 = arith.constant 0 : index
    %c0_14 = arith.constant 0 : index
    %47 = vector.load %arg1[%c0_11, %c0_12, %c0_13, %c0_14] : memref<2x8x8x64xbf16, #tpu.memory_space<vmem>>, vector<2x8x8x64xbf16>
    %48 = arith.extf %47 : vector<2x8x8x64xbf16> to vector<2x8x8x64xf32>
    %cst_15 = arith.constant dense<0.000000e+00> : vector<2x8x8xf32>
    %49 = vector.multi_reduction <add>, %48, %cst_15 [3] : vector<2x8x8x64xf32> to vector<2x8x8xf32>
    %50 = vector.shape_cast %49 : vector<2x8x8xf32> to vector<2x8x8x1xf32>
    %cst_16 = arith.constant 6.400000e+01 : f32
    %51 = vector.broadcast %cst_16 : f32 to vector<2x8x8x1xf32>
    %52 = arith.divf %50, %51 : vector<2x8x8x1xf32>
    %53 = vector.broadcast %52 : vector<2x8x8x1xf32> to vector<2x8x8x64xf32>
    %54 = arith.subf %48, %53 : vector<2x8x8x64xf32>
    %55 = arith.mulf %54, %54 : vector<2x8x8x64xf32>
    %cst_17 = arith.constant dense<0.000000e+00> : vector<2x8x8xf32>
    %56 = vector.multi_reduction <add>, %55, %cst_17 [3] : vector<2x8x8x64xf32> to vector<2x8x8xf32>
    %57 = vector.shape_cast %56 : vector<2x8x8xf32> to vector<2x8x8x1xf32>
    %cst_18 = arith.constant 6.400000e+01 : f32
    %58 = vector.broadcast %cst_18 : f32 to vector<2x8x8x1xf32>
    %59 = arith.divf %57, %58 : vector<2x8x8x1xf32>
    %60 = vector.broadcast %52 : vector<2x8x8x1xf32> to vector<2x8x8x64xf32>
    %61 = arith.subf %48, %60 : vector<2x8x8x64xf32>
    %cst_19 = arith.constant 9.99999997E-7 : f32
    %62 = vector.broadcast %cst_19 : f32 to vector<2x8x8x1xf32>
    %63 = arith.addf %59, %62 : vector<2x8x8x1xf32>
    %64 = math.rsqrt %63 : vector<2x8x8x1xf32>
    %65 = vector.broadcast %64 : vector<2x8x8x1xf32> to vector<2x8x8x64xf32>
    %66 = arith.mulf %61, %65 : vector<2x8x8x64xf32>
    %67 = vector.shape_cast %10 : vector<1x64xf32> to vector<1x1x1x64xf32>
    %68 = vector.broadcast %67 : vector<1x1x1x64xf32> to vector<2x8x8x64xf32>
    %69 = arith.mulf %66, %68 : vector<2x8x8x64xf32>
    %70 = vector.shape_cast %11 : vector<1x64xf32> to vector<1x1x1x64xf32>
    %71 = vector.broadcast %70 : vector<1x1x1x64xf32> to vector<2x8x8x64xf32>
    %72 = arith.addf %69, %71 : vector<2x8x8x64xf32>
    %73 = arith.truncf %72 : vector<2x8x8x64xf32> to vector<2x8x8x64xbf16>
    %74 = tpu.transpose %73, [0, 2, 1, 3] : vector<2x8x8x64xbf16> -> vector<2x8x8x64xbf16>
    %75 = vector.extract_strided_slice %42 {offsets = [0, 0], sizes = [8, 128], strides = [1, 1]} : vector<16x128xbf16> to vector<8x128xbf16>
    %76 = vector.extract_strided_slice %44 {offsets = [0, 0], sizes = [8, 128], strides = [1, 1]} : vector<16x128xbf16> to vector<8x128xbf16>
    %77 = vector.extract_strided_slice %46 {offsets = [0, 0], sizes = [8, 128], strides = [1, 1]} : vector<16x128xbf16> to vector<8x128xbf16>
    %78 = vector.extract_strided_slice %74 {offsets = [0, 0, 0, 0], sizes = [1, 8, 8, 64], strides = [1, 1, 1, 1]} : vector<2x8x8x64xbf16> to vector<1x8x8x64xbf16>
    %79 = vector.shape_cast %78 : vector<1x8x8x64xbf16> to vector<8x8x64xbf16>
    %c0_20 = arith.constant 0 : index
    %c0_21 = arith.constant 0 : index
    %c0_22 = arith.constant 0 : index
    %80 = vector.load %arg2[%c0_20, %c0_21, %c0_22] : memref<2x8x8xf32, #tpu.memory_space<vmem>>, vector<1x8x8xf32>
    %81 = vector.shape_cast %80 : vector<1x8x8xf32> to vector<8x8xf32>
    %82 = vector.shape_cast %75 : vector<8x128xbf16> to vector<8x2x64xbf16>
    "tpu.trace_start"() <{level = 10 : i32, message = "qhc,qkc->qhk"}> : () -> ()
    %cst_23 = arith.constant dense<0.000000e+00> : vector<8x2x8xf32>
    %83 = tpu.matmul %82, %79, %cst_23 {dimension_numbers = #tpu.dot_dimension_numbers<[2], [2], [1], [1], [0, 0, 0, 1, 1, 1], [0], [0]>} : vector<8x2x64xbf16>, vector<8x8x64xbf16>, vector<8x2x8xf32> -> vector<8x2x8xf32>
    "tpu.trace_stop"() : () -> ()
    %84 = vector.extract_strided_slice %75 {offsets = [0, 0], sizes = [8, 64], strides = [1, 1]} : vector<8x128xbf16> to vector<8x64xbf16>
    %85 = vector.extract_strided_slice %76 {offsets = [0, 0], sizes = [8, 64], strides = [1, 1]} : vector<8x128xbf16> to vector<8x64xbf16>
    %cst_24 = arith.constant dense<0.000000e+00> : vector<8x8xf32>
    %86 = tpu.matmul %84, %85, %cst_24 {dimension_numbers = #tpu.dot_dimension_numbers<[1], [1], [0], [0], [0, 0, 1, 0], [], []>} : vector<8x64xbf16>, vector<8x64xbf16>, vector<8x8xf32> -> vector<8x8xf32>
    %87 = vector.extract_strided_slice %83 {offsets = [0, 0, 0], sizes = [8, 1, 8], strides = [1, 1, 1]} : vector<8x2x8xf32> to vector<8x1x8xf32>
    %88 = vector.shape_cast %87 : vector<8x1x8xf32> to vector<8x8xf32>
    %89 = arith.addf %86, %88 : vector<8x8xf32>
    %90 = arith.addf %89, %81 : vector<8x8xf32>
    %cst_25 = arith.constant dense<0xFF800000> : vector<8xf32>
    %91 = vector.multi_reduction <maximumf>, %90, %cst_25 [1] : vector<8x8xf32> to vector<8xf32>
    %92 = vector.shape_cast %91 : vector<8xf32> to vector<8x1xf32>
    %93 = vector.broadcast %92 : vector<8x1xf32> to vector<8x8xf32>
    %94 = arith.subf %90, %93 : vector<8x8xf32>
    %95 = math.exp %94 : vector<8x8xf32>
    %cst_26 = arith.constant dense<0.000000e+00> : vector<8xf32>
    %96 = vector.multi_reduction <add>, %95, %cst_26 [1] : vector<8x8xf32> to vector<8xf32>
    %97 = vector.shape_cast %96 : vector<8xf32> to vector<8x1xf32>
    %98 = tpu.reciprocal %97 {approx = true} : vector<8x1xf32> -> vector<8x1xf32>
    %99 = vector.broadcast %98 : vector<8x1xf32> to vector<8x8xf32>
    %100 = arith.mulf %95, %99 : vector<8x8xf32>
    %101 = arith.truncf %100 : vector<8x8xf32> to vector<8x8xbf16>
    %102 = vector.extract_strided_slice %77 {offsets = [0, 0], sizes = [8, 64], strides = [1, 1]} : vector<8x128xbf16> to vector<8x64xbf16>
    %cst_27 = arith.constant dense<0.000000e+00> : vector<8x64xf32>
    %103 = tpu.matmul %101, %102, %cst_27 {dimension_numbers = #tpu.dot_dimension_numbers<[1], [0], [0], [1], [0, 0, 1, 1], [], []>} : vector<8x8xbf16>, vector<8x64xbf16>, vector<8x64xf32> -> vector<8x64xf32>
    %104 = vector.extract_strided_slice %75 {offsets = [0, 64], sizes = [8, 64], strides = [1, 1]} : vector<8x128xbf16> to vector<8x64xbf16>
    %105 = vector.extract_strided_slice %76 {offsets = [0, 64], sizes = [8, 64], strides = [1, 1]} : vector<8x128xbf16> to vector<8x64xbf16>
    %cst_28 = arith.constant dense<0.000000e+00> : vector<8x8xf32>
    %106 = tpu.matmul %104, %105, %cst_28 {dimension_numbers = #tpu.dot_dimension_numbers<[1], [1], [0], [0], [0, 0, 1, 0], [], []>} : vector<8x64xbf16>, vector<8x64xbf16>, vector<8x8xf32> -> vector<8x8xf32>
    %107 = vector.extract_strided_slice %83 {offsets = [0, 1, 0], sizes = [8, 1, 8], strides = [1, 1, 1]} : vector<8x2x8xf32> to vector<8x1x8xf32>
    %108 = vector.shape_cast %107 : vector<8x1x8xf32> to vector<8x8xf32>
    %109 = arith.addf %106, %108 : vector<8x8xf32>
    %110 = arith.addf %109, %81 : vector<8x8xf32>
    %cst_29 = arith.constant dense<0xFF800000> : vector<8xf32>
    %111 = vector.multi_reduction <maximumf>, %110, %cst_29 [1] : vector<8x8xf32> to vector<8xf32>
    %112 = vector.shape_cast %111 : vector<8xf32> to vector<8x1xf32>
    %113 = vector.broadcast %112 : vector<8x1xf32> to vector<8x8xf32>
    %114 = arith.subf %110, %113 : vector<8x8xf32>
    %115 = math.exp %114 : vector<8x8xf32>
    %cst_30 = arith.constant dense<0.000000e+00> : vector<8xf32>
    %116 = vector.multi_reduction <add>, %115, %cst_30 [1] : vector<8x8xf32> to vector<8xf32>
    %117 = vector.shape_cast %116 : vector<8xf32> to vector<8x1xf32>
    %118 = tpu.reciprocal %117 {approx = true} : vector<8x1xf32> -> vector<8x1xf32>
    %119 = vector.broadcast %118 : vector<8x1xf32> to vector<8x8xf32>
    %120 = arith.mulf %115, %119 : vector<8x8xf32>
    %121 = arith.truncf %120 : vector<8x8xf32> to vector<8x8xbf16>
    %122 = vector.extract_strided_slice %77 {offsets = [0, 64], sizes = [8, 64], strides = [1, 1]} : vector<8x128xbf16> to vector<8x64xbf16>
    %cst_31 = arith.constant dense<0.000000e+00> : vector<8x64xf32>
    %123 = tpu.matmul %121, %122, %cst_31 {dimension_numbers = #tpu.dot_dimension_numbers<[1], [0], [0], [1], [0, 0, 1, 1], [], []>} : vector<8x8xbf16>, vector<8x64xbf16>, vector<8x64xf32> -> vector<8x64xf32>
    %124 = vector.shape_cast %101 : vector<8x8xbf16> to vector<8x1x8xbf16>
    %125 = vector.shape_cast %121 : vector<8x8xbf16> to vector<8x1x8xbf16>
    %126 = tpu.concatenate %124, %125 in 1 : vector<8x1x8xbf16>, vector<8x1x8xbf16> -> vector<8x2x8xbf16>
    "tpu.trace_start"() <{level = 10 : i32, message = "qhk,qkc->qhc"}> : () -> ()
    %cst_32 = arith.constant dense<0.000000e+00> : vector<8x2x64xf32>
    %127 = tpu.matmul %126, %79, %cst_32 {dimension_numbers = #tpu.dot_dimension_numbers<[2], [1], [1], [2], [0, 0, 0, 1, 1, 2], [0], [0]>} : vector<8x2x8xbf16>, vector<8x8x64xbf16>, vector<8x2x64xf32> -> vector<8x2x64xf32>
    "tpu.trace_stop"() : () -> ()
    %128 = tpu.concatenate %103, %123 in 1 : vector<8x64xf32>, vector<8x64xf32> -> vector<8x128xf32>
    %129 = vector.shape_cast %127 : vector<8x2x64xf32> to vector<8x128xf32>
    %130 = arith.addf %128, %129 : vector<8x128xf32>
    %131 = vector.extract_strided_slice %42 {offsets = [8, 0], sizes = [8, 128], strides = [1, 1]} : vector<16x128xbf16> to vector<8x128xbf16>
    %132 = vector.extract_strided_slice %44 {offsets = [8, 0], sizes = [8, 128], strides = [1, 1]} : vector<16x128xbf16> to vector<8x128xbf16>
    %133 = vector.extract_strided_slice %46 {offsets = [8, 0], sizes = [8, 128], strides = [1, 1]} : vector<16x128xbf16> to vector<8x128xbf16>
    %134 = vector.extract_strided_slice %74 {offsets = [1, 0, 0, 0], sizes = [1, 8, 8, 64], strides = [1, 1, 1, 1]} : vector<2x8x8x64xbf16> to vector<1x8x8x64xbf16>
    %135 = vector.shape_cast %134 : vector<1x8x8x64xbf16> to vector<8x8x64xbf16>
    %c1 = arith.constant 1 : index
    %c0_33 = arith.constant 0 : index
    %c0_34 = arith.constant 0 : index
    %136 = vector.load %arg2[%c1, %c0_33, %c0_34] : memref<2x8x8xf32, #tpu.memory_space<vmem>>, vector<1x8x8xf32>
    %137 = vector.shape_cast %136 : vector<1x8x8xf32> to vector<8x8xf32>
    %138 = vector.shape_cast %131 : vector<8x128xbf16> to vector<8x2x64xbf16>
    "tpu.trace_start"() <{level = 10 : i32, message = "qhc,qkc->qhk"}> : () -> ()
    %cst_35 = arith.constant dense<0.000000e+00> : vector<8x2x8xf32>
    %139 = tpu.matmul %138, %135, %cst_35 {dimension_numbers = #tpu.dot_dimension_numbers<[2], [2], [1], [1], [0, 0, 0, 1, 1, 1], [0], [0]>} : vector<8x2x64xbf16>, vector<8x8x64xbf16>, vector<8x2x8xf32> -> vector<8x2x8xf32>
    "tpu.trace_stop"() : () -> ()
    %140 = vector.extract_strided_slice %131 {offsets = [0, 0], sizes = [8, 64], strides = [1, 1]} : vector<8x128xbf16> to vector<8x64xbf16>
    %141 = vector.extract_strided_slice %132 {offsets = [0, 0], sizes = [8, 64], strides = [1, 1]} : vector<8x128xbf16> to vector<8x64xbf16>
    %cst_36 = arith.constant dense<0.000000e+00> : vector<8x8xf32>
    %142 = tpu.matmul %140, %141, %cst_36 {dimension_numbers = #tpu.dot_dimension_numbers<[1], [1], [0], [0], [0, 0, 1, 0], [], []>} : vector<8x64xbf16>, vector<8x64xbf16>, vector<8x8xf32> -> vector<8x8xf32>
    %143 = vector.extract_strided_slice %139 {offsets = [0, 0, 0], sizes = [8, 1, 8], strides = [1, 1, 1]} : vector<8x2x8xf32> to vector<8x1x8xf32>
    %144 = vector.shape_cast %143 : vector<8x1x8xf32> to vector<8x8xf32>
    %145 = arith.addf %142, %144 : vector<8x8xf32>
    %146 = arith.addf %145, %137 : vector<8x8xf32>
    %cst_37 = arith.constant dense<0xFF800000> : vector<8xf32>
    %147 = vector.multi_reduction <maximumf>, %146, %cst_37 [1] : vector<8x8xf32> to vector<8xf32>
    %148 = vector.shape_cast %147 : vector<8xf32> to vector<8x1xf32>
    %149 = vector.broadcast %148 : vector<8x1xf32> to vector<8x8xf32>
    %150 = arith.subf %146, %149 : vector<8x8xf32>
    %151 = math.exp %150 : vector<8x8xf32>
    %cst_38 = arith.constant dense<0.000000e+00> : vector<8xf32>
    %152 = vector.multi_reduction <add>, %151, %cst_38 [1] : vector<8x8xf32> to vector<8xf32>
    %153 = vector.shape_cast %152 : vector<8xf32> to vector<8x1xf32>
    %154 = tpu.reciprocal %153 {approx = true} : vector<8x1xf32> -> vector<8x1xf32>
    %155 = vector.broadcast %154 : vector<8x1xf32> to vector<8x8xf32>
    %156 = arith.mulf %151, %155 : vector<8x8xf32>
    %157 = arith.truncf %156 : vector<8x8xf32> to vector<8x8xbf16>
    %158 = vector.extract_strided_slice %133 {offsets = [0, 0], sizes = [8, 64], strides = [1, 1]} : vector<8x128xbf16> to vector<8x64xbf16>
    %cst_39 = arith.constant dense<0.000000e+00> : vector<8x64xf32>
    %159 = tpu.matmul %157, %158, %cst_39 {dimension_numbers = #tpu.dot_dimension_numbers<[1], [0], [0], [1], [0, 0, 1, 1], [], []>} : vector<8x8xbf16>, vector<8x64xbf16>, vector<8x64xf32> -> vector<8x64xf32>
    %160 = vector.extract_strided_slice %131 {offsets = [0, 64], sizes = [8, 64], strides = [1, 1]} : vector<8x128xbf16> to vector<8x64xbf16>
    %161 = vector.extract_strided_slice %132 {offsets = [0, 64], sizes = [8, 64], strides = [1, 1]} : vector<8x128xbf16> to vector<8x64xbf16>
    %cst_40 = arith.constant dense<0.000000e+00> : vector<8x8xf32>
    %162 = tpu.matmul %160, %161, %cst_40 {dimension_numbers = #tpu.dot_dimension_numbers<[1], [1], [0], [0], [0, 0, 1, 0], [], []>} : vector<8x64xbf16>, vector<8x64xbf16>, vector<8x8xf32> -> vector<8x8xf32>
    %163 = vector.extract_strided_slice %139 {offsets = [0, 1, 0], sizes = [8, 1, 8], strides = [1, 1, 1]} : vector<8x2x8xf32> to vector<8x1x8xf32>
    %164 = vector.shape_cast %163 : vector<8x1x8xf32> to vector<8x8xf32>
    %165 = arith.addf %162, %164 : vector<8x8xf32>
    %166 = arith.addf %165, %137 : vector<8x8xf32>
    %cst_41 = arith.constant dense<0xFF800000> : vector<8xf32>
    %167 = vector.multi_reduction <maximumf>, %166, %cst_41 [1] : vector<8x8xf32> to vector<8xf32>
    %168 = vector.shape_cast %167 : vector<8xf32> to vector<8x1xf32>
    %169 = vector.broadcast %168 : vector<8x1xf32> to vector<8x8xf32>
    %170 = arith.subf %166, %169 : vector<8x8xf32>
    %171 = math.exp %170 : vector<8x8xf32>
    %cst_42 = arith.constant dense<0.000000e+00> : vector<8xf32>
    %172 = vector.multi_reduction <add>, %171, %cst_42 [1] : vector<8x8xf32> to vector<8xf32>
    %173 = vector.shape_cast %172 : vector<8xf32> to vector<8x1xf32>
    %174 = tpu.reciprocal %173 {approx = true} : vector<8x1xf32> -> vector<8x1xf32>
    %175 = vector.broadcast %174 : vector<8x1xf32> to vector<8x8xf32>
    %176 = arith.mulf %171, %175 : vector<8x8xf32>
    %177 = arith.truncf %176 : vector<8x8xf32> to vector<8x8xbf16>
    %178 = vector.extract_strided_slice %133 {offsets = [0, 64], sizes = [8, 64], strides = [1, 1]} : vector<8x128xbf16> to vector<8x64xbf16>
    %cst_43 = arith.constant dense<0.000000e+00> : vector<8x64xf32>
    %179 = tpu.matmul %177, %178, %cst_43 {dimension_numbers = #tpu.dot_dimension_numbers<[1], [0], [0], [1], [0, 0, 1, 1], [], []>} : vector<8x8xbf16>, vector<8x64xbf16>, vector<8x64xf32> -> vector<8x64xf32>
    %180 = vector.shape_cast %157 : vector<8x8xbf16> to vector<8x1x8xbf16>
    %181 = vector.shape_cast %177 : vector<8x8xbf16> to vector<8x1x8xbf16>
    %182 = tpu.concatenate %180, %181 in 1 : vector<8x1x8xbf16>, vector<8x1x8xbf16> -> vector<8x2x8xbf16>
    "tpu.trace_start"() <{level = 10 : i32, message = "qhk,qkc->qhc"}> : () -> ()
    %cst_44 = arith.constant dense<0.000000e+00> : vector<8x2x64xf32>
    %183 = tpu.matmul %182, %135, %cst_44 {dimension_numbers = #tpu.dot_dimension_numbers<[2], [1], [1], [2], [0, 0, 0, 1, 1, 2], [0], [0]>} : vector<8x2x8xbf16>, vector<8x8x64xbf16>, vector<8x2x64xf32> -> vector<8x2x64xf32>
    "tpu.trace_stop"() : () -> ()
    %184 = tpu.concatenate %159, %179 in 1 : vector<8x64xf32>, vector<8x64xf32> -> vector<8x128xf32>
    %185 = vector.shape_cast %183 : vector<8x2x64xf32> to vector<8x128xf32>
    %186 = arith.addf %184, %185 : vector<8x128xf32>
    %187 = tpu.concatenate %130, %186 in 0 : vector<8x128xf32>, vector<8x128xf32> -> vector<16x128xf32>
    %188 = arith.truncf %187 : vector<16x128xf32> to vector<16x128xbf16>
    %c0_45 = arith.constant 0 : index
    %c384 = arith.constant 384 : index
    %189 = vector.load %arg3[%c0_45, %c384] : memref<128x768xbf16, #tpu.memory_space<vmem>>, vector<128x128xbf16>
    %cst_46 = arith.constant dense<0.000000e+00> : vector<16x128xf32>
    %190 = tpu.matmul %188, %189, %cst_46 {dimension_numbers = #tpu.dot_dimension_numbers<[1], [0], [0], [1], [0, 0, 1, 1], [], []>} : vector<16x128xbf16>, vector<128x128xbf16>, vector<16x128xf32> -> vector<16x128xf32>
    %191 = vector.broadcast %3 : vector<1x128xf32> to vector<16x128xf32>
    %192 = arith.addf %190, %191 : vector<16x128xf32>
    %193 = arith.addf %192, %0 : vector<16x128xf32>
    %cst_47 = arith.constant dense<0.000000e+00> : vector<16xf32>
    %194 = vector.multi_reduction <add>, %193, %cst_47 [1] : vector<16x128xf32> to vector<16xf32>
    %195 = vector.shape_cast %194 : vector<16xf32> to vector<16x1xf32>
    %cst_48 = arith.constant 1.280000e+02 : f32
    %196 = vector.broadcast %cst_48 : f32 to vector<16x1xf32>
    %197 = arith.divf %195, %196 : vector<16x1xf32>
    %198 = vector.broadcast %197 : vector<16x1xf32> to vector<16x128xf32>
    %199 = arith.subf %193, %198 : vector<16x128xf32>
    %200 = arith.mulf %199, %199 : vector<16x128xf32>
    %cst_49 = arith.constant dense<0.000000e+00> : vector<16xf32>
    %201 = vector.multi_reduction <add>, %200, %cst_49 [1] : vector<16x128xf32> to vector<16xf32>
    %202 = vector.shape_cast %201 : vector<16xf32> to vector<16x1xf32>
    %cst_50 = arith.constant 1.280000e+02 : f32
    %203 = vector.broadcast %cst_50 : f32 to vector<16x1xf32>
    %204 = arith.divf %202, %203 : vector<16x1xf32>
    %205 = vector.broadcast %197 : vector<16x1xf32> to vector<16x128xf32>
    %206 = arith.subf %193, %205 : vector<16x128xf32>
    %cst_51 = arith.constant 9.99999997E-7 : f32
    %207 = vector.broadcast %cst_51 : f32 to vector<16x1xf32>
    %208 = arith.addf %204, %207 : vector<16x1xf32>
    %209 = math.rsqrt %208 : vector<16x1xf32>
    %210 = vector.broadcast %209 : vector<16x1xf32> to vector<16x128xf32>
    %211 = arith.mulf %206, %210 : vector<16x128xf32>
    %212 = vector.broadcast %8 : vector<1x128xf32> to vector<16x128xf32>
    %213 = arith.mulf %211, %212 : vector<16x128xf32>
    %214 = vector.broadcast %9 : vector<1x128xf32> to vector<16x128xf32>
    %215 = arith.addf %213, %214 : vector<16x128xf32>
    %216 = arith.truncf %215 : vector<16x128xf32> to vector<16x128xbf16>
    %c0_52 = arith.constant 0 : index
    %c512 = arith.constant 512 : index
    %217 = vector.load %arg3[%c0_52, %c512] : memref<128x768xbf16, #tpu.memory_space<vmem>>, vector<128x256xbf16>
    %cst_53 = arith.constant dense<0.000000e+00> : vector<16x256xf32>
    %218 = tpu.matmul %216, %217, %cst_53 {dimension_numbers = #tpu.dot_dimension_numbers<[1], [0], [0], [1], [0, 0, 1, 1], [], []>} : vector<16x128xbf16>, vector<128x256xbf16>, vector<16x256xf32> -> vector<16x256xf32>
    %219 = vector.broadcast %4 : vector<1x256xf32> to vector<16x256xf32>
    %220 = arith.addf %218, %219 : vector<16x256xf32>
    %cst_54 = arith.constant 0.000000e+00 : f32
    %221 = vector.broadcast %cst_54 : f32 to vector<16x256xf32>
    %222 = arith.maximumf %220, %221 : vector<16x256xf32>
    %223 = arith.truncf %222 : vector<16x256xf32> to vector<16x256xbf16>
    %c0_55 = arith.constant 0 : index
    %c0_56 = arith.constant 0 : index
    %224 = vector.load %arg4[%c0_55, %c0_56] : memref<256x128xbf16, #tpu.memory_space<vmem>>, vector<256x128xbf16>
    %cst_57 = arith.constant dense<0.000000e+00> : vector<16x128xf32>
    %225 = tpu.matmul %223, %224, %cst_57 {dimension_numbers = #tpu.dot_dimension_numbers<[1], [0], [0], [1], [0, 0, 1, 1], [], []>} : vector<16x256xbf16>, vector<256x128xbf16>, vector<16x128xf32> -> vector<16x128xf32>
    %226 = vector.broadcast %5 : vector<1x128xf32> to vector<16x128xf32>
    %227 = arith.addf %225, %226 : vector<16x128xf32>
    %228 = arith.addf %227, %193 : vector<16x128xf32>
    %c0_58 = arith.constant 0 : index
    %c0_59 = arith.constant 0 : index
    %229 = vector.load %arg6[%c0_58, %c0_59] : memref<16x128xf32, #tpu.memory_space<vmem>>, vector<16x128xf32>
    tpu.vector_store %arg6[%c0_58, %c0_59], %228 {strides = array<i32>} : memref<16x128xf32, #tpu.memory_space<vmem>>, vector<16x128xf32>,
    return
  }
}

</mosaic_0001>

<llo_original>
// kernel: tpu_custom_call.1
$region0: #{tpu_custom_call.1}
  #allocation0 [shape = 'u32[]', space=smem, size = 0x4, offset = 0x4, fixed_abs, tag = 'smem constant byte address 0x4 - core index']
  #allocation1 [shape = 'u32[144,128]{1,0:T(1,128)}', space=vmem, size = 0x12000, scoped, tag = 'internal scratch']
  %s0 = inlined_call_operand.hbm [shape: f32[16,128], index: 0, kind: input, shape index: {}]
  %s1 = inlined_call_operand.hbm [shape: bf16[2,8,8,64], index: 1, kind: input, shape index: {}]
  %s2 = inlined_call_operand.hbm [shape: f32[2,8,8], index: 2, kind: input, shape index: {}]
  %s3 = inlined_call_operand.hbm [shape: bf16[128,768], index: 3, kind: input, shape index: {}]
  %s4 = inlined_call_operand.hbm [shape: bf16[256,128], index: 4, kind: input, shape index: {}]
  %s5 = inlined_call_operand.hbm [shape: f32[10,384], index: 5, kind: input, shape index: {}]
  %s6 = inlined_call_operand.hbm [shape: f32[16,128], index: 6, kind: output, shape index: {}]
  %s7 = sld [smem:[#allocation0]]
  $region58: #{tpu_custom_call.1} parent=0
    _
  %s9 = ssub.s32 1, %s7
  %s10 = scalar_select 0, %s9, %s7
  $region1: #{tpu_custom_call.1} parent=0
    #allocation2 [shape = 'u8[8192]{0}', space=vmem, size = 0x2000, scoped, tag = 'input window, operand 0, single buffered']
    #allocation3 [shape = 's32[1]{0}', space=sflag, size = 0x4, scoped, tag = 'scoped memory for tpu_custom_call.1']
    #allocation4 [shape = 's32[1]{0}', space=sflag, size = 0x4, scoped, tag = 'scoped memory for tpu_custom_call.1']
    #allocation5 [shape = 'u8[32768]{0}', space=vmem, size = 0x8000, scoped, tag = 'input window, operand 1, single buffered']
    #allocation6 [shape = 's32[1]{0}', space=sflag, size = 0x4, scoped, tag = 'scoped memory for tpu_custom_call.1']
    #allocation7 [shape = 'u8[8192]{0}', space=vmem, size = 0x2000, scoped, tag = 'input window, operand 2, single buffered']
    #allocation8 [shape = 'u8[196608]{0}', space=vmem, size = 0x30000, scoped, tag = 'input window, operand 3, single buffered']
    #allocation9 [shape = 's32[1]{0}', space=sflag, size = 0x4, scoped, tag = 'scoped memory for tpu_custom_call.1']
    #allocation10 [shape = 'u8[65536]{0}', space=vmem, size = 0x10000, scoped, tag = 'input window, operand 4, single buffered']
    #allocation11 [shape = 'u8[24576]{0}', space=vmem, size = 0x6000, scoped, tag = 'input window, operand 5, single buffered']
    #allocation12 [shape = 's32[1]{0}', space=sflag, size = 0x4, scoped, tag = 'scoped memory for tpu_custom_call.1']
    #allocation13 [shape = 'u8[8192]{0}', space=vmem, size = 0x2000, scoped, tag = 'output window, operand 0, single buffered']
    %11 = vsyncpa [#allocation3], 0
    %12 = vsyncpa [#allocation6], 0
    %13 = vsyncpa [#allocation9], 0
    %14 = vsyncpa [#allocation12], 0
    %15 = vsyncpa [#allocation4], 0
    // Predicated region
    $region2: #{tpu_custom_call.1} parent=1 // pred_check
      _
    $region3: #{tpu_custom_call.1} parent=1 // pred_check_branch
      %17 = sbr.rel (0) target = $region5
    $region4: #{tpu_custom_call.1} parent=1 // pred_region
      %s19 = ssub.s32 256, 256
      %20 = vsyncadd [#allocation3], %s19
      %s21 = sshll.u32 [#allocation2], 4
      %s22 = int_to_ptr.vmem [resolvable:$true] %s21
      %27 = dma.hbm_to_vmem [thread:$0]  %s0, 256, %s22, [#allocation3], 128, 128, 8
    $region5: #{tpu_custom_call.1} parent=1 // pred_fallthru
      _
    // Predicated region
    $region6: #{tpu_custom_call.1} parent=1 // pred_check
      _
    $region7: #{tpu_custom_call.1} parent=1 // pred_check_branch
      %29 = sbr.rel (0) target = $region9
    $region8: #{tpu_custom_call.1} parent=1 // pred_region
      %s31 = ssub.s32 1024, 1024
      %32 = vsyncadd [#allocation6], %s31
      %s33 = sshll.u32 [#allocation5], 4
      %s34 = int_to_ptr.vmem [resolvable:$true] %s33
      %39 = dma.hbm_to_vmem [thread:$0]  %s1, 1024, %s34, [#allocation6], 64, 64, 4
    $region9: #{tpu_custom_call.1} parent=1 // pred_fallthru
      _
    // Predicated region
    $region10: #{tpu_custom_call.1} parent=1 // pred_check
      _
    $region11: #{tpu_custom_call.1} parent=1 // pred_check_branch
      %41 = sbr.rel (0) target = $region13
    $region12: #{tpu_custom_call.1} parent=1 // pred_region
      %s43 = ssub.s32 256, 256
      %44 = vsyncadd [#allocation6], %s43
      %s45 = sshll.u32 [#allocation7], 4
      %s46 = int_to_ptr.vmem [resolvable:$true] %s45
      %51 = dma.hbm_to_vmem [thread:$0]  %s2, 256, %s46, [#allocation6], 128, 128, 8
    $region13: #{tpu_custom_call.1} parent=1 // pred_fallthru
      _
    // Predicated region
    $region14: #{tpu_custom_call.1} parent=1 // pred_check
      _
    $region15: #{tpu_custom_call.1} parent=1 // pred_check_branch
      %53 = sbr.rel (0) target = $region17
    $region16: #{tpu_custom_call.1} parent=1 // pred_region
      %s55 = ssub.s32 6144, 6144
      %56 = vsyncadd [#allocation9], %s55
      %s57 = sshll.u32 [#allocation8], 4
      %s58 = int_to_ptr.vmem [resolvable:$true] %s57
      %63 = dma.hbm_to_vmem [thread:$0]  %s3, 6144, %s58, [#allocation9], 384, 384, 24
    $region17: #{tpu_custom_call.1} parent=1 // pred_fallthru
      _
    // Predicated region
    $region18: #{tpu_custom_call.1} parent=1 // pred_check
      _
    $region19: #{tpu_custom_call.1} parent=1 // pred_check_branch
      %65 = sbr.rel (0) target = $region21
    $region20: #{tpu_custom_call.1} parent=1 // pred_region
      %s67 = ssub.s32 2048, 2048
      %68 = vsyncadd [#allocation9], %s67
      %s69 = sshll.u32 [#allocation10], 4
      %s70 = int_to_ptr.vmem [resolvable:$true] %s69
      %75 = dma.hbm_to_vmem [thread:$0]  %s4, 2048, %s70, [#allocation9], 64, 64, 4
    $region21: #{tpu_custom_call.1} parent=1 // pred_fallthru
      _
    // Predicated region
    $region22: #{tpu_custom_call.1} parent=1 // pred_check
      _
    $region23: #{tpu_custom_call.1} parent=1 // pred_check_branch
      %77 = sbr.rel (0) target = $region25
    $region24: #{tpu_custom_call.1} parent=1 // pred_region
      %s79 = ssub.s32 768, 768
      %80 = vsyncadd [#allocation12], %s79
      %s81 = sshll.u32 [#allocation11], 4
      %s82 = int_to_ptr.vmem [resolvable:$true] %s81
      %87 = dma.hbm_to_vmem [thread:$0]  %s5, 768, %s82, [#allocation12], 384, 384, 24
    $region25: #{tpu_custom_call.1} parent=1 // pred_fallthru
      _
    // Predicated region
    $region26: #{tpu_custom_call.1} parent=1 // pred_check
      _
    $region27: #{tpu_custom_call.1} parent=1 // pred_check_branch
      %89 = sbr.rel (0) target = $region29
    $region28: #{tpu_custom_call.1} parent=1 // pred_region
      %90 = dma.done [#allocation3], 256
    $region29: #{tpu_custom_call.1} parent=1 // pred_fallthru
      _
    // Predicated region
    $region30: #{tpu_custom_call.1} parent=1 // pred_check
      _
    $region31: #{tpu_custom_call.1} parent=1 // pred_check_branch
      %92 = sbr.rel (0) target = $region33
    $region32: #{tpu_custom_call.1} parent=1 // pred_region
      %93 = dma.done [#allocation6], 1024
    $region33: #{tpu_custom_call.1} parent=1 // pred_fallthru
      _
    // Predicated region
    $region34: #{tpu_custom_call.1} parent=1 // pred_check
      _
    $region35: #{tpu_custom_call.1} parent=1 // pred_check_branch
      %95 = sbr.rel (0) target = $region37
    $region36: #{tpu_custom_call.1} parent=1 // pred_region
      %96 = dma.done [#allocation6], 256
    $region37: #{tpu_custom_call.1} parent=1 // pred_fallthru
      _
    // Predicated region
    $region38: #{tpu_custom_call.1} parent=1 // pred_check
      _
    $region39: #{tpu_custom_call.1} parent=1 // pred_check_branch
      %98 = sbr.rel (0) target = $region41
    $region40: #{tpu_custom_call.1} parent=1 // pred_region
      %99 = dma.done [#allocation9], 6144
    $region41: #{tpu_custom_call.1} parent=1 // pred_fallthru
      _
    // Predicated region
    $region42: #{tpu_custom_call.1} parent=1 // pred_check
      _
    $region43: #{tpu_custom_call.1} parent=1 // pred_check_branch
      %101 = sbr.rel (0) target = $region45
    $region44: #{tpu_custom_call.1} parent=1 // pred_region
      %102 = dma.done [#allocation9], 2048
    $region45: #{tpu_custom_call.1} parent=1 // pred_fallthru
      _
    // Predicated region
    $region46: #{tpu_custom_call.1} parent=1 // pred_check
      _
    $region47: #{tpu_custom_call.1} parent=1 // pred_check_branch
      %104 = sbr.rel (0) target = $region49
    $region48: #{tpu_custom_call.1} parent=1 // pred_region
      %105 = dma.done [#allocation12], 768
    $region49: #{tpu_custom_call.1} parent=1 // pred_fallthru
      _
    %v107 = vld [vmem:[#allocation2] sm:$0xff]
    %v108 = vld [vmem:[#allocation2 + $0x8] sm:$0xff]
    %v109 = vld [vmem:[#allocation11] sm:$0xff]
    %v110 = vld [vmem:[#allocation11 + $0x8] sm:$0xff]
    %v111 = vld [vmem:[#allocation11 + $0x10] sm:$0xff]
    %v112 = vld [vmem:[#allocation11 + $0x18] sm:$0x3]
    %113 = vadd.xlane.f32.xlu0 %v107
    %v114 = vpop.xlane.xlu0 %113
    %115 = vadd.xlane.f32.xlu0 %v108
    %v116 = vpop.xlane.xlu0 %115
    %v117 = vrcp.pop 128.0
    %v118 = vmul.f32 %v114, %v117
    %v119 = vmul.f32 %v116, %v117
    %v120 = vsub.f32 %v107, %v118
    %v121 = vsub.f32 %v108, %v119
    %v122 = vmul.f32 %v120, %v120
    %v123 = vmul.f32 %v121, %v121
    %124 = vadd.xlane.f32.xlu0 %v122
    %v125 = vpop.xlane.xlu0 %124
    %126 = vadd.xlane.f32.xlu0 %v123
    %v127 = vpop.xlane.xlu0 %126
    %v128 = vmul.f32 %v125, %v117
    %v129 = vmul.f32 %v127, %v117
    %v130 = vadd.f32 %v128, 1e-06
    %v131 = vadd.f32 %v129, 1e-06
    %v132 = vrsqrt.pop %v130
    %v133 = vrsqrt.pop %v131
    %v134 = vmul.f32 %v120, %v132
    %v135 = vmul.f32 %v121, %v133
    %v136 = vlaneseq
    %v137 = vshrl.u32 %v136, 7
    %v138 = vsub.s32 4, %v137
    %v139 = vrot.slane %v109, %v138
    %v140 = vmul.f32 %v134, %v139
    %v141 = vmul.f32 %v135, %v139
    %v142 = vlaneseq
    %v143 = vshrl.u32 %v142, 7
    %v144 = vsub.s32 5, %v143
    %v145 = vrot.slane %v109, %v144
    %v146 = vadd.f32 %v140, %v145
    %v147 = vadd.f32 %v141, %v145
    %v148 = vpack.c.bf16 %v147, %v146
    %v149 = vld [vmem:[#allocation8] sm:$0xff]
    %v150 = vld [vmem:[#allocation8 + $0x8] sm:$0xf]
    %v151 = vld [vmem:[#allocation8 + $0x18] sm:$0xff]
    %v152 = vld [vmem:[#allocation8 + $0x20] sm:$0xf]
    %v153 = vld [vmem:[#allocation8 + $0x30] sm:$0xff]
    %v154 = vld [vmem:[#allocation8 + $0x38] sm:$0xf]
    %v155 = vld [vmem:[#allocation8 + $0x48] sm:$0xff]
    %v156 = vld [vmem:[#allocation8 + $0x50] sm:$0xf]
    %v157 = vld [vmem:[#allocation8 + $0x60] sm:$0xff]
    %v158 = vld [vmem:[#allocation8 + $0x68] sm:$0xf]
    %v159 = vld [vmem:[#allocation8 + $0x78] sm:$0xff]
    %v160 = vld [vmem:[#allocation8 + $0x80] sm:$0xf]
    %v161 = vld [vmem:[#allocation8 + $0x90] sm:$0xff]
    %v162 = vld [vmem:[#allocation8 + $0x98] sm:$0xf]
    %v163 = vld [vmem:[#allocation8 + $0xa8] sm:$0xff]
    %v164 = vld [vmem:[#allocation8 + $0xb0] sm:$0xf]
    %v165 = vld [vmem:[#allocation8 + $0xc0] sm:$0xff]
    %v166 = vld [vmem:[#allocation8 + $0xc8] sm:$0xf]
    %v167 = vld [vmem:[#allocation8 + $0xd8] sm:$0xff]
    %v168 = vld [vmem:[#allocation8 + $0xe0] sm:$0xf]
    %v169 = vld [vmem:[#allocation8 + $0xf0] sm:$0xff]
    %v170 = vld [vmem:[#allocation8 + $0xf8] sm:$0xf]
    %v171 = vld [vmem:[#allocation8 + $0x108] sm:$0xff]
    %v172 = vld [vmem:[#allocation8 + $0x110] sm:$0xf]
    %v173 = vld [vmem:[#allocation8 + $0x120] sm:$0xff]
    %v174 = vld [vmem:[#allocation8 + $0x128] sm:$0xf]
    %v175 = vld [vmem:[#allocation8 + $0x138] sm:$0xff]
    %v176 = vld [vmem:[#allocation8 + $0x140] sm:$0xf]
    %v177 = vld [vmem:[#allocation8 + $0x150] sm:$0xff]
    %v178 = vld [vmem:[#allocation8 + $0x158] sm:$0xf]
    %v179 = vld [vmem:[#allocation8 + $0x168] sm:$0xff]
    %v180 = vld [vmem:[#allocation8 + $0x170] sm:$0xf]
    %v181 = vlaneseq
    %v182 = vshrl.u32 %v181, 7
    %v183 = vsub.s32 0, %v182
    %v184 = vrot.slane %v109, %v183
    %v185 = vlaneseq
    %v186 = vshrl.u32 %v185, 7
    %v187 = vsub.s32 0, %v186
    %v188 = vrot.slane %v110, %v187
    %v189 = vlaneseq
    %v190 = vshrl.u32 %v189, 7
    %v191 = vsub.s32 0, %v190
    %v192 = vrot.slane %v111, %v191
    %v225 = vunpack.c.l.b16 %v149
    %v226 = vunpack.c.h.b16 %v149
    %v227 = vunpack.c.l.b16 %v150
    %v228 = vunpack.c.l.b16 %v151
    %v229 = vunpack.c.h.b16 %v151
    %v230 = vunpack.c.l.b16 %v152
    %v231 = vunpack.c.l.b16 %v153
    %v232 = vunpack.c.h.b16 %v153
    %v233 = vunpack.c.l.b16 %v154
    %v234 = vunpack.c.l.b16 %v155
    %v235 = vunpack.c.h.b16 %v155
    %v236 = vunpack.c.l.b16 %v156
    %v237 = vunpack.c.l.b16 %v157
    %v238 = vunpack.c.h.b16 %v157
    %v239 = vunpack.c.l.b16 %v158
    %v240 = vunpack.c.l.b16 %v159
    %v241 = vunpack.c.h.b16 %v159
    %v242 = vunpack.c.l.b16 %v160
    %v243 = vunpack.c.l.b16 %v161
    %v244 = vunpack.c.h.b16 %v161
    %v245 = vunpack.c.l.b16 %v162
    %v246 = vunpack.c.l.b16 %v163
    %v247 = vunpack.c.h.b16 %v163
    %v248 = vunpack.c.l.b16 %v164
    %v249 = vunpack.c.l.b16 %v165
    %v250 = vunpack.c.h.b16 %v165
    %v251 = vunpack.c.l.b16 %v166
    %v252 = vunpack.c.l.b16 %v167
    %v253 = vunpack.c.h.b16 %v167
    %v254 = vunpack.c.l.b16 %v168
    %v255 = vunpack.c.l.b16 %v169
    %v256 = vunpack.c.h.b16 %v169
    %v257 = vunpack.c.l.b16 %v170
    %v258 = vunpack.c.l.b16 %v171
    %v259 = vunpack.c.h.b16 %v171
    %v260 = vunpack.c.l.b16 %v172
    %v261 = vunpack.c.l.b16 %v173
    %v262 = vunpack.c.h.b16 %v173
    %v263 = vunpack.c.l.b16 %v174
    %v264 = vunpack.c.l.b16 %v175
    %v265 = vunpack.c.h.b16 %v175
    %v266 = vunpack.c.l.b16 %v176
    %v267 = vunpack.c.l.b16 %v177
    %v268 = vunpack.c.h.b16 %v177
    %v269 = vunpack.c.l.b16 %v178
    %v270 = vunpack.c.l.b16 %v179
    %v271 = vunpack.c.h.b16 %v179
    %v272 = vunpack.c.l.b16 %v180
    %v273 = vpack.c.b16 %v228, %v225
    %v274 = vpack.c.b16 %v229, %v226
    %v275 = vpack.c.b16 %v230, %v227
    %v276 = vpack.c.b16 %v234, %v231
    %v277 = vpack.c.b16 %v235, %v232
    %v278 = vpack.c.b16 %v236, %v233
    %v279 = vpack.c.b16 %v240, %v237
    %v280 = vpack.c.b16 %v241, %v238
    %v281 = vpack.c.b16 %v242, %v239
    %v282 = vpack.c.b16 %v246, %v243
    %v283 = vpack.c.b16 %v247, %v244
    %v284 = vpack.c.b16 %v248, %v245
    %v285 = vpack.c.b16 %v252, %v249
    %v286 = vpack.c.b16 %v253, %v250
    %v287 = vpack.c.b16 %v254, %v251
    %v288 = vpack.c.b16 %v258, %v255
    %v289 = vpack.c.b16 %v259, %v256
    %v290 = vpack.c.b16 %v260, %v257
    %v291 = vpack.c.b16 %v264, %v261
    %v292 = vpack.c.b16 %v265, %v262
    %v293 = vpack.c.b16 %v266, %v263
    %v294 = vpack.c.b16 %v270, %v267
    %v295 = vpack.c.b16 %v271, %v268
    %v296 = vpack.c.b16 %v272, %v269
    %321 = vmatprep.subr.bf16.mxu0 %v295
    %322 = vmatpush1.bf16.msra.mxu0 %v294
    %323 = vmatprep.subr.bf16.mxu0 %v292
    %324 = vmatpush1.bf16.msra.mxu0 %v291
    %325 = vmatprep.subr.bf16.mxu0 %v289
    %326 = vmatpush1.bf16.msra.mxu0 %v288
    %327 = vmatprep.subr.bf16.mxu0 %v286
    %328 = vmatpush1.bf16.msra.mxu0 %v285
    %329 = vmatprep.subr.bf16.mxu0 %v283
    %330 = vmatpush1.bf16.msra.mxu0 %v282
    %331 = vmatprep.subr.bf16.mxu0 %v280
    %332 = vmatpush1.bf16.msra.mxu0 %v279
    %333 = vmatprep.subr.bf16.mxu0 %v277
    %334 = vmatpush1.bf16.msra.mxu0 %v276
    %335 = vmatprep.subr.bf16.mxu0 %v274
    %336 = vmatpush1.bf16.msra.mxu0 %v273
    %337 = vmatprep.subr.bf16.mxu0 0
    %338 = vmatpush2.bf16.msra.mxu0 0
    %339 = vmatprep.subr.bf16.mxu0 0
    %340 = vmatpush2.bf16.msra.mxu0 0
    %341 = vmatprep.subr.bf16.mxu0 0
    %342 = vmatpush2.bf16.msra.mxu0 0
    %343 = vmatprep.subr.bf16.mxu0 0
    %344 = vmatpush2.bf16.msra.mxu0 0
    %345 = vmatprep.subr.bf16.mxu0 0
    %346 = vmatpush2.bf16.msra.mxu0 0
    %347 = vmatprep.subr.bf16.mxu0 0
    %348 = vmatpush2.bf16.msra.mxu0 0
    %349 = vmatprep.subr.bf16.mxu0 0
    %350 = vmatpush2.bf16.msra.mxu0 0
    %351 = vmatprep.subr.bf16.mxu0 0
    %352 = vmatpush2.bf16.msra.mxu0 0
    %353 = vmatprep.mubr.bf16.mxu0 0
    %354 = vmatmul.mubr.bf16.gmra.mxu0 %v148
    %v355 = vpop.f32.mrf.mxu0
    %v356 = vadd.f32 %v184, %v355
    %v357 = vpop.f32.mrf.mxu0
    %v358 = vadd.f32 %v188, %v357
    %v359 = vpop.f32.mrf.mxu0
    %v360 = vadd.f32 %v184, %v359
    %v361 = vpop.f32.mrf.mxu0
    %v362 = vadd.f32 %v188, %v361
    %363 = vdwg.mxu0
    %364 = vmatprep.subr.bf16.mxu0 0
    %365 = vmatpush1.bf16.msra.mxu0 %v296
    %366 = vmatprep.subr.bf16.mxu0 0
    %367 = vmatpush1.bf16.msra.mxu0 %v293
    %368 = vmatprep.subr.bf16.mxu0 0
    %369 = vmatpush1.bf16.msra.mxu0 %v290
    %370 = vmatprep.subr.bf16.mxu0 0
    %371 = vmatpush1.bf16.msra.mxu0 %v287
    %372 = vmatprep.subr.bf16.mxu0 0
    %373 = vmatpush1.bf16.msra.mxu0 %v284
    %374 = vmatprep.subr.bf16.mxu0 0
    %375 = vmatpush1.bf16.msra.mxu0 %v281
    %376 = vmatprep.subr.bf16.mxu0 0
    %377 = vmatpush1.bf16.msra.mxu0 %v278
    %378 = vmatprep.subr.bf16.mxu0 0
    %379 = vmatpush1.bf16.msra.mxu0 %v275
    %380 = vmatprep.subr.bf16.mxu0 0
    %381 = vmatpush2.bf16.msra.mxu0 0
    %382 = vmatprep.subr.bf16.mxu0 0
    %383 = vmatpush2.bf16.msra.mxu0 0
    %384 = vmatprep.subr.bf16.mxu0 0
    %385 = vmatpush2.bf16.msra.mxu0 0
    %386 = vmatprep.subr.bf16.mxu0 0
    %387 = vmatpush2.bf16.msra.mxu0 0
    %388 = vmatprep.subr.bf16.mxu0 0
    %389 = vmatpush2.bf16.msra.mxu0 0
    %390 = vmatprep.subr.bf16.mxu0 0
    %391 = vmatpush2.bf16.msra.mxu0 0
    %392 = vmatprep.subr.bf16.mxu0 0
    %393 = vmatpush2.bf16.msra.mxu0 0
    %394 = vmatprep.subr.bf16.mxu0 0
    %395 = vmatpush2.bf16.msra.mxu0 0
    %396 = vmatprep.mubr.bf16.mxu0 0
    %397 = vmatmul.mubr.bf16.gmra.mxu0 %v148
    %v398 = vpop.f32.mrf.mxu0
    %v399 = vadd.f32 %v192, %v398
    %v400 = vpop.f32.mrf.mxu0
    %v401 = vpop.f32.mrf.mxu0
    %v402 = vadd.f32 %v192, %v401
    %v403 = vpop.f32.mrf.mxu0
    %404 = vdwg.mxu0
    %v405 = vmul.f32 %v356, 0.125
    %v406 = vmul.f32 %v360, 0.125
    %v407 = vpack.c.bf16 %v406, %v405
    %v408 = vpack.c.bf16 %v362, %v358
    %v409 = vpack.c.bf16 %v402, %v399
    %v410 = vld [vmem:[#allocation5] sm:$0xf]
    %v411 = vld [vmem:[#allocation5 + $0x4] sm:$0xf]
    %v412 = vld [vmem:[#allocation5 + $0x8] sm:$0xf]
    %v413 = vld [vmem:[#allocation5 + $0xc] sm:$0xf]
    %v414 = vld [vmem:[#allocation5 + $0x10] sm:$0xf]
    %v415 = vld [vmem:[#allocation5 + $0x14] sm:$0xf]
    %v416 = vld [vmem:[#allocation5 + $0x18] sm:$0xf]
    %v417 = vld [vmem:[#allocation5 + $0x1c] sm:$0xf]
    %v418 = vld [vmem:[#allocation5 + $0x20] sm:$0xf]
    %v419 = vld [vmem:[#allocation5 + $0x24] sm:$0xf]
    %v420 = vld [vmem:[#allocation5 + $0x28] sm:$0xf]
    %v421 = vld [vmem:[#allocation5 + $0x2c] sm:$0xf]
    %v422 = vld [vmem:[#allocation5 + $0x30] sm:$0xf]
    %v423 = vld [vmem:[#allocation5 + $0x34] sm:$0xf]
    %v424 = vld [vmem:[#allocation5 + $0x38] sm:$0xf]
    %v425 = vld [vmem:[#allocation5 + $0x3c] sm:$0xf]
    %v426 = vunpack.c.l.bf16 %v410
    %v427 = vunpack.c.l.bf16 %v411
    %v428 = vunpack.c.l.bf16 %v412
    %v429 = vunpack.c.l.bf16 %v413
    %v430 = vunpack.c.l.bf16 %v414
    %v431 = vunpack.c.l.bf16 %v415
    %v432 = vunpack.c.l.bf16 %v416
    %v433 = vunpack.c.l.bf16 %v417
    %v434 = vunpack.c.l.bf16 %v418
    %v435 = vunpack.c.l.bf16 %v419
    %v436 = vunpack.c.l.bf16 %v420
    %v437 = vunpack.c.l.bf16 %v421
    %v438 = vunpack.c.l.bf16 %v422
    %v439 = vunpack.c.l.bf16 %v423
    %v440 = vunpack.c.l.bf16 %v424
    %v441 = vunpack.c.l.bf16 %v425
    %vm442 = vcmask 523264
    %v443 = vsel %vm442, %v426, 0.0
    %444 = vadd.xlane.f32.xlu0 %v443
    %v445 = vpop.xlane.xlu0 %444
    %v446 = vsel %vm442, %v427, 0.0
    %447 = vadd.xlane.f32.xlu0 %v446
    %v448 = vpop.xlane.xlu0 %447
    %v449 = vsel %vm442, %v428, 0.0
    %450 = vadd.xlane.f32.xlu0 %v449
    %v451 = vpop.xlane.xlu0 %450
    %v452 = vsel %vm442, %v429, 0.0
    %453 = vadd.xlane.f32.xlu0 %v452
    %v454 = vpop.xlane.xlu0 %453
    %v455 = vsel %vm442, %v430, 0.0
    %456 = vadd.xlane.f32.xlu0 %v455
    %v457 = vpop.xlane.xlu0 %456
    %v458 = vsel %vm442, %v431, 0.0
    %459 = vadd.xlane.f32.xlu0 %v458
    %v460 = vpop.xlane.xlu0 %459
    %v461 = vsel %vm442, %v432, 0.0
    %462 = vadd.xlane.f32.xlu0 %v461
    %v463 = vpop.xlane.xlu0 %462
    %v464 = vsel %vm442, %v433, 0.0
    %465 = vadd.xlane.f32.xlu0 %v464
    %v466 = vpop.xlane.xlu0 %465
    %v467 = vsel %vm442, %v434, 0.0
    %468 = vadd.xlane.f32.xlu0 %v467
    %v469 = vpop.xlane.xlu0 %468
    %v470 = vsel %vm442, %v435, 0.0
    %471 = vadd.xlane.f32.xlu0 %v470
    %v472 = vpop.xlane.xlu0 %471
    %v473 = vsel %vm442, %v436, 0.0
    %474 = vadd.xlane.f32.xlu0 %v473
    %v475 = vpop.xlane.xlu0 %474
    %v476 = vsel %vm442, %v437, 0.0
    %477 = vadd.xlane.f32.xlu0 %v476
    %v478 = vpop.xlane.xlu0 %477
    %v479 = vsel %vm442, %v438, 0.0
    %480 = vadd.xlane.f32.xlu0 %v479
    %v481 = vpop.xlane.xlu0 %480
    %v482 = vsel %vm442, %v439, 0.0
    %483 = vadd.xlane.f32.xlu0 %v482
    %v484 = vpop.xlane.xlu0 %483
    %v485 = vsel %vm442, %v440, 0.0
    %486 = vadd.xlane.f32.xlu0 %v485
    %v487 = vpop.xlane.xlu0 %486
    %v488 = vsel %vm442, %v441, 0.0
    %489 = vadd.xlane.f32.xlu0 %v488
    %v490 = vpop.xlane.xlu0 %489
    %v491 = vrcp.pop 64.0
    %v492 = vmul.f32 %v445, %v491
    %v493 = vmul.f32 %v448, %v491
    %v494 = vmul.f32 %v451, %v491
    %v495 = vmul.f32 %v454, %v491
    %v496 = vmul.f32 %v457, %v491
    %v497 = vmul.f32 %v460, %v491
    %v498 = vmul.f32 %v463, %v491
    %v499 = vmul.f32 %v466, %v491
    %v500 = vmul.f32 %v469, %v491
    %v501 = vmul.f32 %v472, %v491
    %v502 = vmul.f32 %v475, %v491
    %v503 = vmul.f32 %v478, %v491
    %v504 = vmul.f32 %v481, %v491
    %v505 = vmul.f32 %v484, %v491
    %v506 = vmul.f32 %v487, %v491
    %v507 = vmul.f32 %v490, %v491
    %v508 = vsub.f32 %v426, %v492
    %v509 = vsub.f32 %v427, %v493
    %v510 = vsub.f32 %v428, %v494
    %v511 = vsub.f32 %v429, %v495
    %v512 = vsub.f32 %v430, %v496
    %v513 = vsub.f32 %v431, %v497
    %v514 = vsub.f32 %v432, %v498
    %v515 = vsub.f32 %v433, %v499
    %v516 = vsub.f32 %v434, %v500
    %v517 = vsub.f32 %v435, %v501
    %v518 = vsub.f32 %v436, %v502
    %v519 = vsub.f32 %v437, %v503
    %v520 = vsub.f32 %v438, %v504
    %v521 = vsub.f32 %v439, %v505
    %v522 = vsub.f32 %v440, %v506
    %v523 = vsub.f32 %v441, %v507
    %v524 = vmul.f32 %v508, %v508
    %v525 = vmul.f32 %v509, %v509
    %v526 = vmul.f32 %v510, %v510
    %v527 = vmul.f32 %v511, %v511
    %v528 = vmul.f32 %v512, %v512
    %v529 = vmul.f32 %v513, %v513
    %v530 = vmul.f32 %v514, %v514
    %v531 = vmul.f32 %v515, %v515
    %v532 = vmul.f32 %v516, %v516
    %v533 = vmul.f32 %v517, %v517
    %v534 = vmul.f32 %v518, %v518
    %v535 = vmul.f32 %v519, %v519
    %v536 = vmul.f32 %v520, %v520
    %v537 = vmul.f32 %v521, %v521
    %v538 = vmul.f32 %v522, %v522
    %v539 = vmul.f32 %v523, %v523
    %v540 = vsel %vm442, %v524, 0.0
    %541 = vadd.xlane.f32.xlu0 %v540
    %v542 = vpop.xlane.xlu0 %541
    %v543 = vsel %vm442, %v525, 0.0
    %544 = vadd.xlane.f32.xlu0 %v543
    %v545 = vpop.xlane.xlu0 %544
    %v546 = vsel %vm442, %v526, 0.0
    %547 = vadd.xlane.f32.xlu0 %v546
    %v548 = vpop.xlane.xlu0 %547
    %v549 = vsel %vm442, %v527, 0.0
    %550 = vadd.xlane.f32.xlu0 %v549
    %v551 = vpop.xlane.xlu0 %550
    %v552 = vsel %vm442, %v528, 0.0
    %553 = vadd.xlane.f32.xlu0 %v552
    %v554 = vpop.xlane.xlu0 %553
    %v555 = vsel %vm442, %v529, 0.0
    %556 = vadd.xlane.f32.xlu0 %v555
    %v557 = vpop.xlane.xlu0 %556
    %v558 = vsel %vm442, %v530, 0.0
    %559 = vadd.xlane.f32.xlu0 %v558
    %v560 = vpop.xlane.xlu0 %559
    %v561 = vsel %vm442, %v531, 0.0
    %562 = vadd.xlane.f32.xlu0 %v561
    %v563 = vpop.xlane.xlu0 %562
    %v564 = vsel %vm442, %v532, 0.0
    %565 = vadd.xlane.f32.xlu0 %v564
    %v566 = vpop.xlane.xlu0 %565
    %v567 = vsel %vm442, %v533, 0.0
    %568 = vadd.xlane.f32.xlu0 %v567
    %v569 = vpop.xlane.xlu0 %568
    %v570 = vsel %vm442, %v534, 0.0
    %571 = vadd.xlane.f32.xlu0 %v570
    %v572 = vpop.xlane.xlu0 %571
    %v573 = vsel %vm442, %v535, 0.0
    %574 = vadd.xlane.f32.xlu0 %v573
    %v575 = vpop.xlane.xlu0 %574
    %v576 = vsel %vm442, %v536, 0.0
    %577 = vadd.xlane.f32.xlu0 %v576
    %v578 = vpop.xlane.xlu0 %577
    %v579 = vsel %vm442, %v537, 0.0
    %580 = vadd.xlane.f32.xlu0 %v579
    %v581 = vpop.xlane.xlu0 %580
    %v582 = vsel %vm442, %v538, 0.0
    %583 = vadd.xlane.f32.xlu0 %v582
    %v584 = vpop.xlane.xlu0 %583
    %v585 = vsel %vm442, %v539, 0.0
    %586 = vadd.xlane.f32.xlu0 %v585
    %v587 = vpop.xlane.xlu0 %586
    %v588 = vmul.f32 %v542, %v491
    %v589 = vmul.f32 %v545, %v491
    %v590 = vmul.f32 %v548, %v491
    %v591 = vmul.f32 %v551, %v491
    %v592 = vmul.f32 %v554, %v491
    %v593 = vmul.f32 %v557, %v491
    %v594 = vmul.f32 %v560, %v491
    %v595 = vmul.f32 %v563, %v491
    %v596 = vmul.f32 %v566, %v491
    %v597 = vmul.f32 %v569, %v491
    %v598 = vmul.f32 %v572, %v491
    %v599 = vmul.f32 %v575, %v491
    %v600 = vmul.f32 %v578, %v491
    %v601 = vmul.f32 %v581, %v491
    %v602 = vmul.f32 %v584, %v491
    %v603 = vmul.f32 %v587, %v491
    %v604 = vadd.f32 %v588, 1e-06
    %v605 = vadd.f32 %v589, 1e-06
    %v606 = vadd.f32 %v590, 1e-06
    %v607 = vadd.f32 %v591, 1e-06
    %v608 = vadd.f32 %v592, 1e-06
    %v609 = vadd.f32 %v593, 1e-06
    %v610 = vadd.f32 %v594, 1e-06
    %v611 = vadd.f32 %v595, 1e-06
    %v612 = vadd.f32 %v596, 1e-06
    %v613 = vadd.f32 %v597, 1e-06
    %v614 = vadd.f32 %v598, 1e-06
    %v615 = vadd.f32 %v599, 1e-06
    %v616 = vadd.f32 %v600, 1e-06
    %v617 = vadd.f32 %v601, 1e-06
    %v618 = vadd.f32 %v602, 1e-06
    %v619 = vadd.f32 %v603, 1e-06
    %v620 = vrsqrt.pop %v604
    %v621 = vrsqrt.pop %v605
    %v622 = vrsqrt.pop %v606
    %v623 = vrsqrt.pop %v607
    %v624 = vrsqrt.pop %v608
    %v625 = vrsqrt.pop %v609
    %v626 = vrsqrt.pop %v610
    %v627 = vrsqrt.pop %v611
    %v628 = vrsqrt.pop %v612
    %v629 = vrsqrt.pop %v613
    %v630 = vrsqrt.pop %v614
    %v631 = vrsqrt.pop %v615
    %v632 = vrsqrt.pop %v616
    %v633 = vrsqrt.pop %v617
    %v634 = vrsqrt.pop %v618
    %v635 = vrsqrt.pop %v619
    %v636 = vmul.f32 %v508, %v620
    %v637 = vmul.f32 %v509, %v621
    %v638 = vmul.f32 %v510, %v622
    %v639 = vmul.f32 %v511, %v623
    %v640 = vmul.f32 %v512, %v624
    %v641 = vmul.f32 %v513, %v625
    %v642 = vmul.f32 %v514, %v626
    %v643 = vmul.f32 %v515, %v627
    %v644 = vmul.f32 %v516, %v628
    %v645 = vmul.f32 %v517, %v629
    %v646 = vmul.f32 %v518, %v630
    %v647 = vmul.f32 %v519, %v631
    %v648 = vmul.f32 %v520, %v632
    %v649 = vmul.f32 %v521, %v633
    %v650 = vmul.f32 %v522, %v634
    %v651 = vmul.f32 %v523, %v635
    %v652 = vlaneseq
    %v653 = vshrl.u32 %v652, 7
    %v654 = vsub.s32 0, %v653
    %v655 = vrot.slane %v112, %v654
    %v656 = vmul.f32 %v636, %v655
    %v657 = vmul.f32 %v637, %v655
    %v658 = vmul.f32 %v638, %v655
    %v659 = vmul.f32 %v639, %v655
    %v660 = vmul.f32 %v640, %v655
    %v661 = vmul.f32 %v641, %v655
    %v662 = vmul.f32 %v642, %v655
    %v663 = vmul.f32 %v643, %v655
    %v664 = vmul.f32 %v644, %v655
    %v665 = vmul.f32 %v645, %v655
    %v666 = vmul.f32 %v646, %v655
    %v667 = vmul.f32 %v647, %v655
    %v668 = vmul.f32 %v648, %v655
    %v669 = vmul.f32 %v649, %v655
    %v670 = vmul.f32 %v650, %v655
    %v671 = vmul.f32 %v651, %v655
    %v672 = vlaneseq
    %v673 = vshrl.u32 %v672, 7
    %v674 = vsub.s32 1, %v673
    %v675 = vrot.slane %v112, %v674
    %v676 = vadd.f32 %v656, %v675
    %v677 = vadd.f32 %v657, %v675
    %v678 = vadd.f32 %v658, %v675
    %v679 = vadd.f32 %v659, %v675
    %v680 = vadd.f32 %v660, %v675
    %v681 = vadd.f32 %v661, %v675
    %v682 = vadd.f32 %v662, %v675
    %v683 = vadd.f32 %v663, %v675
    %v684 = vadd.f32 %v664, %v675
    %v685 = vadd.f32 %v665, %v675
    %v686 = vadd.f32 %v666, %v675
    %v687 = vadd.f32 %v667, %v675
    %v688 = vadd.f32 %v668, %v675
    %v689 = vadd.f32 %v669, %v675
    %v690 = vadd.f32 %v670, %v675
    %v691 = vadd.f32 %v671, %v675
    %v692 = vpack.c.bf16 %v676, %v676
    %v693 = vpack.c.bf16 %v677, %v677
    %v694 = vpack.c.bf16 %v678, %v678
    %v695 = vpack.c.bf16 %v679, %v679
    %v696 = vpack.c.bf16 %v680, %v680
    %v697 = vpack.c.bf16 %v681, %v681
    %v698 = vpack.c.bf16 %v682, %v682
    %v699 = vpack.c.bf16 %v683, %v683
    %v700 = vpack.c.bf16 %v684, %v684
    %v701 = vpack.c.bf16 %v685, %v685
    %v702 = vpack.c.bf16 %v686, %v686
    %v703 = vpack.c.bf16 %v687, %v687
    %v704 = vpack.c.bf16 %v688, %v688
    %v705 = vpack.c.bf16 %v689, %v689
    %v706 = vpack.c.bf16 %v690, %v690
    %v707 = vpack.c.bf16 %v691, %v691
    %v708 = vcombine.low %v692, %v696
    %v710 = vunpack.c.l.s4 1983009808
    %v711 = vunpack.c.0.s8 %v710
    %v712 = vlaneseq
    %v713 = vshrl.u32 %v712, 7
    %v714 = vsub.s32 %v711, %v713
    %v715 = vrot.slane %v708, %v714
    %v716 = vcombine.low %v694, %v698
    %v718 = vunpack.c.l.s4 1983009808
    %v719 = vunpack.c.0.s8 %v718
    %v720 = vlaneseq
    %v721 = vshrl.u32 %v720, 7
    %v722 = vsub.s32 %v719, %v721
    %v723 = vrot.slane %v716, %v722
    %v724 = vcombine.low %v715, %v723
    %v725 = vcombine.high %v715, %v723
    %v727 = vunpack.c.l.s4 1934713408
    %v728 = vunpack.c.0.s8 %v727
    %v729 = vlaneseq
    %v730 = vshrl.u32 %v729, 7
    %v731 = vsub.s32 %v728, %v730
    %v732 = vrot.slane %v724, %v731
    %v734 = vunpack.c.l.s4 1934713408
    %v735 = vunpack.c.0.s8 %v734
    %v736 = vlaneseq
    %v737 = vshrl.u32 %v736, 7
    %v738 = vsub.s32 %v735, %v737
    %v739 = vrot.slane %v725, %v738
    %v740 = vcombine.high %v732, 0
    %v741 = vcombine.high %v739, 0
    %v742 = vcombine.low %v693, %v697
    %v744 = vunpack.c.l.s4 1983009808
    %v745 = vunpack.c.0.s8 %v744
    %v746 = vlaneseq
    %v747 = vshrl.u32 %v746, 7
    %v748 = vsub.s32 %v745, %v747
    %v749 = vrot.slane %v742, %v748
    %v750 = vcombine.low %v695, %v699
    %v752 = vunpack.c.l.s4 1983009808
    %v753 = vunpack.c.0.s8 %v752
    %v754 = vlaneseq
    %v755 = vshrl.u32 %v754, 7
    %v756 = vsub.s32 %v753, %v755
    %v757 = vrot.slane %v750, %v756
    %v758 = vcombine.low %v749, %v757
    %v759 = vcombine.high %v749, %v757
    %v761 = vunpack.c.l.s4 1934713408
    %v762 = vunpack.c.0.s8 %v761
    %v763 = vlaneseq
    %v764 = vshrl.u32 %v763, 7
    %v765 = vsub.s32 %v762, %v764
    %v766 = vrot.slane %v758, %v765
    %v768 = vunpack.c.l.s4 1934713408
    %v769 = vunpack.c.0.s8 %v768
    %v770 = vlaneseq
    %v771 = vshrl.u32 %v770, 7
    %v772 = vsub.s32 %v769, %v771
    %v773 = vrot.slane %v759, %v772
    %v774 = vcombine.high %v766, 0
    %v775 = vcombine.high %v773, 0
    %v776 = vcombine.low %v700, %v704
    %v778 = vunpack.c.l.s4 1983009808
    %v779 = vunpack.c.0.s8 %v778
    %v780 = vlaneseq
    %v781 = vshrl.u32 %v780, 7
    %v782 = vsub.s32 %v779, %v781
    %v783 = vrot.slane %v776, %v782
    %v784 = vcombine.low %v702, %v706
    %v786 = vunpack.c.l.s4 1983009808
    %v787 = vunpack.c.0.s8 %v786
    %v788 = vlaneseq
    %v789 = vshrl.u32 %v788, 7
    %v790 = vsub.s32 %v787, %v789
    %v791 = vrot.slane %v784, %v790
    %v792 = vcombine.low %v783, %v791
    %v793 = vcombine.high %v783, %v791
    %v795 = vunpack.c.l.s4 1934713408
    %v796 = vunpack.c.0.s8 %v795
    %v797 = vlaneseq
    %v798 = vshrl.u32 %v797, 7
    %v799 = vsub.s32 %v796, %v798
    %v800 = vrot.slane %v792, %v799
    %v802 = vunpack.c.l.s4 1934713408
    %v803 = vunpack.c.0.s8 %v802
    %v804 = vlaneseq
    %v805 = vshrl.u32 %v804, 7
    %v806 = vsub.s32 %v803, %v805
    %v807 = vrot.slane %v793, %v806
    %v808 = vcombine.high %v800, 0
    %v809 = vcombine.high %v807, 0
    %v810 = vcombine.low %v701, %v705
    %v812 = vunpack.c.l.s4 1983009808
    %v813 = vunpack.c.0.s8 %v812
    %v814 = vlaneseq
    %v815 = vshrl.u32 %v814, 7
    %v816 = vsub.s32 %v813, %v815
    %v817 = vrot.slane %v810, %v816
    %v818 = vcombine.low %v703, %v707
    %v820 = vunpack.c.l.s4 1983009808
    %v821 = vunpack.c.0.s8 %v820
    %v822 = vlaneseq
    %v823 = vshrl.u32 %v822, 7
    %v824 = vsub.s32 %v821, %v823
    %v825 = vrot.slane %v818, %v824
    %v826 = vcombine.low %v817, %v825
    %v827 = vcombine.high %v817, %v825
    %v829 = vunpack.c.l.s4 1934713408
    %v830 = vunpack.c.0.s8 %v829
    %v831 = vlaneseq
    %v832 = vshrl.u32 %v831, 7
    %v833 = vsub.s32 %v830, %v832
    %v834 = vrot.slane %v826, %v833
    %v836 = vunpack.c.l.s4 1934713408
    %v837 = vunpack.c.0.s8 %v836
    %v838 = vlaneseq
    %v839 = vshrl.u32 %v838, 7
    %v840 = vsub.s32 %v837, %v839
    %v841 = vrot.slane %v827, %v840
    %v842 = vcombine.high %v834, 0
    %v843 = vcombine.high %v841, 0
    %v846 = vpack.i.b16 %v766, %v732
    %v847 = vshrl.u32 %v732, 16
    %v848 = vshrl.u32 %v766, 16
    %v849 = vpack.i.b16 %v848, %v847
    %v852 = vpack.i.b16 %v774, %v740
    %v853 = vshrl.u32 %v740, 16
    %v854 = vshrl.u32 %v774, 16
    %v855 = vpack.i.b16 %v854, %v853
    %v858 = vpack.i.b16 %v773, %v739
    %v859 = vshrl.u32 %v739, 16
    %v860 = vshrl.u32 %v773, 16
    %v861 = vpack.i.b16 %v860, %v859
    %v864 = vpack.i.b16 %v775, %v741
    %v865 = vshrl.u32 %v741, 16
    %v866 = vshrl.u32 %v775, 16
    %v867 = vpack.i.b16 %v866, %v865
    %v870 = vpack.i.b16 %v834, %v800
    %v871 = vshrl.u32 %v800, 16
    %v872 = vshrl.u32 %v834, 16
    %v873 = vpack.i.b16 %v872, %v871
    %v876 = vpack.i.b16 %v842, %v808
    %v877 = vshrl.u32 %v808, 16
    %v878 = vshrl.u32 %v842, 16
    %v879 = vpack.i.b16 %v878, %v877
    %v882 = vpack.i.b16 %v841, %v807
    %v883 = vshrl.u32 %v807, 16
    %v884 = vshrl.u32 %v841, 16
    %v885 = vpack.i.b16 %v884, %v883
    %v888 = vpack.i.b16 %v843, %v809
    %v889 = vshrl.u32 %v809, 16
    %v890 = vshrl.u32 %v843, 16
    %v891 = vpack.i.b16 %v890, %v889
    %v892 = vld [vmem:[#allocation7] sm:$0xff]
    %894 = vrot.lane.b32.xlu0 %v407, 64
    %v895 = vpop.permute.xlu0 %894
    %v897 = vunpack.c.l.s4 1983009808
    %v898 = vunpack.c.0.s8 %v897
    %v899 = vlaneseq
    %v900 = vshrl.u32 %v899, 7
    %v901 = vsub.s32 %v898, %v900
    %v902 = vrot.slane %v407, %v901
    %v903 = vcombine.high %v902, 0
    %v905 = vunpack.c.l.s4 1934713408
    %v906 = vunpack.c.0.s8 %v905
    %v907 = vlaneseq
    %v908 = vshrl.u32 %v907, 7
    %v909 = vsub.s32 %v906, %v908
    %v910 = vrot.slane %v902, %v909
    %v912 = vunpack.c.l.s4 1934713408
    %v913 = vunpack.c.0.s8 %v912
    %v914 = vlaneseq
    %v915 = vshrl.u32 %v914, 7
    %v916 = vsub.s32 %v913, %v915
    %v917 = vrot.slane %v903, %v916
    %v918 = vcombine.high %v910, 0
    %v919 = vcombine.high %v917, 0
    %v922 = vunpack.c.l.s4 1983009808
    %v923 = vunpack.c.0.s8 %v922
    %v924 = vlaneseq
    %v925 = vshrl.u32 %v924, 7
    %v926 = vsub.s32 %v923, %v925
    %v927 = vrot.slane %v895, %v926
    %v928 = vcombine.high %v927, 0
    %v930 = vunpack.c.l.s4 1934713408
    %v931 = vunpack.c.0.s8 %v930
    %v932 = vlaneseq
    %v933 = vshrl.u32 %v932, 7
    %v934 = vsub.s32 %v931, %v933
    %v935 = vrot.slane %v927, %v934
    %v937 = vunpack.c.l.s4 1934713408
    %v938 = vunpack.c.0.s8 %v937
    %v939 = vlaneseq
    %v940 = vshrl.u32 %v939, 7
    %v941 = vsub.s32 %v938, %v940
    %v942 = vrot.slane %v928, %v941
    %v943 = vcombine.high %v935, 0
    %v944 = vcombine.high %v942, 0
    %v947 = vpack.i.b16 %v935, %v910
    %v948 = vshrl.u32 %v910, 16
    %v949 = vshrl.u32 %v935, 16
    %v950 = vpack.i.b16 %v949, %v948
    %v953 = vpack.i.b16 %v943, %v918
    %v954 = vshrl.u32 %v918, 16
    %v955 = vshrl.u32 %v943, 16
    %v956 = vpack.i.b16 %v955, %v954
    %v959 = vpack.i.b16 %v942, %v917
    %v960 = vshrl.u32 %v917, 16
    %v961 = vshrl.u32 %v942, 16
    %v962 = vpack.i.b16 %v961, %v960
    %v965 = vpack.i.b16 %v944, %v919
    %v966 = vshrl.u32 %v919, 16
    %v967 = vshrl.u32 %v944, 16
    %v968 = vpack.i.b16 %v967, %v966
    %v970 = vsel %vm442, %v947, 0
    %v973 = vsel %vm442, %v846, 0
    %975 = vmatprep.subr.bf16.mxu0 0
    %976 = vmatpush1.bf16.xpose.msra.mxu0 0
    %977 = vmatprep.subr.bf16.mxu0 0
    %978 = vmatpush1.bf16.xpose.msra.mxu0 0
    %979 = vmatprep.subr.bf16.mxu0 0
    %980 = vmatpush1.bf16.xpose.msra.mxu0 0
    %981 = vmatprep.subr.bf16.mxu0 0
    %982 = vmatpush1.bf16.xpose.msra.mxu0 0
    %983 = vmatprep.subr.bf16.mxu0 0
    %984 = vmatpush1.bf16.xpose.msra.mxu0 0
    %985 = vmatprep.subr.bf16.mxu0 0
    %986 = vmatpush1.bf16.xpose.msra.mxu0 0
    %987 = vmatprep.subr.bf16.mxu0 0
    %988 = vmatpush1.bf16.xpose.msra.mxu0 0
    %989 = vmatprep.subr.bf16.mxu0 0
    %990 = vmatpush1.bf16.xpose.msra.mxu0 %v973
    %991 = vmatprep.subr.bf16.mxu0 0
    %992 = vmatpush2.bf16.xpose.msra.mxu0 0
    %993 = vmatprep.subr.bf16.mxu0 0
    %994 = vmatpush2.bf16.xpose.msra.mxu0 0
    %995 = vmatprep.subr.bf16.mxu0 0
    %996 = vmatpush2.bf16.xpose.msra.mxu0 0
    %997 = vmatprep.subr.bf16.mxu0 0
    %998 = vmatpush2.bf16.xpose.msra.mxu0 0
    %999 = vmatprep.subr.bf16.mxu0 0
    %1000 = vmatpush2.bf16.xpose.msra.mxu0 0
    %1001 = vmatprep.subr.bf16.mxu0 0
    %1002 = vmatpush2.bf16.xpose.msra.mxu0 0
    %1003 = vmatprep.subr.bf16.mxu0 0
    %1004 = vmatpush2.bf16.xpose.msra.mxu0 0
    %1005 = vmatprep.subr.bf16.mxu0 0
    %1006 = vmatpush2.bf16.xpose.msra.mxu0 0
    %1007 = vmatprep.mubr.bf16.mxu0 0
    %1008 = vmatmul.mubr.bf16.gmra.mxu0 %v970
    %v1009 = vpop.f32.mrf.mxu0
    %v1010 = vadd.f32 0.0, %v1009
    %v1011 = vpop.f32.mrf.mxu0
    %v1012 = vpop.f32.mrf.mxu0
    %v1013 = vpop.f32.mrf.mxu0
    %1014 = vdwg.mxu0
    %v1016 = vsel %vm442, %v950, 0
    %v1019 = vsel %vm442, %v849, 0
    %1021 = vmatprep.subr.bf16.mxu0 0
    %1022 = vmatpush1.bf16.xpose.msra.mxu0 0
    %1023 = vmatprep.subr.bf16.mxu0 0
    %1024 = vmatpush1.bf16.xpose.msra.mxu0 0
    %1025 = vmatprep.subr.bf16.mxu0 0
    %1026 = vmatpush1.bf16.xpose.msra.mxu0 0
    %1027 = vmatprep.subr.bf16.mxu0 0
    %1028 = vmatpush1.bf16.xpose.msra.mxu0 0
    %1029 = vmatprep.subr.bf16.mxu0 0
    %1030 = vmatpush1.bf16.xpose.msra.mxu0 0
    %1031 = vmatprep.subr.bf16.mxu0 0
    %1032 = vmatpush1.bf16.xpose.msra.mxu0 0
    %1033 = vmatprep.subr.bf16.mxu0 0
    %1034 = vmatpush1.bf16.xpose.msra.mxu0 0
    %1035 = vmatprep.subr.bf16.mxu0 0
    %1036 = vmatpush1.bf16.xpose.msra.mxu0 %v1019
    %1037 = vmatprep.subr.bf16.mxu0 0
    %1038 = vmatpush2.bf16.xpose.msra.mxu0 0
    %1039 = vmatprep.subr.bf16.mxu0 0
    %1040 = vmatpush2.bf16.xpose.msra.mxu0 0
    %1041 = vmatprep.subr.bf16.mxu0 0
    %1042 = vmatpush2.bf16.xpose.msra.mxu0 0
    %1043 = vmatprep.subr.bf16.mxu0 0
    %1044 = vmatpush2.bf16.xpose.msra.mxu0 0
    %1045 = vmatprep.subr.bf16.mxu0 0
    %1046 = vmatpush2.bf16.xpose.msra.mxu0 0
    %1047 = vmatprep.subr.bf16.mxu0 0
    %1048 = vmatpush2.bf16.xpose.msra.mxu0 0
    %1049 = vmatprep.subr.bf16.mxu0 0
    %1050 = vmatpush2.bf16.xpose.msra.mxu0 0
    %1051 = vmatprep.subr.bf16.mxu0 0
    %1052 = vmatpush2.bf16.xpose.msra.mxu0 0
    %1053 = vmatprep.mubr.bf16.mxu0 0
    %1054 = vmatmul.mubr.bf16.gmra.mxu0 %v1016
    %v1055 = vpop.f32.mrf.mxu0
    %v1056 = vadd.f32 0.0, %v1055
    %v1057 = vpop.f32.mrf.mxu0
    %v1058 = vpop.f32.mrf.mxu0
    %v1059 = vpop.f32.mrf.mxu0
    %1060 = vdwg.mxu0
    %v1062 = vsel %vm442, %v953, 0
    %v1065 = vsel %vm442, %v852, 0
    %1067 = vmatprep.subr.bf16.mxu0 0
    %1068 = vmatpush1.bf16.xpose.msra.mxu0 0
    %1069 = vmatprep.subr.bf16.mxu0 0
    %1070 = vmatpush1.bf16.xpose.msra.mxu0 0
    %1071 = vmatprep.subr.bf16.mxu0 0
    %1072 = vmatpush1.bf16.xpose.msra.mxu0 0
    %1073 = vmatprep.subr.bf16.mxu0 0
    %1074 = vmatpush1.bf16.xpose.msra.mxu0 0
    %1075 = vmatprep.subr.bf16.mxu0 0
    %1076 = vmatpush1.bf16.xpose.msra.mxu0 0
    %1077 = vmatprep.subr.bf16.mxu0 0
    %1078 = vmatpush1.bf16.xpose.msra.mxu0 0
    %1079 = vmatprep.subr.bf16.mxu0 0
    %1080 = vmatpush1.bf16.xpose.msra.mxu0 0
    %1081 = vmatprep.subr.bf16.mxu0 0
    %1082 = vmatpush1.bf16.xpose.msra.mxu0 %v1065
    %1083 = vmatprep.subr.bf16.mxu0 0
    %1084 = vmatpush2.bf16.xpose.msra.mxu0 0
    %1085 = vmatprep.subr.bf16.mxu0 0
    %1086 = vmatpush2.bf16.xpose.msra.mxu0 0
    %1087 = vmatprep.subr.bf16.mxu0 0
    %1088 = vmatpush2.bf16.xpose.msra.mxu0 0
    %1089 = vmatprep.subr.bf16.mxu0 0
    %1090 = vmatpush2.bf16.xpose.msra.mxu0 0
    %1091 = vmatprep.subr.bf16.mxu0 0
    %1092 = vmatpush2.bf16.xpose.msra.mxu0 0
    %1093 = vmatprep.subr.bf16.mxu0 0
    %1094 = vmatpush2.bf16.xpose.msra.mxu0 0
    %1095 = vmatprep.subr.bf16.mxu0 0
    %1096 = vmatpush2.bf16.xpose.msra.mxu0 0
    %1097 = vmatprep.subr.bf16.mxu0 0
    %1098 = vmatpush2.bf16.xpose.msra.mxu0 0
    %1099 = vmatprep.mubr.bf16.mxu0 0
    %1100 = vmatmul.mubr.bf16.gmra.mxu0 %v1062
    %v1101 = vpop.f32.mrf.mxu0
    %v1102 = vadd.f32 0.0, %v1101
    %v1103 = vpop.f32.mrf.mxu0
    %v1104 = vpop.f32.mrf.mxu0
    %v1105 = vpop.f32.mrf.mxu0
    %1106 = vdwg.mxu0
    %v1108 = vsel %vm442, %v956, 0
    %v1111 = vsel %vm442, %v855, 0
    %1113 = vmatprep.subr.bf16.mxu0 0
    %1114 = vmatpush1.bf16.xpose.msra.mxu0 0
    %1115 = vmatprep.subr.bf16.mxu0 0
    %1116 = vmatpush1.bf16.xpose.msra.mxu0 0
    %1117 = vmatprep.subr.bf16.mxu0 0
    %1118 = vmatpush1.bf16.xpose.msra.mxu0 0
    %1119 = vmatprep.subr.bf16.mxu0 0
    %1120 = vmatpush1.bf16.xpose.msra.mxu0 0
    %1121 = vmatprep.subr.bf16.mxu0 0
    %1122 = vmatpush1.bf16.xpose.msra.mxu0 0
    %1123 = vmatprep.subr.bf16.mxu0 0
    %1124 = vmatpush1.bf16.xpose.msra.mxu0 0
    %1125 = vmatprep.subr.bf16.mxu0 0
    %1126 = vmatpush1.bf16.xpose.msra.mxu0 0
    %1127 = vmatprep.subr.bf16.mxu0 0
    %1128 = vmatpush1.bf16.xpose.msra.mxu0 %v1111
    %1129 = vmatprep.subr.bf16.mxu0 0
    %1130 = vmatpush2.bf16.xpose.msra.mxu0 0
    %1131 = vmatprep.subr.bf16.mxu0 0
    %1132 = vmatpush2.bf16.xpose.msra.mxu0 0
    %1133 = vmatprep.subr.bf16.mxu0 0
    %1134 = vmatpush2.bf16.xpose.msra.mxu0 0
    %1135 = vmatprep.subr.bf16.mxu0 0
    %1136 = vmatpush2.bf16.xpose.msra.mxu0 0
    %1137 = vmatprep.subr.bf16.mxu0 0
    %1138 = vmatpush2.bf16.xpose.msra.mxu0 0
    %1139 = vmatprep.subr.bf16.mxu0 0
    %1140 = vmatpush2.bf16.xpose.msra.mxu0 0
    %1141 = vmatprep.subr.bf16.mxu0 0
    %1142 = vmatpush2.bf16.xpose.msra.mxu0 0
    %1143 = vmatprep.subr.bf16.mxu0 0
    %1144 = vmatpush2.bf16.xpose.msra.mxu0 0
    %1145 = vmatprep.mubr.bf16.mxu0 0
    %1146 = vmatmul.mubr.bf16.gmra.mxu0 %v1108
    %v1147 = vpop.f32.mrf.mxu0
    %v1148 = vadd.f32 0.0, %v1147
    %v1149 = vpop.f32.mrf.mxu0
    %v1150 = vpop.f32.mrf.mxu0
    %v1151 = vpop.f32.mrf.mxu0
    %1152 = vdwg.mxu0
    %v1154 = vsel %vm442, %v959, 0
    %v1157 = vsel %vm442, %v858, 0
    %1159 = vmatprep.subr.bf16.mxu0 0
    %1160 = vmatpush1.bf16.xpose.msra.mxu0 0
    %1161 = vmatprep.subr.bf16.mxu0 0
    %1162 = vmatpush1.bf16.xpose.msra.mxu0 0
    %1163 = vmatprep.subr.bf16.mxu0 0
    %1164 = vmatpush1.bf16.xpose.msra.mxu0 0
    %1165 = vmatprep.subr.bf16.mxu0 0
    %1166 = vmatpush1.bf16.xpose.msra.mxu0 0
    %1167 = vmatprep.subr.bf16.mxu0 0
    %1168 = vmatpush1.bf16.xpose.msra.mxu0 0
    %1169 = vmatprep.subr.bf16.mxu0 0
    %1170 = vmatpush1.bf16.xpose.msra.mxu0 0
    %1171 = vmatprep.subr.bf16.mxu0 0
    %1172 = vmatpush1.bf16.xpose.msra.mxu0 0
    %1173 = vmatprep.subr.bf16.mxu0 0
    %1174 = vmatpush1.bf16.xpose.msra.mxu0 %v1157
    %1175 = vmatprep.subr.bf16.mxu0 0
    %1176 = vmatpush2.bf16.xpose.msra.mxu0 0
    %1177 = vmatprep.subr.bf16.mxu0 0
    %1178 = vmatpush2.bf16.xpose.msra.mxu0 0
    %1179 = vmatprep.subr.bf16.mxu0 0
    %1180 = vmatpush2.bf16.xpose.msra.mxu0 0
    %1181 = vmatprep.subr.bf16.mxu0 0
    %1182 = vmatpush2.bf16.xpose.msra.mxu0 0
    %1183 = vmatprep.subr.bf16.mxu0 0
    %1184 = vmatpush2.bf16.xpose.msra.mxu0 0
    %1185 = vmatprep.subr.bf16.mxu0 0
    %1186 = vmatpush2.bf16.xpose.msra.mxu0 0
    %1187 = vmatprep.subr.bf16.mxu0 0
    %1188 = vmatpush2.bf16.xpose.msra.mxu0 0
    %1189 = vmatprep.subr.bf16.mxu0 0
    %1190 = vmatpush2.bf16.xpose.msra.mxu0 0
    %1191 = vmatprep.mubr.bf16.mxu0 0
    %1192 = vmatmul.mubr.bf16.gmra.mxu0 %v1154
    %v1193 = vpop.f32.mrf.mxu0
    %v1194 = vadd.f32 0.0, %v1193
    %v1195 = vpop.f32.mrf.mxu0
    %v1196 = vpop.f32.mrf.mxu0
    %v1197 = vpop.f32.mrf.mxu0
    %1198 = vdwg.mxu0
    %v1200 = vsel %vm442, %v962, 0
    %v1203 = vsel %vm442, %v861, 0
    %1205 = vmatprep.subr.bf16.mxu0 0
    %1206 = vmatpush1.bf16.xpose.msra.mxu0 0
    %1207 = vmatprep.subr.bf16.mxu0 0
    %1208 = vmatpush1.bf16.xpose.msra.mxu0 0
    %1209 = vmatprep.subr.bf16.mxu0 0
    %1210 = vmatpush1.bf16.xpose.msra.mxu0 0
    %1211 = vmatprep.subr.bf16.mxu0 0
    %1212 = vmatpush1.bf16.xpose.msra.mxu0 0
    %1213 = vmatprep.subr.bf16.mxu0 0
    %1214 = vmatpush1.bf16.xpose.msra.mxu0 0
    %1215 = vmatprep.subr.bf16.mxu0 0
    %1216 = vmatpush1.bf16.xpose.msra.mxu0 0
    %1217 = vmatprep.subr.bf16.mxu0 0
    %1218 = vmatpush1.bf16.xpose.msra.mxu0 0
    %1219 = vmatprep.subr.bf16.mxu0 0
    %1220 = vmatpush1.bf16.xpose.msra.mxu0 %v1203
    %1221 = vmatprep.subr.bf16.mxu0 0
    %1222 = vmatpush2.bf16.xpose.msra.mxu0 0
    %1223 = vmatprep.subr.bf16.mxu0 0
    %1224 = vmatpush2.bf16.xpose.msra.mxu0 0
    %1225 = vmatprep.subr.bf16.mxu0 0
    %1226 = vmatpush2.bf16.xpose.msra.mxu0 0
    %1227 = vmatprep.subr.bf16.mxu0 0
    %1228 = vmatpush2.bf16.xpose.msra.mxu0 0
    %1229 = vmatprep.subr.bf16.mxu0 0
    %1230 = vmatpush2.bf16.xpose.msra.mxu0 0
    %1231 = vmatprep.subr.bf16.mxu0 0
    %1232 = vmatpush2.bf16.xpose.msra.mxu0 0
    %1233 = vmatprep.subr.bf16.mxu0 0
    %1234 = vmatpush2.bf16.xpose.msra.mxu0 0
    %1235 = vmatprep.subr.bf16.mxu0 0
    %1236 = vmatpush2.bf16.xpose.msra.mxu0 0
    %1237 = vmatprep.mubr.bf16.mxu0 0
    %1238 = vmatmul.mubr.bf16.gmra.mxu0 %v1200
    %v1239 = vpop.f32.mrf.mxu0
    %v1240 = vadd.f32 0.0, %v1239
    %v1241 = vpop.f32.mrf.mxu0
    %v1242 = vpop.f32.mrf.mxu0
    %v1243 = vpop.f32.mrf.mxu0
    %1244 = vdwg.mxu0
    %v1246 = vsel %vm442, %v965, 0
    %v1249 = vsel %vm442, %v864, 0
    %1251 = vmatprep.subr.bf16.mxu0 0
    %1252 = vmatpush1.bf16.xpose.msra.mxu0 0
    %1253 = vmatprep.subr.bf16.mxu0 0
    %1254 = vmatpush1.bf16.xpose.msra.mxu0 0
    %1255 = vmatprep.subr.bf16.mxu0 0
    %1256 = vmatpush1.bf16.xpose.msra.mxu0 0
    %1257 = vmatprep.subr.bf16.mxu0 0
    %1258 = vmatpush1.bf16.xpose.msra.mxu0 0
    %1259 = vmatprep.subr.bf16.mxu0 0
    %1260 = vmatpush1.bf16.xpose.msra.mxu0 0
    %1261 = vmatprep.subr.bf16.mxu0 0
    %1262 = vmatpush1.bf16.xpose.msra.mxu0 0
    %1263 = vmatprep.subr.bf16.mxu0 0
    %1264 = vmatpush1.bf16.xpose.msra.mxu0 0
    %1265 = vmatprep.subr.bf16.mxu0 0
    %1266 = vmatpush1.bf16.xpose.msra.mxu0 %v1249
    %1267 = vmatprep.subr.bf16.mxu0 0
    %1268 = vmatpush2.bf16.xpose.msra.mxu0 0
    %1269 = vmatprep.subr.bf16.mxu0 0
    %1270 = vmatpush2.bf16.xpose.msra.mxu0 0
    %1271 = vmatprep.subr.bf16.mxu0 0
    %1272 = vmatpush2.bf16.xpose.msra.mxu0 0
    %1273 = vmatprep.subr.bf16.mxu0 0
    %1274 = vmatpush2.bf16.xpose.msra.mxu0 0
    %1275 = vmatprep.subr.bf16.mxu0 0
    %1276 = vmatpush2.bf16.xpose.msra.mxu0 0
    %1277 = vmatprep.subr.bf16.mxu0 0
    %1278 = vmatpush2.bf16.xpose.msra.mxu0 0
    %1279 = vmatprep.subr.bf16.mxu0 0
    %1280 = vmatpush2.bf16.xpose.msra.mxu0 0
    %1281 = vmatprep.subr.bf16.mxu0 0
    %1282 = vmatpush2.bf16.xpose.msra.mxu0 0
    %1283 = vmatprep.mubr.bf16.mxu0 0
    %1284 = vmatmul.mubr.bf16.gmra.mxu0 %v1246
    %v1285 = vpop.f32.mrf.mxu0
    %v1286 = vadd.f32 0.0, %v1285
    %v1287 = vpop.f32.mrf.mxu0
    %v1288 = vpop.f32.mrf.mxu0
    %v1289 = vpop.f32.mrf.mxu0
    %1290 = vdwg.mxu0
    %v1292 = vsel %vm442, %v968, 0
    %v1295 = vsel %vm442, %v867, 0
    %1297 = vmatprep.subr.bf16.mxu0 0
    %1298 = vmatpush1.bf16.xpose.msra.mxu0 0
    %1299 = vmatprep.subr.bf16.mxu0 0
    %1300 = vmatpush1.bf16.xpose.msra.mxu0 0
    %1301 = vmatprep.subr.bf16.mxu0 0
    %1302 = vmatpush1.bf16.xpose.msra.mxu0 0
    %1303 = vmatprep.subr.bf16.mxu0 0
    %1304 = vmatpush1.bf16.xpose.msra.mxu0 0
    %1305 = vmatprep.subr.bf16.mxu0 0
    %1306 = vmatpush1.bf16.xpose.msra.mxu0 0
    %1307 = vmatprep.subr.bf16.mxu0 0
    %1308 = vmatpush1.bf16.xpose.msra.mxu0 0
    %1309 = vmatprep.subr.bf16.mxu0 0
    %1310 = vmatpush1.bf16.xpose.msra.mxu0 0
    %1311 = vmatprep.subr.bf16.mxu0 0
    %1312 = vmatpush1.bf16.xpose.msra.mxu0 %v1295
    %1313 = vmatprep.subr.bf16.mxu0 0
    %1314 = vmatpush2.bf16.xpose.msra.mxu0 0
    %1315 = vmatprep.subr.bf16.mxu0 0
    %1316 = vmatpush2.bf16.xpose.msra.mxu0 0
    %1317 = vmatprep.subr.bf16.mxu0 0
    %1318 = vmatpush2.bf16.xpose.msra.mxu0 0
    %1319 = vmatprep.subr.bf16.mxu0 0
    %1320 = vmatpush2.bf16.xpose.msra.mxu0 0
    %1321 = vmatprep.subr.bf16.mxu0 0
    %1322 = vmatpush2.bf16.xpose.msra.mxu0 0
    %1323 = vmatprep.subr.bf16.mxu0 0
    %1324 = vmatpush2.bf16.xpose.msra.mxu0 0
    %1325 = vmatprep.subr.bf16.mxu0 0
    %1326 = vmatpush2.bf16.xpose.msra.mxu0 0
    %1327 = vmatprep.subr.bf16.mxu0 0
    %1328 = vmatpush2.bf16.xpose.msra.mxu0 0
    %1329 = vmatprep.mubr.bf16.mxu0 0
    %1330 = vmatmul.mubr.bf16.gmra.mxu0 %v1292
    %v1331 = vpop.f32.mrf.mxu0
    %v1332 = vadd.f32 0.0, %v1331
    %v1333 = vpop.f32.mrf.mxu0
    %v1334 = vpop.f32.mrf.mxu0
    %v1335 = vpop.f32.mrf.mxu0
    %1336 = vdwg.mxu0
    %v1345 = vrot.slane %v1056, 7
    %vm1346 = vcmask 1041409
    %v1347 = vsel %vm1346, %v1345, %v1010
    %v1348 = vrot.slane %v1102, 6
    %vm1349 = vcmask 1042434
    %v1350 = vsel %vm1349, %v1348, %v1347
    %v1351 = vrot.slane %v1148, 5
    %vm1352 = vcmask 1043459
    %v1353 = vsel %vm1352, %v1351, %v1350
    %v1354 = vrot.slane %v1194, 4
    %vm1355 = vcmask 1044484
    %v1356 = vsel %vm1355, %v1354, %v1353
    %v1357 = vrot.slane %v1240, 3
    %vm1358 = vcmask 1045509
    %v1359 = vsel %vm1358, %v1357, %v1356
    %v1360 = vrot.slane %v1286, 2
    %vm1361 = vcmask 1046534
    %v1362 = vsel %vm1361, %v1360, %v1359
    %v1363 = vrot.slane %v1332, 1
    %vm1364 = vcmask 1047559
    %v1365 = vsel %vm1364, %v1363, %v1362
    %v1368 = vsel %vm442, %v407, 0
    %v1371 = vsel %vm442, %v408, 0
    %1373 = vmatprep.subr.bf16.mxu0 0
    %1374 = vmatpush1.bf16.xpose.msra.mxu0 0
    %1375 = vmatprep.subr.bf16.mxu0 0
    %1376 = vmatpush1.bf16.xpose.msra.mxu0 0
    %1377 = vmatprep.subr.bf16.mxu0 0
    %1378 = vmatpush1.bf16.xpose.msra.mxu0 0
    %1379 = vmatprep.subr.bf16.mxu0 0
    %1380 = vmatpush1.bf16.xpose.msra.mxu0 0
    %1381 = vmatprep.subr.bf16.mxu0 0
    %1382 = vmatpush1.bf16.xpose.msra.mxu0 0
    %1383 = vmatprep.subr.bf16.mxu0 0
    %1384 = vmatpush1.bf16.xpose.msra.mxu0 0
    %1385 = vmatprep.subr.bf16.mxu0 0
    %1386 = vmatpush1.bf16.xpose.msra.mxu0 0
    %1387 = vmatprep.subr.bf16.mxu0 0
    %1388 = vmatpush1.bf16.xpose.msra.mxu0 %v1371
    %1389 = vmatprep.subr.bf16.mxu0 0
    %1390 = vmatpush2.bf16.xpose.msra.mxu0 0
    %1391 = vmatprep.subr.bf16.mxu0 0
    %1392 = vmatpush2.bf16.xpose.msra.mxu0 0
    %1393 = vmatprep.subr.bf16.mxu0 0
    %1394 = vmatpush2.bf16.xpose.msra.mxu0 0
    %1395 = vmatprep.subr.bf16.mxu0 0
    %1396 = vmatpush2.bf16.xpose.msra.mxu0 0
    %1397 = vmatprep.subr.bf16.mxu0 0
    %1398 = vmatpush2.bf16.xpose.msra.mxu0 0
    %1399 = vmatprep.subr.bf16.mxu0 0
    %1400 = vmatpush2.bf16.xpose.msra.mxu0 0
    %1401 = vmatprep.subr.bf16.mxu0 0
    %1402 = vmatpush2.bf16.xpose.msra.mxu0 0
    %1403 = vmatprep.subr.bf16.mxu0 0
    %1404 = vmatpush2.bf16.xpose.msra.mxu0 0
    %1405 = vmatprep.mubr.bf16.mxu0 0
    %1406 = vmatmul.mubr.bf16.gmra.mxu0 %v1368
    %v1407 = vpop.f32.mrf.mxu0
    %v1408 = vadd.f32 %v1365, %v1407
    %v1409 = vpop.f32.mrf.mxu0
    %v1410 = vpop.f32.mrf.mxu0
    %v1411 = vpop.f32.mrf.mxu0
    %1412 = vdwg.mxu0
    %v1413 = vadd.f32 %v1408, %v892
    %vm1414 = vcmask 64512
    %v1415 = vsel %vm1414, %v1413, -inf
    %1416 = vmax.xlane.f32.xlu0 %v1415
    %v1417 = vpop.xlane.xlu0 %1416
    %v1418 = vsub.f32 %v1413, %v1417
    %v1419 = vmul.f32 %v1418, 1.442695
    %v1420 = vpow.pop %v1419
    %v1421 = vsel %vm1414, %v1420, 0.0
    %1422 = vadd.xlane.f32.xlu0 %v1421
    %v1423 = vpop.xlane.xlu0 %1422
    %v1424 = vrcp.pop %v1423
    %v1425 = vmul.f32 %v1420, %v1424
    %v1426 = vpack.c.bf16 %v1425, %v1425
    %v1428 = vsel %vm1414, %v1426, 0
    %vm1430 = vcmask 1043456
    %v1432 = vsel %vm1430, %v409, 0
    %1434 = vmatprep.subr.bf16.mxu0 0
    %1435 = vmatpush1.bf16.msra.mxu0 0
    %1436 = vmatprep.subr.bf16.mxu0 0
    %1437 = vmatpush1.bf16.msra.mxu0 0
    %1438 = vmatprep.subr.bf16.mxu0 0
    %1439 = vmatpush1.bf16.msra.mxu0 0
    %1440 = vmatprep.subr.bf16.mxu0 0
    %1441 = vmatpush1.bf16.msra.mxu0 0
    %1442 = vmatprep.subr.bf16.mxu0 0
    %1443 = vmatpush1.bf16.msra.mxu0 0
    %1444 = vmatprep.subr.bf16.mxu0 0
    %1445 = vmatpush1.bf16.msra.mxu0 0
    %1446 = vmatprep.subr.bf16.mxu0 0
    %1447 = vmatpush1.bf16.msra.mxu0 0
    %1448 = vmatprep.subr.bf16.mxu0 0
    %1449 = vmatpush1.bf16.msra.mxu0 %v1432
    %1450 = vmatprep.subr.bf16.mxu0 0
    %1451 = vmatpush2.bf16.msra.mxu0 0
    %1452 = vmatprep.subr.bf16.mxu0 0
    %1453 = vmatpush2.bf16.msra.mxu0 0
    %1454 = vmatprep.subr.bf16.mxu0 0
    %1455 = vmatpush2.bf16.msra.mxu0 0
    %1456 = vmatprep.subr.bf16.mxu0 0
    %1457 = vmatpush2.bf16.msra.mxu0 0
    %1458 = vmatprep.subr.bf16.mxu0 0
    %1459 = vmatpush2.bf16.msra.mxu0 0
    %1460 = vmatprep.subr.bf16.mxu0 0
    %1461 = vmatpush2.bf16.msra.mxu0 0
    %1462 = vmatprep.subr.bf16.mxu0 0
    %1463 = vmatpush2.bf16.msra.mxu0 0
    %1464 = vmatprep.subr.bf16.mxu0 0
    %1465 = vmatpush2.bf16.msra.mxu0 0
    %1466 = vmatprep.mubr.bf16.mxu0 0
    %1467 = vmatmul.mubr.bf16.gmra.mxu0 %v1428
    %v1468 = vpop.f32.mrf.mxu0
    %v1469 = vadd.f32 0.0, %v1468
    %v1470 = vpop.f32.mrf.mxu0
    %v1471 = vpop.f32.mrf.mxu0
    %v1472 = vpop.f32.mrf.mxu0
    %1473 = vdwg.mxu0
    %1475 = vrot.lane.b32.xlu0 %v408, 64
    %v1476 = vpop.permute.xlu0 %1475
    %v1477 = vrot.slane %v1010, 1
    %v1478 = vsel %vm1346, %v1056, %v1477
    %v1479 = vrot.slane %v1102, 7
    %v1480 = vsel %vm1349, %v1479, %v1478
    %v1481 = vrot.slane %v1148, 6
    %v1482 = vsel %vm1352, %v1481, %v1480
    %v1483 = vrot.slane %v1194, 5
    %v1484 = vsel %vm1355, %v1483, %v1482
    %v1485 = vrot.slane %v1240, 4
    %v1486 = vsel %vm1358, %v1485, %v1484
    %v1487 = vrot.slane %v1286, 3
    %v1488 = vsel %vm1361, %v1487, %v1486
    %v1489 = vrot.slane %v1332, 2
    %v1490 = vsel %vm1364, %v1489, %v1488
    %v1493 = vsel %vm442, %v895, 0
    %v1496 = vsel %vm442, %v1476, 0
    %1498 = vmatprep.subr.bf16.mxu0 0
    %1499 = vmatpush1.bf16.xpose.msra.mxu0 0
    %1500 = vmatprep.subr.bf16.mxu0 0
    %1501 = vmatpush1.bf16.xpose.msra.mxu0 0
    %1502 = vmatprep.subr.bf16.mxu0 0
    %1503 = vmatpush1.bf16.xpose.msra.mxu0 0
    %1504 = vmatprep.subr.bf16.mxu0 0
    %1505 = vmatpush1.bf16.xpose.msra.mxu0 0
    %1506 = vmatprep.subr.bf16.mxu0 0
    %1507 = vmatpush1.bf16.xpose.msra.mxu0 0
    %1508 = vmatprep.subr.bf16.mxu0 0
    %1509 = vmatpush1.bf16.xpose.msra.mxu0 0
    %1510 = vmatprep.subr.bf16.mxu0 0
    %1511 = vmatpush1.bf16.xpose.msra.mxu0 0
    %1512 = vmatprep.subr.bf16.mxu0 0
    %1513 = vmatpush1.bf16.xpose.msra.mxu0 %v1496
    %1514 = vmatprep.subr.bf16.mxu0 0
    %1515 = vmatpush2.bf16.xpose.msra.mxu0 0
    %1516 = vmatprep.subr.bf16.mxu0 0
    %1517 = vmatpush2.bf16.xpose.msra.mxu0 0
    %1518 = vmatprep.subr.bf16.mxu0 0
    %1519 = vmatpush2.bf16.xpose.msra.mxu0 0
    %1520 = vmatprep.subr.bf16.mxu0 0
    %1521 = vmatpush2.bf16.xpose.msra.mxu0 0
    %1522 = vmatprep.subr.bf16.mxu0 0
    %1523 = vmatpush2.bf16.xpose.msra.mxu0 0
    %1524 = vmatprep.subr.bf16.mxu0 0
    %1525 = vmatpush2.bf16.xpose.msra.mxu0 0
    %1526 = vmatprep.subr.bf16.mxu0 0
    %1527 = vmatpush2.bf16.xpose.msra.mxu0 0
    %1528 = vmatprep.subr.bf16.mxu0 0
    %1529 = vmatpush2.bf16.xpose.msra.mxu0 0
    %1530 = vmatprep.mubr.bf16.mxu0 0
    %1531 = vmatmul.mubr.bf16.gmra.mxu0 %v1493
    %v1532 = vpop.f32.mrf.mxu0
    %v1533 = vadd.f32 %v1490, %v1532
    %v1534 = vpop.f32.mrf.mxu0
    %v1535 = vpop.f32.mrf.mxu0
    %v1536 = vpop.f32.mrf.mxu0
    %1537 = vdwg.mxu0
    %v1538 = vadd.f32 %v1533, %v892
    %v1539 = vsel %vm1414, %v1538, -inf
    %1540 = vmax.xlane.f32.xlu0 %v1539
    %v1541 = vpop.xlane.xlu0 %1540
    %v1542 = vsub.f32 %v1538, %v1541
    %v1543 = vmul.f32 %v1542, 1.442695
    %v1544 = vpow.pop %v1543
    %v1545 = vsel %vm1414, %v1544, 0.0
    %1546 = vadd.xlane.f32.xlu0 %v1545
    %v1547 = vpop.xlane.xlu0 %1546
    %v1548 = vrcp.pop %v1547
    %v1549 = vmul.f32 %v1544, %v1548
    %v1550 = vpack.c.bf16 %v1549, %v1549
    %1552 = vrot.lane.b32.xlu0 %v409, 64
    %v1553 = vpop.permute.xlu0 %1552
    %v1555 = vsel %vm1414, %v1550, 0
    %v1558 = vsel %vm1430, %v1553, 0
    %1560 = vmatprep.subr.bf16.mxu0 0
    %1561 = vmatpush1.bf16.msra.mxu0 0
    %1562 = vmatprep.subr.bf16.mxu0 0
    %1563 = vmatpush1.bf16.msra.mxu0 0
    %1564 = vmatprep.subr.bf16.mxu0 0
    %1565 = vmatpush1.bf16.msra.mxu0 0
    %1566 = vmatprep.subr.bf16.mxu0 0
    %1567 = vmatpush1.bf16.msra.mxu0 0
    %1568 = vmatprep.subr.bf16.mxu0 0
    %1569 = vmatpush1.bf16.msra.mxu0 0
    %1570 = vmatprep.subr.bf16.mxu0 0
    %1571 = vmatpush1.bf16.msra.mxu0 0
    %1572 = vmatprep.subr.bf16.mxu0 0
    %1573 = vmatpush1.bf16.msra.mxu0 0
    %1574 = vmatprep.subr.bf16.mxu0 0
    %1575 = vmatpush1.bf16.msra.mxu0 %v1558
    %1576 = vmatprep.subr.bf16.mxu0 0
    %1577 = vmatpush2.bf16.msra.mxu0 0
    %1578 = vmatprep.subr.bf16.mxu0 0
    %1579 = vmatpush2.bf16.msra.mxu0 0
    %1580 = vmatprep.subr.bf16.mxu0 0
    %1581 = vmatpush2.bf16.msra.mxu0 0
    %1582 = vmatprep.subr.bf16.mxu0 0
    %1583 = vmatpush2.bf16.msra.mxu0 0
    %1584 = vmatprep.subr.bf16.mxu0 0
    %1585 = vmatpush2.bf16.msra.mxu0 0
    %1586 = vmatprep.subr.bf16.mxu0 0
    %1587 = vmatpush2.bf16.msra.mxu0 0
    %1588 = vmatprep.subr.bf16.mxu0 0
    %1589 = vmatpush2.bf16.msra.mxu0 0
    %1590 = vmatprep.subr.bf16.mxu0 0
    %1591 = vmatpush2.bf16.msra.mxu0 0
    %1592 = vmatprep.mubr.bf16.mxu0 0
    %1593 = vmatmul.mubr.bf16.gmra.mxu0 %v1555
    %v1594 = vpop.f32.mrf.mxu0
    %v1595 = vadd.f32 0.0, %v1594
    %v1596 = vpop.f32.mrf.mxu0
    %v1597 = vpop.f32.mrf.mxu0
    %v1598 = vpop.f32.mrf.mxu0
    %1599 = vdwg.mxu0
    %v1602 = vunpack.c.l.s4 1966171168
    %v1603 = vunpack.c.0.s8 %v1602
    %v1604 = vlaneseq
    %v1605 = vshrl.u32 %v1604, 7
    %v1606 = vsub.s32 %v1603, %v1605
    %v1607 = vrot.slane %v1426, %v1606
    %v1608 = vcombine.high %v1607, %v1607
    %v1610 = vunpack.c.l.s4 1966171168
    %v1611 = vunpack.c.0.s8 %v1610
    %v1612 = vlaneseq
    %v1613 = vshrl.u32 %v1612, 7
    %v1614 = vsub.s32 %v1611, %v1613
    %v1615 = vrot.slane %v1607, %v1614
    %v1617 = vunpack.c.l.s4 1966171168
    %v1618 = vunpack.c.0.s8 %v1617
    %v1619 = vlaneseq
    %v1620 = vshrl.u32 %v1619, 7
    %v1621 = vsub.s32 %v1618, %v1620
    %v1622 = vrot.slane %v1608, %v1621
    %v1623 = vcombine.high %v1615, %v1615
    %v1624 = vcombine.high %v1622, %v1622
    %v1625 = vunpack.i.l.s16 %v1615
    %v1626 = vunpack.i.h.s16 %v1615
    %v1627 = vunpack.i.l.s16 %v1622
    %v1628 = vunpack.i.h.s16 %v1622
    %v1629 = vunpack.i.l.s16 %v1623
    %v1630 = vunpack.i.h.s16 %v1623
    %v1631 = vunpack.i.l.s16 %v1624
    %v1632 = vunpack.i.h.s16 %v1624
    %v1635 = vunpack.c.l.s4 1966171168
    %v1636 = vunpack.c.0.s8 %v1635
    %v1637 = vlaneseq
    %v1638 = vshrl.u32 %v1637, 7
    %v1639 = vsub.s32 %v1636, %v1638
    %v1640 = vrot.slane %v1550, %v1639
    %v1641 = vcombine.high %v1640, %v1640
    %v1643 = vunpack.c.l.s4 1966171168
    %v1644 = vunpack.c.0.s8 %v1643
    %v1645 = vlaneseq
    %v1646 = vshrl.u32 %v1645, 7
    %v1647 = vsub.s32 %v1644, %v1646
    %v1648 = vrot.slane %v1640, %v1647
    %v1650 = vunpack.c.l.s4 1966171168
    %v1651 = vunpack.c.0.s8 %v1650
    %v1652 = vlaneseq
    %v1653 = vshrl.u32 %v1652, 7
    %v1654 = vsub.s32 %v1651, %v1653
    %v1655 = vrot.slane %v1641, %v1654
    %v1656 = vcombine.high %v1648, %v1648
    %v1657 = vcombine.high %v1655, %v1655
    %v1658 = vunpack.i.l.s16 %v1648
    %v1659 = vunpack.i.h.s16 %v1648
    %v1660 = vunpack.i.l.s16 %v1655
    %v1661 = vunpack.i.h.s16 %v1655
    %v1662 = vunpack.i.l.s16 %v1656
    %v1663 = vunpack.i.h.s16 %v1656
    %v1664 = vunpack.i.l.s16 %v1657
    %v1665 = vunpack.i.h.s16 %v1657
    %v1666 = vpack.i.b16 %v1625, %v1625
    %v1667 = vpack.i.b16 %v1626, %v1626
    %v1668 = vpack.i.b16 %v1627, %v1627
    %v1669 = vpack.i.b16 %v1628, %v1628
    %v1670 = vpack.i.b16 %v1629, %v1629
    %v1671 = vpack.i.b16 %v1630, %v1630
    %v1672 = vpack.i.b16 %v1631, %v1631
    %v1673 = vpack.i.b16 %v1632, %v1632
    %v1674 = vlaneseq
    %v1675 = vshrl.u32 %v1674, 7
    %v1676 = vsub.s32 0, %v1675
    %v1677 = vrot.slane %v1666, %v1676
    %v1678 = vlaneseq
    %v1679 = vshrl.u32 %v1678, 7
    %v1680 = vsub.s32 0, %v1679
    %v1681 = vrot.slane %v1667, %v1680
    %v1682 = vlaneseq
    %v1683 = vshrl.u32 %v1682, 7
    %v1684 = vsub.s32 0, %v1683
    %v1685 = vrot.slane %v1668, %v1684
    %v1686 = vlaneseq
    %v1687 = vshrl.u32 %v1686, 7
    %v1688 = vsub.s32 0, %v1687
    %v1689 = vrot.slane %v1669, %v1688
    %v1690 = vlaneseq
    %v1691 = vshrl.u32 %v1690, 7
    %v1692 = vsub.s32 0, %v1691
    %v1693 = vrot.slane %v1670, %v1692
    %v1694 = vlaneseq
    %v1695 = vshrl.u32 %v1694, 7
    %v1696 = vsub.s32 0, %v1695
    %v1697 = vrot.slane %v1671, %v1696
    %v1698 = vlaneseq
    %v1699 = vshrl.u32 %v1698, 7
    %v1700 = vsub.s32 0, %v1699
    %v1701 = vrot.slane %v1672, %v1700
    %v1702 = vlaneseq
    %v1703 = vshrl.u32 %v1702, 7
    %v1704 = vsub.s32 0, %v1703
    %v1705 = vrot.slane %v1673, %v1704
    %v1714 = vpack.i.b16 %v1658, %v1658
    %v1715 = vpack.i.b16 %v1659, %v1659
    %v1716 = vpack.i.b16 %v1660, %v1660
    %v1717 = vpack.i.b16 %v1661, %v1661
    %v1718 = vpack.i.b16 %v1662, %v1662
    %v1719 = vpack.i.b16 %v1663, %v1663
    %v1720 = vpack.i.b16 %v1664, %v1664
    %v1721 = vpack.i.b16 %v1665, %v1665
    %v1722 = vlaneseq
    %v1723 = vshrl.u32 %v1722, 7
    %v1724 = vsub.s32 0, %v1723
    %v1725 = vrot.slane %v1714, %v1724
    %v1726 = vlaneseq
    %v1727 = vshrl.u32 %v1726, 7
    %v1728 = vsub.s32 0, %v1727
    %v1729 = vrot.slane %v1715, %v1728
    %v1730 = vlaneseq
    %v1731 = vshrl.u32 %v1730, 7
    %v1732 = vsub.s32 0, %v1731
    %v1733 = vrot.slane %v1716, %v1732
    %v1734 = vlaneseq
    %v1735 = vshrl.u32 %v1734, 7
    %v1736 = vsub.s32 0, %v1735
    %v1737 = vrot.slane %v1717, %v1736
    %v1738 = vlaneseq
    %v1739 = vshrl.u32 %v1738, 7
    %v1740 = vsub.s32 0, %v1739
    %v1741 = vrot.slane %v1718, %v1740
    %v1742 = vlaneseq
    %v1743 = vshrl.u32 %v1742, 7
    %v1744 = vsub.s32 0, %v1743
    %v1745 = vrot.slane %v1719, %v1744
    %v1746 = vlaneseq
    %v1747 = vshrl.u32 %v1746, 7
    %v1748 = vsub.s32 0, %v1747
    %v1749 = vrot.slane %v1720, %v1748
    %v1750 = vlaneseq
    %v1751 = vshrl.u32 %v1750, 7
    %v1752 = vsub.s32 0, %v1751
    %v1753 = vrot.slane %v1721, %v1752
    %vm1762 = vcmask 1040384
    %vm1763 = vsmask.f32 256
    %vm1764 = vmand %vm1762, %vm1763
    %v1765 = vsel %vm1764, %v1677, %v1725
    %v1766 = vsel %vm1764, %v1681, %v1729
    %v1767 = vsel %vm1764, %v1685, %v1733
    %v1768 = vsel %vm1764, %v1689, %v1737
    %v1769 = vsel %vm1764, %v1693, %v1741
    %v1770 = vsel %vm1764, %v1697, %v1745
    %v1771 = vsel %vm1764, %v1701, %v1749
    %v1772 = vsel %vm1764, %v1705, %v1753
    %v1774 = vsel %vm1414, %v1765, 0
    %v1776 = vsel %vm1430, %v846, 0
    %1778 = vmatprep.subr.bf16.mxu0 0
    %1779 = vmatpush1.bf16.msra.mxu0 0
    %1780 = vmatprep.subr.bf16.mxu0 0
    %1781 = vmatpush1.bf16.msra.mxu0 0
    %1782 = vmatprep.subr.bf16.mxu0 0
    %1783 = vmatpush1.bf16.msra.mxu0 0
    %1784 = vmatprep.subr.bf16.mxu0 0
    %1785 = vmatpush1.bf16.msra.mxu0 0
    %1786 = vmatprep.subr.bf16.mxu0 0
    %1787 = vmatpush1.bf16.msra.mxu0 0
    %1788 = vmatprep.subr.bf16.mxu0 0
    %1789 = vmatpush1.bf16.msra.mxu0 0
    %1790 = vmatprep.subr.bf16.mxu0 0
    %1791 = vmatpush1.bf16.msra.mxu0 0
    %1792 = vmatprep.subr.bf16.mxu0 0
    %1793 = vmatpush1.bf16.msra.mxu0 %v1776
    %1794 = vmatprep.subr.bf16.mxu0 0
    %1795 = vmatpush2.bf16.msra.mxu0 0
    %1796 = vmatprep.subr.bf16.mxu0 0
    %1797 = vmatpush2.bf16.msra.mxu0 0
    %1798 = vmatprep.subr.bf16.mxu0 0
    %1799 = vmatpush2.bf16.msra.mxu0 0
    %1800 = vmatprep.subr.bf16.mxu0 0
    %1801 = vmatpush2.bf16.msra.mxu0 0
    %1802 = vmatprep.subr.bf16.mxu0 0
    %1803 = vmatpush2.bf16.msra.mxu0 0
    %1804 = vmatprep.subr.bf16.mxu0 0
    %1805 = vmatpush2.bf16.msra.mxu0 0
    %1806 = vmatprep.subr.bf16.mxu0 0
    %1807 = vmatpush2.bf16.msra.mxu0 0
    %1808 = vmatprep.subr.bf16.mxu0 0
    %1809 = vmatpush2.bf16.msra.mxu0 0
    %1810 = vmatprep.mubr.bf16.mxu0 0
    %1811 = vmatmul.mubr.bf16.gmra.mxu0 %v1774
    %v1812 = vpop.f32.mrf.mxu0
    %v1813 = vadd.f32 0.0, %v1812
    %v1814 = vpop.f32.mrf.mxu0
    %v1815 = vpop.f32.mrf.mxu0
    %v1816 = vpop.f32.mrf.mxu0
    %1817 = vdwg.mxu0
    %v1819 = vsel %vm1414, %v1766, 0
    %v1821 = vsel %vm1430, %v849, 0
    %1823 = vmatprep.subr.bf16.mxu0 0
    %1824 = vmatpush1.bf16.msra.mxu0 0
    %1825 = vmatprep.subr.bf16.mxu0 0
    %1826 = vmatpush1.bf16.msra.mxu0 0
    %1827 = vmatprep.subr.bf16.mxu0 0
    %1828 = vmatpush1.bf16.msra.mxu0 0
    %1829 = vmatprep.subr.bf16.mxu0 0
    %1830 = vmatpush1.bf16.msra.mxu0 0
    %1831 = vmatprep.subr.bf16.mxu0 0
    %1832 = vmatpush1.bf16.msra.mxu0 0
    %1833 = vmatprep.subr.bf16.mxu0 0
    %1834 = vmatpush1.bf16.msra.mxu0 0
    %1835 = vmatprep.subr.bf16.mxu0 0
    %1836 = vmatpush1.bf16.msra.mxu0 0
    %1837 = vmatprep.subr.bf16.mxu0 0
    %1838 = vmatpush1.bf16.msra.mxu0 %v1821
    %1839 = vmatprep.subr.bf16.mxu0 0
    %1840 = vmatpush2.bf16.msra.mxu0 0
    %1841 = vmatprep.subr.bf16.mxu0 0
    %1842 = vmatpush2.bf16.msra.mxu0 0
    %1843 = vmatprep.subr.bf16.mxu0 0
    %1844 = vmatpush2.bf16.msra.mxu0 0
    %1845 = vmatprep.subr.bf16.mxu0 0
    %1846 = vmatpush2.bf16.msra.mxu0 0
    %1847 = vmatprep.subr.bf16.mxu0 0
    %1848 = vmatpush2.bf16.msra.mxu0 0
    %1849 = vmatprep.subr.bf16.mxu0 0
    %1850 = vmatpush2.bf16.msra.mxu0 0
    %1851 = vmatprep.subr.bf16.mxu0 0
    %1852 = vmatpush2.bf16.msra.mxu0 0
    %1853 = vmatprep.subr.bf16.mxu0 0
    %1854 = vmatpush2.bf16.msra.mxu0 0
    %1855 = vmatprep.mubr.bf16.mxu0 0
    %1856 = vmatmul.mubr.bf16.gmra.mxu0 %v1819
    %v1857 = vpop.f32.mrf.mxu0
    %v1858 = vadd.f32 0.0, %v1857
    %v1859 = vpop.f32.mrf.mxu0
    %v1860 = vpop.f32.mrf.mxu0
    %v1861 = vpop.f32.mrf.mxu0
    %1862 = vdwg.mxu0
    %v1864 = vsel %vm1414, %v1767, 0
    %v1866 = vsel %vm1430, %v852, 0
    %1868 = vmatprep.subr.bf16.mxu0 0
    %1869 = vmatpush1.bf16.msra.mxu0 0
    %1870 = vmatprep.subr.bf16.mxu0 0
    %1871 = vmatpush1.bf16.msra.mxu0 0
    %1872 = vmatprep.subr.bf16.mxu0 0
    %1873 = vmatpush1.bf16.msra.mxu0 0
    %1874 = vmatprep.subr.bf16.mxu0 0
    %1875 = vmatpush1.bf16.msra.mxu0 0
    %1876 = vmatprep.subr.bf16.mxu0 0
    %1877 = vmatpush1.bf16.msra.mxu0 0
    %1878 = vmatprep.subr.bf16.mxu0 0
    %1879 = vmatpush1.bf16.msra.mxu0 0
    %1880 = vmatprep.subr.bf16.mxu0 0
    %1881 = vmatpush1.bf16.msra.mxu0 0
    %1882 = vmatprep.subr.bf16.mxu0 0
    %1883 = vmatpush1.bf16.msra.mxu0 %v1866
    %1884 = vmatprep.subr.bf16.mxu0 0
    %1885 = vmatpush2.bf16.msra.mxu0 0
    %1886 = vmatprep.subr.bf16.mxu0 0
    %1887 = vmatpush2.bf16.msra.mxu0 0
    %1888 = vmatprep.subr.bf16.mxu0 0
    %1889 = vmatpush2.bf16.msra.mxu0 0
    %1890 = vmatprep.subr.bf16.mxu0 0
    %1891 = vmatpush2.bf16.msra.mxu0 0
    %1892 = vmatprep.subr.bf16.mxu0 0
    %1893 = vmatpush2.bf16.msra.mxu0 0
    %1894 = vmatprep.subr.bf16.mxu0 0
    %1895 = vmatpush2.bf16.msra.mxu0 0
    %1896 = vmatprep.subr.bf16.mxu0 0
    %1897 = vmatpush2.bf16.msra.mxu0 0
    %1898 = vmatprep.subr.bf16.mxu0 0
    %1899 = vmatpush2.bf16.msra.mxu0 0
    %1900 = vmatprep.mubr.bf16.mxu0 0
    %1901 = vmatmul.mubr.bf16.gmra.mxu0 %v1864
    %v1902 = vpop.f32.mrf.mxu0
    %v1903 = vadd.f32 0.0, %v1902
    %v1904 = vpop.f32.mrf.mxu0
    %v1905 = vpop.f32.mrf.mxu0
    %v1906 = vpop.f32.mrf.mxu0
    %1907 = vdwg.mxu0
    %v1909 = vsel %vm1414, %v1768, 0
    %v1911 = vsel %vm1430, %v855, 0
    %1913 = vmatprep.subr.bf16.mxu0 0
    %1914 = vmatpush1.bf16.msra.mxu0 0
    %1915 = vmatprep.subr.bf16.mxu0 0
    %1916 = vmatpush1.bf16.msra.mxu0 0
    %1917 = vmatprep.subr.bf16.mxu0 0
    %1918 = vmatpush1.bf16.msra.mxu0 0
    %1919 = vmatprep.subr.bf16.mxu0 0
    %1920 = vmatpush1.bf16.msra.mxu0 0
    %1921 = vmatprep.subr.bf16.mxu0 0
    %1922 = vmatpush1.bf16.msra.mxu0 0
    %1923 = vmatprep.subr.bf16.mxu0 0
    %1924 = vmatpush1.bf16.msra.mxu0 0
    %1925 = vmatprep.subr.bf16.mxu0 0
    %1926 = vmatpush1.bf16.msra.mxu0 0
    %1927 = vmatprep.subr.bf16.mxu0 0
    %1928 = vmatpush1.bf16.msra.mxu0 %v1911
    %1929 = vmatprep.subr.bf16.mxu0 0
    %1930 = vmatpush2.bf16.msra.mxu0 0
    %1931 = vmatprep.subr.bf16.mxu0 0
    %1932 = vmatpush2.bf16.msra.mxu0 0
    %1933 = vmatprep.subr.bf16.mxu0 0
    %1934 = vmatpush2.bf16.msra.mxu0 0
    %1935 = vmatprep.subr.bf16.mxu0 0
    %1936 = vmatpush2.bf16.msra.mxu0 0
    %1937 = vmatprep.subr.bf16.mxu0 0
    %1938 = vmatpush2.bf16.msra.mxu0 0
    %1939 = vmatprep.subr.bf16.mxu0 0
    %1940 = vmatpush2.bf16.msra.mxu0 0
    %1941 = vmatprep.subr.bf16.mxu0 0
    %1942 = vmatpush2.bf16.msra.mxu0 0
    %1943 = vmatprep.subr.bf16.mxu0 0
    %1944 = vmatpush2.bf16.msra.mxu0 0
    %1945 = vmatprep.mubr.bf16.mxu0 0
    %1946 = vmatmul.mubr.bf16.gmra.mxu0 %v1909
    %v1947 = vpop.f32.mrf.mxu0
    %v1948 = vadd.f32 0.0, %v1947
    %v1949 = vpop.f32.mrf.mxu0
    %v1950 = vpop.f32.mrf.mxu0
    %v1951 = vpop.f32.mrf.mxu0
    %1952 = vdwg.mxu0
    %v1954 = vsel %vm1414, %v1769, 0
    %v1956 = vsel %vm1430, %v858, 0
    %1958 = vmatprep.subr.bf16.mxu0 0
    %1959 = vmatpush1.bf16.msra.mxu0 0
    %1960 = vmatprep.subr.bf16.mxu0 0
    %1961 = vmatpush1.bf16.msra.mxu0 0
    %1962 = vmatprep.subr.bf16.mxu0 0
    %1963 = vmatpush1.bf16.msra.mxu0 0
    %1964 = vmatprep.subr.bf16.mxu0 0
    %1965 = vmatpush1.bf16.msra.mxu0 0
    %1966 = vmatprep.subr.bf16.mxu0 0
    %1967 = vmatpush1.bf16.msra.mxu0 0
    %1968 = vmatprep.subr.bf16.mxu0 0
    %1969 = vmatpush1.bf16.msra.mxu0 0
    %1970 = vmatprep.subr.bf16.mxu0 0
    %1971 = vmatpush1.bf16.msra.mxu0 0
    %1972 = vmatprep.subr.bf16.mxu0 0
    %1973 = vmatpush1.bf16.msra.mxu0 %v1956
    %1974 = vmatprep.subr.bf16.mxu0 0
    %1975 = vmatpush2.bf16.msra.mxu0 0
    %1976 = vmatprep.subr.bf16.mxu0 0
    %1977 = vmatpush2.bf16.msra.mxu0 0
    %1978 = vmatprep.subr.bf16.mxu0 0
    %1979 = vmatpush2.bf16.msra.mxu0 0
    %1980 = vmatprep.subr.bf16.mxu0 0
    %1981 = vmatpush2.bf16.msra.mxu0 0
    %1982 = vmatprep.subr.bf16.mxu0 0
    %1983 = vmatpush2.bf16.msra.mxu0 0
    %1984 = vmatprep.subr.bf16.mxu0 0
    %1985 = vmatpush2.bf16.msra.mxu0 0
    %1986 = vmatprep.subr.bf16.mxu0 0
    %1987 = vmatpush2.bf16.msra.mxu0 0
    %1988 = vmatprep.subr.bf16.mxu0 0
    %1989 = vmatpush2.bf16.msra.mxu0 0
    %1990 = vmatprep.mubr.bf16.mxu0 0
    %1991 = vmatmul.mubr.bf16.gmra.mxu0 %v1954
    %v1992 = vpop.f32.mrf.mxu0
    %v1993 = vadd.f32 0.0, %v1992
    %v1994 = vpop.f32.mrf.mxu0
    %v1995 = vpop.f32.mrf.mxu0
    %v1996 = vpop.f32.mrf.mxu0
    %1997 = vdwg.mxu0
    %v1999 = vsel %vm1414, %v1770, 0
    %v2001 = vsel %vm1430, %v861, 0
    %2003 = vmatprep.subr.bf16.mxu0 0
    %2004 = vmatpush1.bf16.msra.mxu0 0
    %2005 = vmatprep.subr.bf16.mxu0 0
    %2006 = vmatpush1.bf16.msra.mxu0 0
    %2007 = vmatprep.subr.bf16.mxu0 0
    %2008 = vmatpush1.bf16.msra.mxu0 0
    %2009 = vmatprep.subr.bf16.mxu0 0
    %2010 = vmatpush1.bf16.msra.mxu0 0
    %2011 = vmatprep.subr.bf16.mxu0 0
    %2012 = vmatpush1.bf16.msra.mxu0 0
    %2013 = vmatprep.subr.bf16.mxu0 0
    %2014 = vmatpush1.bf16.msra.mxu0 0
    %2015 = vmatprep.subr.bf16.mxu0 0
    %2016 = vmatpush1.bf16.msra.mxu0 0
    %2017 = vmatprep.subr.bf16.mxu0 0
    %2018 = vmatpush1.bf16.msra.mxu0 %v2001
    %2019 = vmatprep.subr.bf16.mxu0 0
    %2020 = vmatpush2.bf16.msra.mxu0 0
    %2021 = vmatprep.subr.bf16.mxu0 0
    %2022 = vmatpush2.bf16.msra.mxu0 0
    %2023 = vmatprep.subr.bf16.mxu0 0
    %2024 = vmatpush2.bf16.msra.mxu0 0
    %2025 = vmatprep.subr.bf16.mxu0 0
    %2026 = vmatpush2.bf16.msra.mxu0 0
    %2027 = vmatprep.subr.bf16.mxu0 0
    %2028 = vmatpush2.bf16.msra.mxu0 0
    %2029 = vmatprep.subr.bf16.mxu0 0
    %2030 = vmatpush2.bf16.msra.mxu0 0
    %2031 = vmatprep.subr.bf16.mxu0 0
    %2032 = vmatpush2.bf16.msra.mxu0 0
    %2033 = vmatprep.subr.bf16.mxu0 0
    %2034 = vmatpush2.bf16.msra.mxu0 0
    %2035 = vmatprep.mubr.bf16.mxu0 0
    %2036 = vmatmul.mubr.bf16.gmra.mxu0 %v1999
    %v2037 = vpop.f32.mrf.mxu0
    %v2038 = vadd.f32 0.0, %v2037
    %v2039 = vpop.f32.mrf.mxu0
    %v2040 = vpop.f32.mrf.mxu0
    %v2041 = vpop.f32.mrf.mxu0
    %2042 = vdwg.mxu0
    %v2044 = vsel %vm1414, %v1771, 0
    %v2046 = vsel %vm1430, %v864, 0
    %2048 = vmatprep.subr.bf16.mxu0 0
    %2049 = vmatpush1.bf16.msra.mxu0 0
    %2050 = vmatprep.subr.bf16.mxu0 0
    %2051 = vmatpush1.bf16.msra.mxu0 0
    %2052 = vmatprep.subr.bf16.mxu0 0
    %2053 = vmatpush1.bf16.msra.mxu0 0
    %2054 = vmatprep.subr.bf16.mxu0 0
    %2055 = vmatpush1.bf16.msra.mxu0 0
    %2056 = vmatprep.subr.bf16.mxu0 0
    %2057 = vmatpush1.bf16.msra.mxu0 0
    %2058 = vmatprep.subr.bf16.mxu0 0
    %2059 = vmatpush1.bf16.msra.mxu0 0
    %2060 = vmatprep.subr.bf16.mxu0 0
    %2061 = vmatpush1.bf16.msra.mxu0 0
    %2062 = vmatprep.subr.bf16.mxu0 0
    %2063 = vmatpush1.bf16.msra.mxu0 %v2046
    %2064 = vmatprep.subr.bf16.mxu0 0
    %2065 = vmatpush2.bf16.msra.mxu0 0
    %2066 = vmatprep.subr.bf16.mxu0 0
    %2067 = vmatpush2.bf16.msra.mxu0 0
    %2068 = vmatprep.subr.bf16.mxu0 0
    %2069 = vmatpush2.bf16.msra.mxu0 0
    %2070 = vmatprep.subr.bf16.mxu0 0
    %2071 = vmatpush2.bf16.msra.mxu0 0
    %2072 = vmatprep.subr.bf16.mxu0 0
    %2073 = vmatpush2.bf16.msra.mxu0 0
    %2074 = vmatprep.subr.bf16.mxu0 0
    %2075 = vmatpush2.bf16.msra.mxu0 0
    %2076 = vmatprep.subr.bf16.mxu0 0
    %2077 = vmatpush2.bf16.msra.mxu0 0
    %2078 = vmatprep.subr.bf16.mxu0 0
    %2079 = vmatpush2.bf16.msra.mxu0 0
    %2080 = vmatprep.mubr.bf16.mxu0 0
    %2081 = vmatmul.mubr.bf16.gmra.mxu0 %v2044
    %v2082 = vpop.f32.mrf.mxu0
    %v2083 = vadd.f32 0.0, %v2082
    %v2084 = vpop.f32.mrf.mxu0
    %v2085 = vpop.f32.mrf.mxu0
    %v2086 = vpop.f32.mrf.mxu0
    %2087 = vdwg.mxu0
    %v2089 = vsel %vm1414, %v1772, 0
    %v2091 = vsel %vm1430, %v867, 0
    %2093 = vmatprep.subr.bf16.mxu0 0
    %2094 = vmatpush1.bf16.msra.mxu0 0
    %2095 = vmatprep.subr.bf16.mxu0 0
    %2096 = vmatpush1.bf16.msra.mxu0 0
    %2097 = vmatprep.subr.bf16.mxu0 0
    %2098 = vmatpush1.bf16.msra.mxu0 0
    %2099 = vmatprep.subr.bf16.mxu0 0
    %2100 = vmatpush1.bf16.msra.mxu0 0
    %2101 = vmatprep.subr.bf16.mxu0 0
    %2102 = vmatpush1.bf16.msra.mxu0 0
    %2103 = vmatprep.subr.bf16.mxu0 0
    %2104 = vmatpush1.bf16.msra.mxu0 0
    %2105 = vmatprep.subr.bf16.mxu0 0
    %2106 = vmatpush1.bf16.msra.mxu0 0
    %2107 = vmatprep.subr.bf16.mxu0 0
    %2108 = vmatpush1.bf16.msra.mxu0 %v2091
    %2109 = vmatprep.subr.bf16.mxu0 0
    %2110 = vmatpush2.bf16.msra.mxu0 0
    %2111 = vmatprep.subr.bf16.mxu0 0
    %2112 = vmatpush2.bf16.msra.mxu0 0
    %2113 = vmatprep.subr.bf16.mxu0 0
    %2114 = vmatpush2.bf16.msra.mxu0 0
    %2115 = vmatprep.subr.bf16.mxu0 0
    %2116 = vmatpush2.bf16.msra.mxu0 0
    %2117 = vmatprep.subr.bf16.mxu0 0
    %2118 = vmatpush2.bf16.msra.mxu0 0
    %2119 = vmatprep.subr.bf16.mxu0 0
    %2120 = vmatpush2.bf16.msra.mxu0 0
    %2121 = vmatprep.subr.bf16.mxu0 0
    %2122 = vmatpush2.bf16.msra.mxu0 0
    %2123 = vmatprep.subr.bf16.mxu0 0
    %2124 = vmatpush2.bf16.msra.mxu0 0
    %2125 = vmatprep.mubr.bf16.mxu0 0
    %2126 = vmatmul.mubr.bf16.gmra.mxu0 %v2089
    %v2127 = vpop.f32.mrf.mxu0
    %v2128 = vadd.f32 0.0, %v2127
    %v2129 = vpop.f32.mrf.mxu0
    %v2130 = vpop.f32.mrf.mxu0
    %v2131 = vpop.f32.mrf.mxu0
    %2132 = vdwg.mxu0
    %2134 = vrot.lane.b32.xlu0 %v1595, 64
    %v2135 = vpop.permute.xlu0 %2134
    %v2137 = vsel %vm442, %v1469, %v2135
    %v2138 = vcombine.low %v1813, %v1903
    %v2140 = vunpack.c.l.s4 1983009808
    %v2141 = vunpack.c.0.s8 %v2140
    %v2142 = vlaneseq
    %v2143 = vshrl.u32 %v2142, 7
    %v2144 = vsub.s32 %v2141, %v2143
    %v2145 = vrot.slane %v2138, %v2144
    %v2146 = vcombine.low %v1858, %v1948
    %v2148 = vunpack.c.l.s4 1983009808
    %v2149 = vunpack.c.0.s8 %v2148
    %v2150 = vlaneseq
    %v2151 = vshrl.u32 %v2150, 7
    %v2152 = vsub.s32 %v2149, %v2151
    %v2153 = vrot.slane %v2146, %v2152
    %v2154 = vcombine.low %v1993, %v2083
    %v2156 = vunpack.c.l.s4 1983009808
    %v2157 = vunpack.c.0.s8 %v2156
    %v2158 = vlaneseq
    %v2159 = vshrl.u32 %v2158, 7
    %v2160 = vsub.s32 %v2157, %v2159
    %v2161 = vrot.slane %v2154, %v2160
    %v2162 = vcombine.low %v2038, %v2128
    %v2164 = vunpack.c.l.s4 1983009808
    %v2165 = vunpack.c.0.s8 %v2164
    %v2166 = vlaneseq
    %v2167 = vshrl.u32 %v2166, 7
    %v2168 = vsub.s32 %v2165, %v2167
    %v2169 = vrot.slane %v2162, %v2168
    %v2170 = vcombine.low %v2145, %v2153
    %v2172 = vunpack.c.l.s4 1934713408
    %v2173 = vunpack.c.0.s8 %v2172
    %v2174 = vlaneseq
    %v2175 = vshrl.u32 %v2174, 7
    %v2176 = vsub.s32 %v2173, %v2175
    %v2177 = vrot.slane %v2170, %v2176
    %v2178 = vcombine.low %v2161, %v2169
    %v2180 = vunpack.c.l.s4 1934713408
    %v2181 = vunpack.c.0.s8 %v2180
    %v2182 = vlaneseq
    %v2183 = vshrl.u32 %v2182, 7
    %v2184 = vsub.s32 %v2181, %v2183
    %v2185 = vrot.slane %v2178, %v2184
    %v2186 = vcombine.low %v2177, %v2185
    %v2187 = vcombine.high %v2177, %v2185
    %2189 = vrot.lane.b32.xlu0 %v2187, 64
    %v2190 = vpop.permute.xlu0 %2189
    %v2192 = vsel %vm442, %v2186, %v2190
    %v2193 = vadd.f32 %v2137, %v2192
    %s2194 = scalar_lea.vmem [#allocation7], 8
    %v2195 = vld [vmem:[%s2194] sm:$0xff]
    %v2196 = vrot.slane %v407, 4
    %v2197 = vrot.slane %v895, 4
    %v2200 = vunpack.c.l.s4 1983009808
    %v2201 = vunpack.c.0.s8 %v2200
    %v2202 = vlaneseq
    %v2203 = vshrl.u32 %v2202, 7
    %v2204 = vsub.s32 %v2201, %v2203
    %v2205 = vrot.slane %v2196, %v2204
    %v2206 = vcombine.high %v2205, 0
    %v2208 = vunpack.c.l.s4 1934713408
    %v2209 = vunpack.c.0.s8 %v2208
    %v2210 = vlaneseq
    %v2211 = vshrl.u32 %v2210, 7
    %v2212 = vsub.s32 %v2209, %v2211
    %v2213 = vrot.slane %v2205, %v2212
    %v2215 = vunpack.c.l.s4 1934713408
    %v2216 = vunpack.c.0.s8 %v2215
    %v2217 = vlaneseq
    %v2218 = vshrl.u32 %v2217, 7
    %v2219 = vsub.s32 %v2216, %v2218
    %v2220 = vrot.slane %v2206, %v2219
    %v2221 = vcombine.high %v2213, 0
    %v2222 = vcombine.high %v2220, 0
    %v2225 = vunpack.c.l.s4 1983009808
    %v2226 = vunpack.c.0.s8 %v2225
    %v2227 = vlaneseq
    %v2228 = vshrl.u32 %v2227, 7
    %v2229 = vsub.s32 %v2226, %v2228
    %v2230 = vrot.slane %v2197, %v2229
    %v2231 = vcombine.high %v2230, 0
    %v2233 = vunpack.c.l.s4 1934713408
    %v2234 = vunpack.c.0.s8 %v2233
    %v2235 = vlaneseq
    %v2236 = vshrl.u32 %v2235, 7
    %v2237 = vsub.s32 %v2234, %v2236
    %v2238 = vrot.slane %v2230, %v2237
    %v2240 = vunpack.c.l.s4 1934713408
    %v2241 = vunpack.c.0.s8 %v2240
    %v2242 = vlaneseq
    %v2243 = vshrl.u32 %v2242, 7
    %v2244 = vsub.s32 %v2241, %v2243
    %v2245 = vrot.slane %v2231, %v2244
    %v2246 = vcombine.high %v2238, 0
    %v2247 = vcombine.high %v2245, 0
    %v2250 = vpack.i.b16 %v2238, %v2213
    %v2251 = vshrl.u32 %v2213, 16
    %v2252 = vshrl.u32 %v2238, 16
    %v2253 = vpack.i.b16 %v2252, %v2251
    %v2256 = vpack.i.b16 %v2246, %v2221
    %v2257 = vshrl.u32 %v2221, 16
    %v2258 = vshrl.u32 %v2246, 16
    %v2259 = vpack.i.b16 %v2258, %v2257
    %v2262 = vpack.i.b16 %v2245, %v2220
    %v2263 = vshrl.u32 %v2220, 16
    %v2264 = vshrl.u32 %v2245, 16
    %v2265 = vpack.i.b16 %v2264, %v2263
    %v2268 = vpack.i.b16 %v2247, %v2222
    %v2269 = vshrl.u32 %v2222, 16
    %v2270 = vshrl.u32 %v2247, 16
    %v2271 = vpack.i.b16 %v2270, %v2269
    %v2273 = vsel %vm442, %v2250, 0
    %v2276 = vsel %vm442, %v870, 0
    %2278 = vmatprep.subr.bf16.mxu0 0
    %2279 = vmatpush1.bf16.xpose.msra.mxu0 0
    %2280 = vmatprep.subr.bf16.mxu0 0
    %2281 = vmatpush1.bf16.xpose.msra.mxu0 0
    %2282 = vmatprep.subr.bf16.mxu0 0
    %2283 = vmatpush1.bf16.xpose.msra.mxu0 0
    %2284 = vmatprep.subr.bf16.mxu0 0
    %2285 = vmatpush1.bf16.xpose.msra.mxu0 0
    %2286 = vmatprep.subr.bf16.mxu0 0
    %2287 = vmatpush1.bf16.xpose.msra.mxu0 0
    %2288 = vmatprep.subr.bf16.mxu0 0
    %2289 = vmatpush1.bf16.xpose.msra.mxu0 0
    %2290 = vmatprep.subr.bf16.mxu0 0
    %2291 = vmatpush1.bf16.xpose.msra.mxu0 0
    %2292 = vmatprep.subr.bf16.mxu0 0
    %2293 = vmatpush1.bf16.xpose.msra.mxu0 %v2276
    %2294 = vmatprep.subr.bf16.mxu0 0
    %2295 = vmatpush2.bf16.xpose.msra.mxu0 0
    %2296 = vmatprep.subr.bf16.mxu0 0
    %2297 = vmatpush2.bf16.xpose.msra.mxu0 0
    %2298 = vmatprep.subr.bf16.mxu0 0
    %2299 = vmatpush2.bf16.xpose.msra.mxu0 0
    %2300 = vmatprep.subr.bf16.mxu0 0
    %2301 = vmatpush2.bf16.xpose.msra.mxu0 0
    %2302 = vmatprep.subr.bf16.mxu0 0
    %2303 = vmatpush2.bf16.xpose.msra.mxu0 0
    %2304 = vmatprep.subr.bf16.mxu0 0
    %2305 = vmatpush2.bf16.xpose.msra.mxu0 0
    %2306 = vmatprep.subr.bf16.mxu0 0
    %2307 = vmatpush2.bf16.xpose.msra.mxu0 0
    %2308 = vmatprep.subr.bf16.mxu0 0
    %2309 = vmatpush2.bf16.xpose.msra.mxu0 0
    %2310 = vmatprep.mubr.bf16.mxu0 0
    %2311 = vmatmul.mubr.bf16.gmra.mxu0 %v2273
    %v2312 = vpop.f32.mrf.mxu0
    %v2313 = vadd.f32 0.0, %v2312
    %v2314 = vpop.f32.mrf.mxu0
    %v2315 = vpop.f32.mrf.mxu0
    %v2316 = vpop.f32.mrf.mxu0
    %2317 = vdwg.mxu0
    %v2319 = vsel %vm442, %v2253, 0
    %v2322 = vsel %vm442, %v873, 0
    %2324 = vmatprep.subr.bf16.mxu0 0
    %2325 = vmatpush1.bf16.xpose.msra.mxu0 0
    %2326 = vmatprep.subr.bf16.mxu0 0
    %2327 = vmatpush1.bf16.xpose.msra.mxu0 0
    %2328 = vmatprep.subr.bf16.mxu0 0
    %2329 = vmatpush1.bf16.xpose.msra.mxu0 0
    %2330 = vmatprep.subr.bf16.mxu0 0
    %2331 = vmatpush1.bf16.xpose.msra.mxu0 0
    %2332 = vmatprep.subr.bf16.mxu0 0
    %2333 = vmatpush1.bf16.xpose.msra.mxu0 0
    %2334 = vmatprep.subr.bf16.mxu0 0
    %2335 = vmatpush1.bf16.xpose.msra.mxu0 0
    %2336 = vmatprep.subr.bf16.mxu0 0
    %2337 = vmatpush1.bf16.xpose.msra.mxu0 0
    %2338 = vmatprep.subr.bf16.mxu0 0
    %2339 = vmatpush1.bf16.xpose.msra.mxu0 %v2322
    %2340 = vmatprep.subr.bf16.mxu0 0
    %2341 = vmatpush2.bf16.xpose.msra.mxu0 0
    %2342 = vmatprep.subr.bf16.mxu0 0
    %2343 = vmatpush2.bf16.xpose.msra.mxu0 0
    %2344 = vmatprep.subr.bf16.mxu0 0
    %2345 = vmatpush2.bf16.xpose.msra.mxu0 0
    %2346 = vmatprep.subr.bf16.mxu0 0
    %2347 = vmatpush2.bf16.xpose.msra.mxu0 0
    %2348 = vmatprep.subr.bf16.mxu0 0
    %2349 = vmatpush2.bf16.xpose.msra.mxu0 0
    %2350 = vmatprep.subr.bf16.mxu0 0
    %2351 = vmatpush2.bf16.xpose.msra.mxu0 0
    %2352 = vmatprep.subr.bf16.mxu0 0
    %2353 = vmatpush2.bf16.xpose.msra.mxu0 0
    %2354 = vmatprep.subr.bf16.mxu0 0
    %2355 = vmatpush2.bf16.xpose.msra.mxu0 0
    %2356 = vmatprep.mubr.bf16.mxu0 0
    %2357 = vmatmul.mubr.bf16.gmra.mxu0 %v2319
    %v2358 = vpop.f32.mrf.mxu0
    %v2359 = vadd.f32 0.0, %v2358
    %v2360 = vpop.f32.mrf.mxu0
    %v2361 = vpop.f32.mrf.mxu0
    %v2362 = vpop.f32.mrf.mxu0
    %2363 = vdwg.mxu0
    %v2365 = vsel %vm442, %v2256, 0
    %v2368 = vsel %vm442, %v876, 0
    %2370 = vmatprep.subr.bf16.mxu0 0
    %2371 = vmatpush1.bf16.xpose.msra.mxu0 0
    %2372 = vmatprep.subr.bf16.mxu0 0
    %2373 = vmatpush1.bf16.xpose.msra.mxu0 0
    %2374 = vmatprep.subr.bf16.mxu0 0
    %2375 = vmatpush1.bf16.xpose.msra.mxu0 0
    %2376 = vmatprep.subr.bf16.mxu0 0
    %2377 = vmatpush1.bf16.xpose.msra.mxu0 0
    %2378 = vmatprep.subr.bf16.mxu0 0
    %2379 = vmatpush1.bf16.xpose.msra.mxu0 0
    %2380 = vmatprep.subr.bf16.mxu0 0
    %2381 = vmatpush1.bf16.xpose.msra.mxu0 0
    %2382 = vmatprep.subr.bf16.mxu0 0
    %2383 = vmatpush1.bf16.xpose.msra.mxu0 0
    %2384 = vmatprep.subr.bf16.mxu0 0
    %2385 = vmatpush1.bf16.xpose.msra.mxu0 %v2368
    %2386 = vmatprep.subr.bf16.mxu0 0
    %2387 = vmatpush2.bf16.xpose.msra.mxu0 0
    %2388 = vmatprep.subr.bf16.mxu0 0
    %2389 = vmatpush2.bf16.xpose.msra.mxu0 0
    %2390 = vmatprep.subr.bf16.mxu0 0
    %2391 = vmatpush2.bf16.xpose.msra.mxu0 0
    %2392 = vmatprep.subr.bf16.mxu0 0
    %2393 = vmatpush2.bf16.xpose.msra.mxu0 0
    %2394 = vmatprep.subr.bf16.mxu0 0
    %2395 = vmatpush2.bf16.xpose.msra.mxu0 0
    %2396 = vmatprep.subr.bf16.mxu0 0
    %2397 = vmatpush2.bf16.xpose.msra.mxu0 0
    %2398 = vmatprep.subr.bf16.mxu0 0
    %2399 = vmatpush2.bf16.xpose.msra.mxu0 0
    %2400 = vmatprep.subr.bf16.mxu0 0
    %2401 = vmatpush2.bf16.xpose.msra.mxu0 0
    %2402 = vmatprep.mubr.bf16.mxu0 0
    %2403 = vmatmul.mubr.bf16.gmra.mxu0 %v2365
    %v2404 = vpop.f32.mrf.mxu0
    %v2405 = vadd.f32 0.0, %v2404
    %v2406 = vpop.f32.mrf.mxu0
    %v2407 = vpop.f32.mrf.mxu0
    %v2408 = vpop.f32.mrf.mxu0
    %2409 = vdwg.mxu0
    %v2411 = vsel %vm442, %v2259, 0
    %v2414 = vsel %vm442, %v879, 0
    %2416 = vmatprep.subr.bf16.mxu0 0
    %2417 = vmatpush1.bf16.xpose.msra.mxu0 0
    %2418 = vmatprep.subr.bf16.mxu0 0
    %2419 = vmatpush1.bf16.xpose.msra.mxu0 0
    %2420 = vmatprep.subr.bf16.mxu0 0
    %2421 = vmatpush1.bf16.xpose.msra.mxu0 0
    %2422 = vmatprep.subr.bf16.mxu0 0
    %2423 = vmatpush1.bf16.xpose.msra.mxu0 0
    %2424 = vmatprep.subr.bf16.mxu0 0
    %2425 = vmatpush1.bf16.xpose.msra.mxu0 0
    %2426 = vmatprep.subr.bf16.mxu0 0
    %2427 = vmatpush1.bf16.xpose.msra.mxu0 0
    %2428 = vmatprep.subr.bf16.mxu0 0
    %2429 = vmatpush1.bf16.xpose.msra.mxu0 0
    %2430 = vmatprep.subr.bf16.mxu0 0
    %2431 = vmatpush1.bf16.xpose.msra.mxu0 %v2414
    %2432 = vmatprep.subr.bf16.mxu0 0
    %2433 = vmatpush2.bf16.xpose.msra.mxu0 0
    %2434 = vmatprep.subr.bf16.mxu0 0
    %2435 = vmatpush2.bf16.xpose.msra.mxu0 0
    %2436 = vmatprep.subr.bf16.mxu0 0
    %2437 = vmatpush2.bf16.xpose.msra.mxu0 0
    %2438 = vmatprep.subr.bf16.mxu0 0
    %2439 = vmatpush2.bf16.xpose.msra.mxu0 0
    %2440 = vmatprep.subr.bf16.mxu0 0
    %2441 = vmatpush2.bf16.xpose.msra.mxu0 0
    %2442 = vmatprep.subr.bf16.mxu0 0
    %2443 = vmatpush2.bf16.xpose.msra.mxu0 0
    %2444 = vmatprep.subr.bf16.mxu0 0
    %2445 = vmatpush2.bf16.xpose.msra.mxu0 0
    %2446 = vmatprep.subr.bf16.mxu0 0
    %2447 = vmatpush2.bf16.xpose.msra.mxu0 0
    %2448 = vmatprep.mubr.bf16.mxu0 0
    %2449 = vmatmul.mubr.bf16.gmra.mxu0 %v2411
    %v2450 = vpop.f32.mrf.mxu0
    %v2451 = vadd.f32 0.0, %v2450
    %v2452 = vpop.f32.mrf.mxu0
    %v2453 = vpop.f32.mrf.mxu0
    %v2454 = vpop.f32.mrf.mxu0
    %2455 = vdwg.mxu0
    %v2457 = vsel %vm442, %v2262, 0
    %v2460 = vsel %vm442, %v882, 0
    %2462 = vmatprep.subr.bf16.mxu0 0
    %2463 = vmatpush1.bf16.xpose.msra.mxu0 0
    %2464 = vmatprep.subr.bf16.mxu0 0
    %2465 = vmatpush1.bf16.xpose.msra.mxu0 0
    %2466 = vmatprep.subr.bf16.mxu0 0
    %2467 = vmatpush1.bf16.xpose.msra.mxu0 0
    %2468 = vmatprep.subr.bf16.mxu0 0
    %2469 = vmatpush1.bf16.xpose.msra.mxu0 0
    %2470 = vmatprep.subr.bf16.mxu0 0
    %2471 = vmatpush1.bf16.xpose.msra.mxu0 0
    %2472 = vmatprep.subr.bf16.mxu0 0
    %2473 = vmatpush1.bf16.xpose.msra.mxu0 0
    %2474 = vmatprep.subr.bf16.mxu0 0
    %2475 = vmatpush1.bf16.xpose.msra.mxu0 0
    %2476 = vmatprep.subr.bf16.mxu0 0
    %2477 = vmatpush1.bf16.xpose.msra.mxu0 %v2460
    %2478 = vmatprep.subr.bf16.mxu0 0
    %2479 = vmatpush2.bf16.xpose.msra.mxu0 0
    %2480 = vmatprep.subr.bf16.mxu0 0
    %2481 = vmatpush2.bf16.xpose.msra.mxu0 0
    %2482 = vmatprep.subr.bf16.mxu0 0
    %2483 = vmatpush2.bf16.xpose.msra.mxu0 0
    %2484 = vmatprep.subr.bf16.mxu0 0
    %2485 = vmatpush2.bf16.xpose.msra.mxu0 0
    %2486 = vmatprep.subr.bf16.mxu0 0
    %2487 = vmatpush2.bf16.xpose.msra.mxu0 0
    %2488 = vmatprep.subr.bf16.mxu0 0
    %2489 = vmatpush2.bf16.xpose.msra.mxu0 0
    %2490 = vmatprep.subr.bf16.mxu0 0
    %2491 = vmatpush2.bf16.xpose.msra.mxu0 0
    %2492 = vmatprep.subr.bf16.mxu0 0
    %2493 = vmatpush2.bf16.xpose.msra.mxu0 0
    %2494 = vmatprep.mubr.bf16.mxu0 0
    %2495 = vmatmul.mubr.bf16.gmra.mxu0 %v2457
    %v2496 = vpop.f32.mrf.mxu0
    %v2497 = vadd.f32 0.0, %v2496
    %v2498 = vpop.f32.mrf.mxu0
    %v2499 = vpop.f32.mrf.mxu0
    %v2500 = vpop.f32.mrf.mxu0
    %2501 = vdwg.mxu0
    %v2503 = vsel %vm442, %v2265, 0
    %v2506 = vsel %vm442, %v885, 0
    %2508 = vmatprep.subr.bf16.mxu0 0
    %2509 = vmatpush1.bf16.xpose.msra.mxu0 0
    %2510 = vmatprep.subr.bf16.mxu0 0
    %2511 = vmatpush1.bf16.xpose.msra.mxu0 0
    %2512 = vmatprep.subr.bf16.mxu0 0
    %2513 = vmatpush1.bf16.xpose.msra.mxu0 0
    %2514 = vmatprep.subr.bf16.mxu0 0
    %2515 = vmatpush1.bf16.xpose.msra.mxu0 0
    %2516 = vmatprep.subr.bf16.mxu0 0
    %2517 = vmatpush1.bf16.xpose.msra.mxu0 0
    %2518 = vmatprep.subr.bf16.mxu0 0
    %2519 = vmatpush1.bf16.xpose.msra.mxu0 0
    %2520 = vmatprep.subr.bf16.mxu0 0
    %2521 = vmatpush1.bf16.xpose.msra.mxu0 0
    %2522 = vmatprep.subr.bf16.mxu0 0
    %2523 = vmatpush1.bf16.xpose.msra.mxu0 %v2506
    %2524 = vmatprep.subr.bf16.mxu0 0
    %2525 = vmatpush2.bf16.xpose.msra.mxu0 0
    %2526 = vmatprep.subr.bf16.mxu0 0
    %2527 = vmatpush2.bf16.xpose.msra.mxu0 0
    %2528 = vmatprep.subr.bf16.mxu0 0
    %2529 = vmatpush2.bf16.xpose.msra.mxu0 0
    %2530 = vmatprep.subr.bf16.mxu0 0
    %2531 = vmatpush2.bf16.xpose.msra.mxu0 0
    %2532 = vmatprep.subr.bf16.mxu0 0
    %2533 = vmatpush2.bf16.xpose.msra.mxu0 0
    %2534 = vmatprep.subr.bf16.mxu0 0
    %2535 = vmatpush2.bf16.xpose.msra.mxu0 0
    %2536 = vmatprep.subr.bf16.mxu0 0
    %2537 = vmatpush2.bf16.xpose.msra.mxu0 0
    %2538 = vmatprep.subr.bf16.mxu0 0
    %2539 = vmatpush2.bf16.xpose.msra.mxu0 0
    %2540 = vmatprep.mubr.bf16.mxu0 0
    %2541 = vmatmul.mubr.bf16.gmra.mxu0 %v2503
    %v2542 = vpop.f32.mrf.mxu0
    %v2543 = vadd.f32 0.0, %v2542
    %v2544 = vpop.f32.mrf.mxu0
    %v2545 = vpop.f32.mrf.mxu0
    %v2546 = vpop.f32.mrf.mxu0
    %2547 = vdwg.mxu0
    %v2549 = vsel %vm442, %v2268, 0
    %v2552 = vsel %vm442, %v888, 0
    %2554 = vmatprep.subr.bf16.mxu0 0
    %2555 = vmatpush1.bf16.xpose.msra.mxu0 0
    %2556 = vmatprep.subr.bf16.mxu0 0
    %2557 = vmatpush1.bf16.xpose.msra.mxu0 0
    %2558 = vmatprep.subr.bf16.mxu0 0
    %2559 = vmatpush1.bf16.xpose.msra.mxu0 0
    %2560 = vmatprep.subr.bf16.mxu0 0
    %2561 = vmatpush1.bf16.xpose.msra.mxu0 0
    %2562 = vmatprep.subr.bf16.mxu0 0
    %2563 = vmatpush1.bf16.xpose.msra.mxu0 0
    %2564 = vmatprep.subr.bf16.mxu0 0
    %2565 = vmatpush1.bf16.xpose.msra.mxu0 0
    %2566 = vmatprep.subr.bf16.mxu0 0
    %2567 = vmatpush1.bf16.xpose.msra.mxu0 0
    %2568 = vmatprep.subr.bf16.mxu0 0
    %2569 = vmatpush1.bf16.xpose.msra.mxu0 %v2552
    %2570 = vmatprep.subr.bf16.mxu0 0
    %2571 = vmatpush2.bf16.xpose.msra.mxu0 0
    %2572 = vmatprep.subr.bf16.mxu0 0
    %2573 = vmatpush2.bf16.xpose.msra.mxu0 0
    %2574 = vmatprep.subr.bf16.mxu0 0
    %2575 = vmatpush2.bf16.xpose.msra.mxu0 0
    %2576 = vmatprep.subr.bf16.mxu0 0
    %2577 = vmatpush2.bf16.xpose.msra.mxu0 0
    %2578 = vmatprep.subr.bf16.mxu0 0
    %2579 = vmatpush2.bf16.xpose.msra.mxu0 0
    %2580 = vmatprep.subr.bf16.mxu0 0
    %2581 = vmatpush2.bf16.xpose.msra.mxu0 0
    %2582 = vmatprep.subr.bf16.mxu0 0
    %2583 = vmatpush2.bf16.xpose.msra.mxu0 0
    %2584 = vmatprep.subr.bf16.mxu0 0
    %2585 = vmatpush2.bf16.xpose.msra.mxu0 0
    %2586 = vmatprep.mubr.bf16.mxu0 0
    %2587 = vmatmul.mubr.bf16.gmra.mxu0 %v2549
    %v2588 = vpop.f32.mrf.mxu0
    %v2589 = vadd.f32 0.0, %v2588
    %v2590 = vpop.f32.mrf.mxu0
    %v2591 = vpop.f32.mrf.mxu0
    %v2592 = vpop.f32.mrf.mxu0
    %2593 = vdwg.mxu0
    %v2595 = vsel %vm442, %v2271, 0
    %v2598 = vsel %vm442, %v891, 0
    %2600 = vmatprep.subr.bf16.mxu0 0
    %2601 = vmatpush1.bf16.xpose.msra.mxu0 0
    %2602 = vmatprep.subr.bf16.mxu0 0
    %2603 = vmatpush1.bf16.xpose.msra.mxu0 0
    %2604 = vmatprep.subr.bf16.mxu0 0
    %2605 = vmatpush1.bf16.xpose.msra.mxu0 0
    %2606 = vmatprep.subr.bf16.mxu0 0
    %2607 = vmatpush1.bf16.xpose.msra.mxu0 0
    %2608 = vmatprep.subr.bf16.mxu0 0
    %2609 = vmatpush1.bf16.xpose.msra.mxu0 0
    %2610 = vmatprep.subr.bf16.mxu0 0
    %2611 = vmatpush1.bf16.xpose.msra.mxu0 0
    %2612 = vmatprep.subr.bf16.mxu0 0
    %2613 = vmatpush1.bf16.xpose.msra.mxu0 0
    %2614 = vmatprep.subr.bf16.mxu0 0
    %2615 = vmatpush1.bf16.xpose.msra.mxu0 %v2598
    %2616 = vmatprep.subr.bf16.mxu0 0
    %2617 = vmatpush2.bf16.xpose.msra.mxu0 0
    %2618 = vmatprep.subr.bf16.mxu0 0
    %2619 = vmatpush2.bf16.xpose.msra.mxu0 0
    %2620 = vmatprep.subr.bf16.mxu0 0
    %2621 = vmatpush2.bf16.xpose.msra.mxu0 0
    %2622 = vmatprep.subr.bf16.mxu0 0
    %2623 = vmatpush2.bf16.xpose.msra.mxu0 0
    %2624 = vmatprep.subr.bf16.mxu0 0
    %2625 = vmatpush2.bf16.xpose.msra.mxu0 0
    %2626 = vmatprep.subr.bf16.mxu0 0
    %2627 = vmatpush2.bf16.xpose.msra.mxu0 0
    %2628 = vmatprep.subr.bf16.mxu0 0
    %2629 = vmatpush2.bf16.xpose.msra.mxu0 0
    %2630 = vmatprep.subr.bf16.mxu0 0
    %2631 = vmatpush2.bf16.xpose.msra.mxu0 0
    %2632 = vmatprep.mubr.bf16.mxu0 0
    %2633 = vmatmul.mubr.bf16.gmra.mxu0 %v2595
    %v2634 = vpop.f32.mrf.mxu0
    %v2635 = vadd.f32 0.0, %v2634
    %v2636 = vpop.f32.mrf.mxu0
    %v2637 = vpop.f32.mrf.mxu0
    %v2638 = vpop.f32.mrf.mxu0
    %2639 = vdwg.mxu0
    %v2640 = vrot.slane %v408, 4
    %v2649 = vrot.slane %v2359, 7
    %v2650 = vsel %vm1346, %v2649, %v2313
    %v2651 = vrot.slane %v2405, 6
    %v2652 = vsel %vm1349, %v2651, %v2650
    %v2653 = vrot.slane %v2451, 5
    %v2654 = vsel %vm1352, %v2653, %v2652
    %v2655 = vrot.slane %v2497, 4
    %v2656 = vsel %vm1355, %v2655, %v2654
    %v2657 = vrot.slane %v2543, 3
    %v2658 = vsel %vm1358, %v2657, %v2656
    %v2659 = vrot.slane %v2589, 2
    %v2660 = vsel %vm1361, %v2659, %v2658
    %v2661 = vrot.slane %v2635, 1
    %v2662 = vsel %vm1364, %v2661, %v2660
    %v2665 = vsel %vm442, %v2196, 0
    %v2668 = vsel %vm442, %v2640, 0
    %2670 = vmatprep.subr.bf16.mxu0 0
    %2671 = vmatpush1.bf16.xpose.msra.mxu0 0
    %2672 = vmatprep.subr.bf16.mxu0 0
    %2673 = vmatpush1.bf16.xpose.msra.mxu0 0
    %2674 = vmatprep.subr.bf16.mxu0 0
    %2675 = vmatpush1.bf16.xpose.msra.mxu0 0
    %2676 = vmatprep.subr.bf16.mxu0 0
    %2677 = vmatpush1.bf16.xpose.msra.mxu0 0
    %2678 = vmatprep.subr.bf16.mxu0 0
    %2679 = vmatpush1.bf16.xpose.msra.mxu0 0
    %2680 = vmatprep.subr.bf16.mxu0 0
    %2681 = vmatpush1.bf16.xpose.msra.mxu0 0
    %2682 = vmatprep.subr.bf16.mxu0 0
    %2683 = vmatpush1.bf16.xpose.msra.mxu0 0
    %2684 = vmatprep.subr.bf16.mxu0 0
    %2685 = vmatpush1.bf16.xpose.msra.mxu0 %v2668
    %2686 = vmatprep.subr.bf16.mxu0 0
    %2687 = vmatpush2.bf16.xpose.msra.mxu0 0
    %2688 = vmatprep.subr.bf16.mxu0 0
    %2689 = vmatpush2.bf16.xpose.msra.mxu0 0
    %2690 = vmatprep.subr.bf16.mxu0 0
    %2691 = vmatpush2.bf16.xpose.msra.mxu0 0
    %2692 = vmatprep.subr.bf16.mxu0 0
    %2693 = vmatpush2.bf16.xpose.msra.mxu0 0
    %2694 = vmatprep.subr.bf16.mxu0 0
    %2695 = vmatpush2.bf16.xpose.msra.mxu0 0
    %2696 = vmatprep.subr.bf16.mxu0 0
    %2697 = vmatpush2.bf16.xpose.msra.mxu0 0
    %2698 = vmatprep.subr.bf16.mxu0 0
    %2699 = vmatpush2.bf16.xpose.msra.mxu0 0
    %2700 = vmatprep.subr.bf16.mxu0 0
    %2701 = vmatpush2.bf16.xpose.msra.mxu0 0
    %2702 = vmatprep.mubr.bf16.mxu0 0
    %2703 = vmatmul.mubr.bf16.gmra.mxu0 %v2665
    %v2704 = vpop.f32.mrf.mxu0
    %v2705 = vadd.f32 %v2662, %v2704
    %v2706 = vpop.f32.mrf.mxu0
    %v2707 = vpop.f32.mrf.mxu0
    %v2708 = vpop.f32.mrf.mxu0
    %2709 = vdwg.mxu0
    %v2710 = vadd.f32 %v2705, %v2195
    %v2711 = vsel %vm1414, %v2710, -inf
    %2712 = vmax.xlane.f32.xlu0 %v2711
    %v2713 = vpop.xlane.xlu0 %2712
    %v2714 = vsub.f32 %v2710, %v2713
    %v2715 = vmul.f32 %v2714, 1.442695
    %v2716 = vpow.pop %v2715
    %v2717 = vsel %vm1414, %v2716, 0.0
    %2718 = vadd.xlane.f32.xlu0 %v2717
    %v2719 = vpop.xlane.xlu0 %2718
    %v2720 = vrcp.pop %v2719
    %v2721 = vmul.f32 %v2716, %v2720
    %v2722 = vpack.c.bf16 %v2721, %v2721
    %v2723 = vrot.slane %v409, 4
    %v2725 = vsel %vm1414, %v2722, 0
    %v2728 = vsel %vm1430, %v2723, 0
    %2730 = vmatprep.subr.bf16.mxu0 0
    %2731 = vmatpush1.bf16.msra.mxu0 0
    %2732 = vmatprep.subr.bf16.mxu0 0
    %2733 = vmatpush1.bf16.msra.mxu0 0
    %2734 = vmatprep.subr.bf16.mxu0 0
    %2735 = vmatpush1.bf16.msra.mxu0 0
    %2736 = vmatprep.subr.bf16.mxu0 0
    %2737 = vmatpush1.bf16.msra.mxu0 0
    %2738 = vmatprep.subr.bf16.mxu0 0
    %2739 = vmatpush1.bf16.msra.mxu0 0
    %2740 = vmatprep.subr.bf16.mxu0 0
    %2741 = vmatpush1.bf16.msra.mxu0 0
    %2742 = vmatprep.subr.bf16.mxu0 0
    %2743 = vmatpush1.bf16.msra.mxu0 0
    %2744 = vmatprep.subr.bf16.mxu0 0
    %2745 = vmatpush1.bf16.msra.mxu0 %v2728
    %2746 = vmatprep.subr.bf16.mxu0 0
    %2747 = vmatpush2.bf16.msra.mxu0 0
    %2748 = vmatprep.subr.bf16.mxu0 0
    %2749 = vmatpush2.bf16.msra.mxu0 0
    %2750 = vmatprep.subr.bf16.mxu0 0
    %2751 = vmatpush2.bf16.msra.mxu0 0
    %2752 = vmatprep.subr.bf16.mxu0 0
    %2753 = vmatpush2.bf16.msra.mxu0 0
    %2754 = vmatprep.subr.bf16.mxu0 0
    %2755 = vmatpush2.bf16.msra.mxu0 0
    %2756 = vmatprep.subr.bf16.mxu0 0
    %2757 = vmatpush2.bf16.msra.mxu0 0
    %2758 = vmatprep.subr.bf16.mxu0 0
    %2759 = vmatpush2.bf16.msra.mxu0 0
    %2760 = vmatprep.subr.bf16.mxu0 0
    %2761 = vmatpush2.bf16.msra.mxu0 0
    %2762 = vmatprep.mubr.bf16.mxu0 0
    %2763 = vmatmul.mubr.bf16.gmra.mxu0 %v2725
    %v2764 = vpop.f32.mrf.mxu0
    %v2765 = vadd.f32 0.0, %v2764
    %v2766 = vpop.f32.mrf.mxu0
    %v2767 = vpop.f32.mrf.mxu0
    %v2768 = vpop.f32.mrf.mxu0
    %2769 = vdwg.mxu0
    %2770 = vrot.lane.b32.xlu0 %v2196, 64
    %v2771 = vpop.permute.xlu0 %2770
    %2772 = vrot.lane.b32.xlu0 %v2640, 64
    %v2773 = vpop.permute.xlu0 %2772
    %v2774 = vrot.slane %v2313, 1
    %v2775 = vsel %vm1346, %v2359, %v2774
    %v2776 = vrot.slane %v2405, 7
    %v2777 = vsel %vm1349, %v2776, %v2775
    %v2778 = vrot.slane %v2451, 6
    %v2779 = vsel %vm1352, %v2778, %v2777
    %v2780 = vrot.slane %v2497, 5
    %v2781 = vsel %vm1355, %v2780, %v2779
    %v2782 = vrot.slane %v2543, 4
    %v2783 = vsel %vm1358, %v2782, %v2781
    %v2784 = vrot.slane %v2589, 3
    %v2785 = vsel %vm1361, %v2784, %v2783
    %v2786 = vrot.slane %v2635, 2
    %v2787 = vsel %vm1364, %v2786, %v2785
    %v2790 = vsel %vm442, %v2771, 0
    %v2793 = vsel %vm442, %v2773, 0
    %2795 = vmatprep.subr.bf16.mxu0 0
    %2796 = vmatpush1.bf16.xpose.msra.mxu0 0
    %2797 = vmatprep.subr.bf16.mxu0 0
    %2798 = vmatpush1.bf16.xpose.msra.mxu0 0
    %2799 = vmatprep.subr.bf16.mxu0 0
    %2800 = vmatpush1.bf16.xpose.msra.mxu0 0
    %2801 = vmatprep.subr.bf16.mxu0 0
    %2802 = vmatpush1.bf16.xpose.msra.mxu0 0
    %2803 = vmatprep.subr.bf16.mxu0 0
    %2804 = vmatpush1.bf16.xpose.msra.mxu0 0
    %2805 = vmatprep.subr.bf16.mxu0 0
    %2806 = vmatpush1.bf16.xpose.msra.mxu0 0
    %2807 = vmatprep.subr.bf16.mxu0 0
    %2808 = vmatpush1.bf16.xpose.msra.mxu0 0
    %2809 = vmatprep.subr.bf16.mxu0 0
    %2810 = vmatpush1.bf16.xpose.msra.mxu0 %v2793
    %2811 = vmatprep.subr.bf16.mxu0 0
    %2812 = vmatpush2.bf16.xpose.msra.mxu0 0
    %2813 = vmatprep.subr.bf16.mxu0 0
    %2814 = vmatpush2.bf16.xpose.msra.mxu0 0
    %2815 = vmatprep.subr.bf16.mxu0 0
    %2816 = vmatpush2.bf16.xpose.msra.mxu0 0
    %2817 = vmatprep.subr.bf16.mxu0 0
    %2818 = vmatpush2.bf16.xpose.msra.mxu0 0
    %2819 = vmatprep.subr.bf16.mxu0 0
    %2820 = vmatpush2.bf16.xpose.msra.mxu0 0
    %2821 = vmatprep.subr.bf16.mxu0 0
    %2822 = vmatpush2.bf16.xpose.msra.mxu0 0
    %2823 = vmatprep.subr.bf16.mxu0 0
    %2824 = vmatpush2.bf16.xpose.msra.mxu0 0
    %2825 = vmatprep.subr.bf16.mxu0 0
    %2826 = vmatpush2.bf16.xpose.msra.mxu0 0
    %2827 = vmatprep.mubr.bf16.mxu0 0
    %2828 = vmatmul.mubr.bf16.gmra.mxu0 %v2790
    %v2829 = vpop.f32.mrf.mxu0
    %v2830 = vadd.f32 %v2787, %v2829
    %v2831 = vpop.f32.mrf.mxu0
    %v2832 = vpop.f32.mrf.mxu0
    %v2833 = vpop.f32.mrf.mxu0
    %2834 = vdwg.mxu0
    %v2835 = vadd.f32 %v2830, %v2195
    %v2836 = vsel %vm1414, %v2835, -inf
    %2837 = vmax.xlane.f32.xlu0 %v2836
    %v2838 = vpop.xlane.xlu0 %2837
    %v2839 = vsub.f32 %v2835, %v2838
    %v2840 = vmul.f32 %v2839, 1.442695
    %v2841 = vpow.pop %v2840
    %v2842 = vsel %vm1414, %v2841, 0.0
    %2843 = vadd.xlane.f32.xlu0 %v2842
    %v2844 = vpop.xlane.xlu0 %2843
    %v2845 = vrcp.pop %v2844
    %v2846 = vmul.f32 %v2841, %v2845
    %v2847 = vpack.c.bf16 %v2846, %v2846
    %2848 = vrot.lane.b32.xlu0 %v2723, 64
    %v2849 = vpop.permute.xlu0 %2848
    %v2851 = vsel %vm1414, %v2847, 0
    %v2854 = vsel %vm1430, %v2849, 0
    %2856 = vmatprep.subr.bf16.mxu0 0
    %2857 = vmatpush1.bf16.msra.mxu0 0
    %2858 = vmatprep.subr.bf16.mxu0 0
    %2859 = vmatpush1.bf16.msra.mxu0 0
    %2860 = vmatprep.subr.bf16.mxu0 0
    %2861 = vmatpush1.bf16.msra.mxu0 0
    %2862 = vmatprep.subr.bf16.mxu0 0
    %2863 = vmatpush1.bf16.msra.mxu0 0
    %2864 = vmatprep.subr.bf16.mxu0 0
    %2865 = vmatpush1.bf16.msra.mxu0 0
    %2866 = vmatprep.subr.bf16.mxu0 0
    %2867 = vmatpush1.bf16.msra.mxu0 0
    %2868 = vmatprep.subr.bf16.mxu0 0
    %2869 = vmatpush1.bf16.msra.mxu0 0
    %2870 = vmatprep.subr.bf16.mxu0 0
    %2871 = vmatpush1.bf16.msra.mxu0 %v2854
    %2872 = vmatprep.subr.bf16.mxu0 0
    %2873 = vmatpush2.bf16.msra.mxu0 0
    %2874 = vmatprep.subr.bf16.mxu0 0
    %2875 = vmatpush2.bf16.msra.mxu0 0
    %2876 = vmatprep.subr.bf16.mxu0 0
    %2877 = vmatpush2.bf16.msra.mxu0 0
    %2878 = vmatprep.subr.bf16.mxu0 0
    %2879 = vmatpush2.bf16.msra.mxu0 0
    %2880 = vmatprep.subr.bf16.mxu0 0
    %2881 = vmatpush2.bf16.msra.mxu0 0
    %2882 = vmatprep.subr.bf16.mxu0 0
    %2883 = vmatpush2.bf16.msra.mxu0 0
    %2884 = vmatprep.subr.bf16.mxu0 0
    %2885 = vmatpush2.bf16.msra.mxu0 0
    %2886 = vmatprep.subr.bf16.mxu0 0
    %2887 = vmatpush2.bf16.msra.mxu0 0
    %2888 = vmatprep.mubr.bf16.mxu0 0
    %2889 = vmatmul.mubr.bf16.gmra.mxu0 %v2851
    %v2890 = vpop.f32.mrf.mxu0
    %v2891 = vadd.f32 0.0, %v2890
    %v2892 = vpop.f32.mrf.mxu0
    %v2893 = vpop.f32.mrf.mxu0
    %v2894 = vpop.f32.mrf.mxu0
    %2895 = vdwg.mxu0
    %v2898 = vunpack.c.l.s4 1966171168
    %v2899 = vunpack.c.0.s8 %v2898
    %v2900 = vlaneseq
    %v2901 = vshrl.u32 %v2900, 7
    %v2902 = vsub.s32 %v2899, %v2901
    %v2903 = vrot.slane %v2722, %v2902
    %v2904 = vcombine.high %v2903, %v2903
    %v2906 = vunpack.c.l.s4 1966171168
    %v2907 = vunpack.c.0.s8 %v2906
    %v2908 = vlaneseq
    %v2909 = vshrl.u32 %v2908, 7
    %v2910 = vsub.s32 %v2907, %v2909
    %v2911 = vrot.slane %v2903, %v2910
    %v2913 = vunpack.c.l.s4 1966171168
    %v2914 = vunpack.c.0.s8 %v2913
    %v2915 = vlaneseq
    %v2916 = vshrl.u32 %v2915, 7
    %v2917 = vsub.s32 %v2914, %v2916
    %v2918 = vrot.slane %v2904, %v2917
    %v2919 = vcombine.high %v2911, %v2911
    %v2920 = vcombine.high %v2918, %v2918
    %v2921 = vunpack.i.l.s16 %v2911
    %v2922 = vunpack.i.h.s16 %v2911
    %v2923 = vunpack.i.l.s16 %v2918
    %v2924 = vunpack.i.h.s16 %v2918
    %v2925 = vunpack.i.l.s16 %v2919
    %v2926 = vunpack.i.h.s16 %v2919
    %v2927 = vunpack.i.l.s16 %v2920
    %v2928 = vunpack.i.h.s16 %v2920
    %v2931 = vunpack.c.l.s4 1966171168
    %v2932 = vunpack.c.0.s8 %v2931
    %v2933 = vlaneseq
    %v2934 = vshrl.u32 %v2933, 7
    %v2935 = vsub.s32 %v2932, %v2934
    %v2936 = vrot.slane %v2847, %v2935
    %v2937 = vcombine.high %v2936, %v2936
    %v2939 = vunpack.c.l.s4 1966171168
    %v2940 = vunpack.c.0.s8 %v2939
    %v2941 = vlaneseq
    %v2942 = vshrl.u32 %v2941, 7
    %v2943 = vsub.s32 %v2940, %v2942
    %v2944 = vrot.slane %v2936, %v2943
    %v2946 = vunpack.c.l.s4 1966171168
    %v2947 = vunpack.c.0.s8 %v2946
    %v2948 = vlaneseq
    %v2949 = vshrl.u32 %v2948, 7
    %v2950 = vsub.s32 %v2947, %v2949
    %v2951 = vrot.slane %v2937, %v2950
    %v2952 = vcombine.high %v2944, %v2944
    %v2953 = vcombine.high %v2951, %v2951
    %v2954 = vunpack.i.l.s16 %v2944
    %v2955 = vunpack.i.h.s16 %v2944
    %v2956 = vunpack.i.l.s16 %v2951
    %v2957 = vunpack.i.h.s16 %v2951
    %v2958 = vunpack.i.l.s16 %v2952
    %v2959 = vunpack.i.h.s16 %v2952
    %v2960 = vunpack.i.l.s16 %v2953
    %v2961 = vunpack.i.h.s16 %v2953
    %v2962 = vpack.i.b16 %v2921, %v2921
    %v2963 = vpack.i.b16 %v2922, %v2922
    %v2964 = vpack.i.b16 %v2923, %v2923
    %v2965 = vpack.i.b16 %v2924, %v2924
    %v2966 = vpack.i.b16 %v2925, %v2925
    %v2967 = vpack.i.b16 %v2926, %v2926
    %v2968 = vpack.i.b16 %v2927, %v2927
    %v2969 = vpack.i.b16 %v2928, %v2928
    %v2970 = vlaneseq
    %v2971 = vshrl.u32 %v2970, 7
    %v2972 = vsub.s32 0, %v2971
    %v2973 = vrot.slane %v2962, %v2972
    %v2974 = vlaneseq
    %v2975 = vshrl.u32 %v2974, 7
    %v2976 = vsub.s32 0, %v2975
    %v2977 = vrot.slane %v2963, %v2976
    %v2978 = vlaneseq
    %v2979 = vshrl.u32 %v2978, 7
    %v2980 = vsub.s32 0, %v2979
    %v2981 = vrot.slane %v2964, %v2980
    %v2982 = vlaneseq
    %v2983 = vshrl.u32 %v2982, 7
    %v2984 = vsub.s32 0, %v2983
    %v2985 = vrot.slane %v2965, %v2984
    %v2986 = vlaneseq
    %v2987 = vshrl.u32 %v2986, 7
    %v2988 = vsub.s32 0, %v2987
    %v2989 = vrot.slane %v2966, %v2988
    %v2990 = vlaneseq
    %v2991 = vshrl.u32 %v2990, 7
    %v2992 = vsub.s32 0, %v2991
    %v2993 = vrot.slane %v2967, %v2992
    %v2994 = vlaneseq
    %v2995 = vshrl.u32 %v2994, 7
    %v2996 = vsub.s32 0, %v2995
    %v2997 = vrot.slane %v2968, %v2996
    %v2998 = vlaneseq
    %v2999 = vshrl.u32 %v2998, 7
    %v3000 = vsub.s32 0, %v2999
    %v3001 = vrot.slane %v2969, %v3000
    %v3010 = vpack.i.b16 %v2954, %v2954
    %v3011 = vpack.i.b16 %v2955, %v2955
    %v3012 = vpack.i.b16 %v2956, %v2956
    %v3013 = vpack.i.b16 %v2957, %v2957
    %v3014 = vpack.i.b16 %v2958, %v2958
    %v3015 = vpack.i.b16 %v2959, %v2959
    %v3016 = vpack.i.b16 %v2960, %v2960
    %v3017 = vpack.i.b16 %v2961, %v2961
    %v3018 = vlaneseq
    %v3019 = vshrl.u32 %v3018, 7
    %v3020 = vsub.s32 0, %v3019
    %v3021 = vrot.slane %v3010, %v3020
    %v3022 = vlaneseq
    %v3023 = vshrl.u32 %v3022, 7
    %v3024 = vsub.s32 0, %v3023
    %v3025 = vrot.slane %v3011, %v3024
    %v3026 = vlaneseq
    %v3027 = vshrl.u32 %v3026, 7
    %v3028 = vsub.s32 0, %v3027
    %v3029 = vrot.slane %v3012, %v3028
    %v3030 = vlaneseq
    %v3031 = vshrl.u32 %v3030, 7
    %v3032 = vsub.s32 0, %v3031
    %v3033 = vrot.slane %v3013, %v3032
    %v3034 = vlaneseq
    %v3035 = vshrl.u32 %v3034, 7
    %v3036 = vsub.s32 0, %v3035
    %v3037 = vrot.slane %v3014, %v3036
    %v3038 = vlaneseq
    %v3039 = vshrl.u32 %v3038, 7
    %v3040 = vsub.s32 0, %v3039
    %v3041 = vrot.slane %v3015, %v3040
    %v3042 = vlaneseq
    %v3043 = vshrl.u32 %v3042, 7
    %v3044 = vsub.s32 0, %v3043
    %v3045 = vrot.slane %v3016, %v3044
    %v3046 = vlaneseq
    %v3047 = vshrl.u32 %v3046, 7
    %v3048 = vsub.s32 0, %v3047
    %v3049 = vrot.slane %v3017, %v3048
    %v3058 = vsel %vm1764, %v2973, %v3021
    %v3059 = vsel %vm1764, %v2977, %v3025
    %v3060 = vsel %vm1764, %v2981, %v3029
    %v3061 = vsel %vm1764, %v2985, %v3033
    %v3062 = vsel %vm1764, %v2989, %v3037
    %v3063 = vsel %vm1764, %v2993, %v3041
    %v3064 = vsel %vm1764, %v2997, %v3045
    %v3065 = vsel %vm1764, %v3001, %v3049
    %v3067 = vsel %vm1414, %v3058, 0
    %v3069 = vsel %vm1430, %v870, 0
    %3071 = vmatprep.subr.bf16.mxu0 0
    %3072 = vmatpush1.bf16.msra.mxu0 0
    %3073 = vmatprep.subr.bf16.mxu0 0
    %3074 = vmatpush1.bf16.msra.mxu0 0
    %3075 = vmatprep.subr.bf16.mxu0 0
    %3076 = vmatpush1.bf16.msra.mxu0 0
    %3077 = vmatprep.subr.bf16.mxu0 0
    %3078 = vmatpush1.bf16.msra.mxu0 0
    %3079 = vmatprep.subr.bf16.mxu0 0
    %3080 = vmatpush1.bf16.msra.mxu0 0
    %3081 = vmatprep.subr.bf16.mxu0 0
    %3082 = vmatpush1.bf16.msra.mxu0 0
    %3083 = vmatprep.subr.bf16.mxu0 0
    %3084 = vmatpush1.bf16.msra.mxu0 0
    %3085 = vmatprep.subr.bf16.mxu0 0
    %3086 = vmatpush1.bf16.msra.mxu0 %v3069
    %3087 = vmatprep.subr.bf16.mxu0 0
    %3088 = vmatpush2.bf16.msra.mxu0 0
    %3089 = vmatprep.subr.bf16.mxu0 0
    %3090 = vmatpush2.bf16.msra.mxu0 0
    %3091 = vmatprep.subr.bf16.mxu0 0
    %3092 = vmatpush2.bf16.msra.mxu0 0
    %3093 = vmatprep.subr.bf16.mxu0 0
    %3094 = vmatpush2.bf16.msra.mxu0 0
    %3095 = vmatprep.subr.bf16.mxu0 0
    %3096 = vmatpush2.bf16.msra.mxu0 0
    %3097 = vmatprep.subr.bf16.mxu0 0
    %3098 = vmatpush2.bf16.msra.mxu0 0
    %3099 = vmatprep.subr.bf16.mxu0 0
    %3100 = vmatpush2.bf16.msra.mxu0 0
    %3101 = vmatprep.subr.bf16.mxu0 0
    %3102 = vmatpush2.bf16.msra.mxu0 0
    %3103 = vmatprep.mubr.bf16.mxu0 0
    %3104 = vmatmul.mubr.bf16.gmra.mxu0 %v3067
    %v3105 = vpop.f32.mrf.mxu0
    %v3106 = vadd.f32 0.0, %v3105
    %v3107 = vpop.f32.mrf.mxu0
    %v3108 = vpop.f32.mrf.mxu0
    %v3109 = vpop.f32.mrf.mxu0
    %3110 = vdwg.mxu0
    %v3112 = vsel %vm1414, %v3059, 0
    %v3114 = vsel %vm1430, %v873, 0
    %3116 = vmatprep.subr.bf16.mxu0 0
    %3117 = vmatpush1.bf16.msra.mxu0 0
    %3118 = vmatprep.subr.bf16.mxu0 0
    %3119 = vmatpush1.bf16.msra.mxu0 0
    %3120 = vmatprep.subr.bf16.mxu0 0
    %3121 = vmatpush1.bf16.msra.mxu0 0
    %3122 = vmatprep.subr.bf16.mxu0 0
    %3123 = vmatpush1.bf16.msra.mxu0 0
    %3124 = vmatprep.subr.bf16.mxu0 0
    %3125 = vmatpush1.bf16.msra.mxu0 0
    %3126 = vmatprep.subr.bf16.mxu0 0
    %3127 = vmatpush1.bf16.msra.mxu0 0
    %3128 = vmatprep.subr.bf16.mxu0 0
    %3129 = vmatpush1.bf16.msra.mxu0 0
    %3130 = vmatprep.subr.bf16.mxu0 0
    %3131 = vmatpush1.bf16.msra.mxu0 %v3114
    %3132 = vmatprep.subr.bf16.mxu0 0
    %3133 = vmatpush2.bf16.msra.mxu0 0
    %3134 = vmatprep.subr.bf16.mxu0 0
    %3135 = vmatpush2.bf16.msra.mxu0 0
    %3136 = vmatprep.subr.bf16.mxu0 0
    %3137 = vmatpush2.bf16.msra.mxu0 0
    %3138 = vmatprep.subr.bf16.mxu0 0
    %3139 = vmatpush2.bf16.msra.mxu0 0
    %3140 = vmatprep.subr.bf16.mxu0 0
    %3141 = vmatpush2.bf16.msra.mxu0 0
    %3142 = vmatprep.subr.bf16.mxu0 0
    %3143 = vmatpush2.bf16.msra.mxu0 0
    %3144 = vmatprep.subr.bf16.mxu0 0
    %3145 = vmatpush2.bf16.msra.mxu0 0
    %3146 = vmatprep.subr.bf16.mxu0 0
    %3147 = vmatpush2.bf16.msra.mxu0 0
    %3148 = vmatprep.mubr.bf16.mxu0 0
    %3149 = vmatmul.mubr.bf16.gmra.mxu0 %v3112
    %v3150 = vpop.f32.mrf.mxu0
    %v3151 = vadd.f32 0.0, %v3150
    %v3152 = vpop.f32.mrf.mxu0
    %v3153 = vpop.f32.mrf.mxu0
    %v3154 = vpop.f32.mrf.mxu0
    %3155 = vdwg.mxu0
    %v3157 = vsel %vm1414, %v3060, 0
    %v3159 = vsel %vm1430, %v876, 0
    %3161 = vmatprep.subr.bf16.mxu0 0
    %3162 = vmatpush1.bf16.msra.mxu0 0
    %3163 = vmatprep.subr.bf16.mxu0 0
    %3164 = vmatpush1.bf16.msra.mxu0 0
    %3165 = vmatprep.subr.bf16.mxu0 0
    %3166 = vmatpush1.bf16.msra.mxu0 0
    %3167 = vmatprep.subr.bf16.mxu0 0
    %3168 = vmatpush1.bf16.msra.mxu0 0
    %3169 = vmatprep.subr.bf16.mxu0 0
    %3170 = vmatpush1.bf16.msra.mxu0 0
    %3171 = vmatprep.subr.bf16.mxu0 0
    %3172 = vmatpush1.bf16.msra.mxu0 0
    %3173 = vmatprep.subr.bf16.mxu0 0
    %3174 = vmatpush1.bf16.msra.mxu0 0
    %3175 = vmatprep.subr.bf16.mxu0 0
    %3176 = vmatpush1.bf16.msra.mxu0 %v3159
    %3177 = vmatprep.subr.bf16.mxu0 0
    %3178 = vmatpush2.bf16.msra.mxu0 0
    %3179 = vmatprep.subr.bf16.mxu0 0
    %3180 = vmatpush2.bf16.msra.mxu0 0
    %3181 = vmatprep.subr.bf16.mxu0 0
    %3182 = vmatpush2.bf16.msra.mxu0 0
    %3183 = vmatprep.subr.bf16.mxu0 0
    %3184 = vmatpush2.bf16.msra.mxu0 0
    %3185 = vmatprep.subr.bf16.mxu0 0
    %3186 = vmatpush2.bf16.msra.mxu0 0
    %3187 = vmatprep.subr.bf16.mxu0 0
    %3188 = vmatpush2.bf16.msra.mxu0 0
    %3189 = vmatprep.subr.bf16.mxu0 0
    %3190 = vmatpush2.bf16.msra.mxu0 0
    %3191 = vmatprep.subr.bf16.mxu0 0
    %3192 = vmatpush2.bf16.msra.mxu0 0
    %3193 = vmatprep.mubr.bf16.mxu0 0
    %3194 = vmatmul.mubr.bf16.gmra.mxu0 %v3157
    %v3195 = vpop.f32.mrf.mxu0
    %v3196 = vadd.f32 0.0, %v3195
    %v3197 = vpop.f32.mrf.mxu0
    %v3198 = vpop.f32.mrf.mxu0
    %v3199 = vpop.f32.mrf.mxu0
    %3200 = vdwg.mxu0
    %v3202 = vsel %vm1414, %v3061, 0
    %v3204 = vsel %vm1430, %v879, 0
    %3206 = vmatprep.subr.bf16.mxu0 0
    %3207 = vmatpush1.bf16.msra.mxu0 0
    %3208 = vmatprep.subr.bf16.mxu0 0
    %3209 = vmatpush1.bf16.msra.mxu0 0
    %3210 = vmatprep.subr.bf16.mxu0 0
    %3211 = vmatpush1.bf16.msra.mxu0 0
    %3212 = vmatprep.subr.bf16.mxu0 0
    %3213 = vmatpush1.bf16.msra.mxu0 0
    %3214 = vmatprep.subr.bf16.mxu0 0
    %3215 = vmatpush1.bf16.msra.mxu0 0
    %3216 = vmatprep.subr.bf16.mxu0 0
    %3217 = vmatpush1.bf16.msra.mxu0 0
    %3218 = vmatprep.subr.bf16.mxu0 0
    %3219 = vmatpush1.bf16.msra.mxu0 0
    %3220 = vmatprep.subr.bf16.mxu0 0
    %3221 = vmatpush1.bf16.msra.mxu0 %v3204
    %3222 = vmatprep.subr.bf16.mxu0 0
    %3223 = vmatpush2.bf16.msra.mxu0 0
    %3224 = vmatprep.subr.bf16.mxu0 0
    %3225 = vmatpush2.bf16.msra.mxu0 0
    %3226 = vmatprep.subr.bf16.mxu0 0
    %3227 = vmatpush2.bf16.msra.mxu0 0
    %3228 = vmatprep.subr.bf16.mxu0 0
    %3229 = vmatpush2.bf16.msra.mxu0 0
    %3230 = vmatprep.subr.bf16.mxu0 0
    %3231 = vmatpush2.bf16.msra.mxu0 0
    %3232 = vmatprep.subr.bf16.mxu0 0
    %3233 = vmatpush2.bf16.msra.mxu0 0
    %3234 = vmatprep.subr.bf16.mxu0 0
    %3235 = vmatpush2.bf16.msra.mxu0 0
    %3236 = vmatprep.subr.bf16.mxu0 0
    %3237 = vmatpush2.bf16.msra.mxu0 0
    %3238 = vmatprep.mubr.bf16.mxu0 0
    %3239 = vmatmul.mubr.bf16.gmra.mxu0 %v3202
    %v3240 = vpop.f32.mrf.mxu0
    %v3241 = vadd.f32 0.0, %v3240
    %v3242 = vpop.f32.mrf.mxu0
    %v3243 = vpop.f32.mrf.mxu0
    %v3244 = vpop.f32.mrf.mxu0
    %3245 = vdwg.mxu0
    %v3247 = vsel %vm1414, %v3062, 0
    %v3249 = vsel %vm1430, %v882, 0
    %3251 = vmatprep.subr.bf16.mxu0 0
    %3252 = vmatpush1.bf16.msra.mxu0 0
    %3253 = vmatprep.subr.bf16.mxu0 0
    %3254 = vmatpush1.bf16.msra.mxu0 0
    %3255 = vmatprep.subr.bf16.mxu0 0
    %3256 = vmatpush1.bf16.msra.mxu0 0
    %3257 = vmatprep.subr.bf16.mxu0 0
    %3258 = vmatpush1.bf16.msra.mxu0 0
    %3259 = vmatprep.subr.bf16.mxu0 0
    %3260 = vmatpush1.bf16.msra.mxu0 0
    %3261 = vmatprep.subr.bf16.mxu0 0
    %3262 = vmatpush1.bf16.msra.mxu0 0
    %3263 = vmatprep.subr.bf16.mxu0 0
    %3264 = vmatpush1.bf16.msra.mxu0 0
    %3265 = vmatprep.subr.bf16.mxu0 0
    %3266 = vmatpush1.bf16.msra.mxu0 %v3249
    %3267 = vmatprep.subr.bf16.mxu0 0
    %3268 = vmatpush2.bf16.msra.mxu0 0
    %3269 = vmatprep.subr.bf16.mxu0 0
    %3270 = vmatpush2.bf16.msra.mxu0 0
    %3271 = vmatprep.subr.bf16.mxu0 0
    %3272 = vmatpush2.bf16.msra.mxu0 0
    %3273 = vmatprep.subr.bf16.mxu0 0
    %3274 = vmatpush2.bf16.msra.mxu0 0
    %3275 = vmatprep.subr.bf16.mxu0 0
    %3276 = vmatpush2.bf16.msra.mxu0 0
    %3277 = vmatprep.subr.bf16.mxu0 0
    %3278 = vmatpush2.bf16.msra.mxu0 0
    %3279 = vmatprep.subr.bf16.mxu0 0
    %3280 = vmatpush2.bf16.msra.mxu0 0
    %3281 = vmatprep.subr.bf16.mxu0 0
    %3282 = vmatpush2.bf16.msra.mxu0 0
    %3283 = vmatprep.mubr.bf16.mxu0 0
    %3284 = vmatmul.mubr.bf16.gmra.mxu0 %v3247
    %v3285 = vpop.f32.mrf.mxu0
    %v3286 = vadd.f32 0.0, %v3285
    %v3287 = vpop.f32.mrf.mxu0
    %v3288 = vpop.f32.mrf.mxu0
    %v3289 = vpop.f32.mrf.mxu0
    %3290 = vdwg.mxu0
    %v3292 = vsel %vm1414, %v3063, 0
    %v3294 = vsel %vm1430, %v885, 0
    %3296 = vmatprep.subr.bf16.mxu0 0
    %3297 = vmatpush1.bf16.msra.mxu0 0
    %3298 = vmatprep.subr.bf16.mxu0 0
    %3299 = vmatpush1.bf16.msra.mxu0 0
    %3300 = vmatprep.subr.bf16.mxu0 0
    %3301 = vmatpush1.bf16.msra.mxu0 0
    %3302 = vmatprep.subr.bf16.mxu0 0
    %3303 = vmatpush1.bf16.msra.mxu0 0
    %3304 = vmatprep.subr.bf16.mxu0 0
    %3305 = vmatpush1.bf16.msra.mxu0 0
    %3306 = vmatprep.subr.bf16.mxu0 0
    %3307 = vmatpush1.bf16.msra.mxu0 0
    %3308 = vmatprep.subr.bf16.mxu0 0
    %3309 = vmatpush1.bf16.msra.mxu0 0
    %3310 = vmatprep.subr.bf16.mxu0 0
    %3311 = vmatpush1.bf16.msra.mxu0 %v3294
    %3312 = vmatprep.subr.bf16.mxu0 0
    %3313 = vmatpush2.bf16.msra.mxu0 0
    %3314 = vmatprep.subr.bf16.mxu0 0
    %3315 = vmatpush2.bf16.msra.mxu0 0
    %3316 = vmatprep.subr.bf16.mxu0 0
    %3317 = vmatpush2.bf16.msra.mxu0 0
    %3318 = vmatprep.subr.bf16.mxu0 0
    %3319 = vmatpush2.bf16.msra.mxu0 0
    %3320 = vmatprep.subr.bf16.mxu0 0
    %3321 = vmatpush2.bf16.msra.mxu0 0
    %3322 = vmatprep.subr.bf16.mxu0 0
    %3323 = vmatpush2.bf16.msra.mxu0 0
    %3324 = vmatprep.subr.bf16.mxu0 0
    %3325 = vmatpush2.bf16.msra.mxu0 0
    %3326 = vmatprep.subr.bf16.mxu0 0
    %3327 = vmatpush2.bf16.msra.mxu0 0
    %3328 = vmatprep.mubr.bf16.mxu0 0
    %3329 = vmatmul.mubr.bf16.gmra.mxu0 %v3292
    %v3330 = vpop.f32.mrf.mxu0
    %v3331 = vadd.f32 0.0, %v3330
    %v3332 = vpop.f32.mrf.mxu0
    %v3333 = vpop.f32.mrf.mxu0
    %v3334 = vpop.f32.mrf.mxu0
    %3335 = vdwg.mxu0
    %v3337 = vsel %vm1414, %v3064, 0
    %v3339 = vsel %vm1430, %v888, 0
    %3341 = vmatprep.subr.bf16.mxu0 0
    %3342 = vmatpush1.bf16.msra.mxu0 0
    %3343 = vmatprep.subr.bf16.mxu0 0
    %3344 = vmatpush1.bf16.msra.mxu0 0
    %3345 = vmatprep.subr.bf16.mxu0 0
    %3346 = vmatpush1.bf16.msra.mxu0 0
    %3347 = vmatprep.subr.bf16.mxu0 0
    %3348 = vmatpush1.bf16.msra.mxu0 0
    %3349 = vmatprep.subr.bf16.mxu0 0
    %3350 = vmatpush1.bf16.msra.mxu0 0
    %3351 = vmatprep.subr.bf16.mxu0 0
    %3352 = vmatpush1.bf16.msra.mxu0 0
    %3353 = vmatprep.subr.bf16.mxu0 0
    %3354 = vmatpush1.bf16.msra.mxu0 0
    %3355 = vmatprep.subr.bf16.mxu0 0
    %3356 = vmatpush1.bf16.msra.mxu0 %v3339
    %3357 = vmatprep.subr.bf16.mxu0 0
    %3358 = vmatpush2.bf16.msra.mxu0 0
    %3359 = vmatprep.subr.bf16.mxu0 0
    %3360 = vmatpush2.bf16.msra.mxu0 0
    %3361 = vmatprep.subr.bf16.mxu0 0
    %3362 = vmatpush2.bf16.msra.mxu0 0
    %3363 = vmatprep.subr.bf16.mxu0 0
    %3364 = vmatpush2.bf16.msra.mxu0 0
    %3365 = vmatprep.subr.bf16.mxu0 0
    %3366 = vmatpush2.bf16.msra.mxu0 0
    %3367 = vmatprep.subr.bf16.mxu0 0
    %3368 = vmatpush2.bf16.msra.mxu0 0
    %3369 = vmatprep.subr.bf16.mxu0 0
    %3370 = vmatpush2.bf16.msra.mxu0 0
    %3371 = vmatprep.subr.bf16.mxu0 0
    %3372 = vmatpush2.bf16.msra.mxu0 0
    %3373 = vmatprep.mubr.bf16.mxu0 0
    %3374 = vmatmul.mubr.bf16.gmra.mxu0 %v3337
    %v3375 = vpop.f32.mrf.mxu0
    %v3376 = vadd.f32 0.0, %v3375
    %v3377 = vpop.f32.mrf.mxu0
    %v3378 = vpop.f32.mrf.mxu0
    %v3379 = vpop.f32.mrf.mxu0
    %3380 = vdwg.mxu0
    %v3382 = vsel %vm1414, %v3065, 0
    %v3384 = vsel %vm1430, %v891, 0
    %3386 = vmatprep.subr.bf16.mxu0 0
    %3387 = vmatpush1.bf16.msra.mxu0 0
    %3388 = vmatprep.subr.bf16.mxu0 0
    %3389 = vmatpush1.bf16.msra.mxu0 0
    %3390 = vmatprep.subr.bf16.mxu0 0
    %3391 = vmatpush1.bf16.msra.mxu0 0
    %3392 = vmatprep.subr.bf16.mxu0 0
    %3393 = vmatpush1.bf16.msra.mxu0 0
    %3394 = vmatprep.subr.bf16.mxu0 0
    %3395 = vmatpush1.bf16.msra.mxu0 0
    %3396 = vmatprep.subr.bf16.mxu0 0
    %3397 = vmatpush1.bf16.msra.mxu0 0
    %3398 = vmatprep.subr.bf16.mxu0 0
    %3399 = vmatpush1.bf16.msra.mxu0 0
    %3400 = vmatprep.subr.bf16.mxu0 0
    %3401 = vmatpush1.bf16.msra.mxu0 %v3384
    %3402 = vmatprep.subr.bf16.mxu0 0
    %3403 = vmatpush2.bf16.msra.mxu0 0
    %3404 = vmatprep.subr.bf16.mxu0 0
    %3405 = vmatpush2.bf16.msra.mxu0 0
    %3406 = vmatprep.subr.bf16.mxu0 0
    %3407 = vmatpush2.bf16.msra.mxu0 0
    %3408 = vmatprep.subr.bf16.mxu0 0
    %3409 = vmatpush2.bf16.msra.mxu0 0
    %3410 = vmatprep.subr.bf16.mxu0 0
    %3411 = vmatpush2.bf16.msra.mxu0 0
    %3412 = vmatprep.subr.bf16.mxu0 0
    %3413 = vmatpush2.bf16.msra.mxu0 0
    %3414 = vmatprep.subr.bf16.mxu0 0
    %3415 = vmatpush2.bf16.msra.mxu0 0
    %3416 = vmatprep.subr.bf16.mxu0 0
    %3417 = vmatpush2.bf16.msra.mxu0 0
    %3418 = vmatprep.mubr.bf16.mxu0 0
    %3419 = vmatmul.mubr.bf16.gmra.mxu0 %v3382
    %v3420 = vpop.f32.mrf.mxu0
    %v3421 = vadd.f32 0.0, %v3420
    %v3422 = vpop.f32.mrf.mxu0
    %v3423 = vpop.f32.mrf.mxu0
    %v3424 = vpop.f32.mrf.mxu0
    %3425 = vdwg.mxu0
    %3427 = vrot.lane.b32.xlu0 %v2891, 64
    %v3428 = vpop.permute.xlu0 %3427
    %v3430 = vsel %vm442, %v2765, %v3428
    %v3431 = vcombine.low %v3106, %v3196
    %v3433 = vunpack.c.l.s4 1983009808
    %v3434 = vunpack.c.0.s8 %v3433
    %v3435 = vlaneseq
    %v3436 = vshrl.u32 %v3435, 7
    %v3437 = vsub.s32 %v3434, %v3436
    %v3438 = vrot.slane %v3431, %v3437
    %v3439 = vcombine.low %v3151, %v3241
    %v3441 = vunpack.c.l.s4 1983009808
    %v3442 = vunpack.c.0.s8 %v3441
    %v3443 = vlaneseq
    %v3444 = vshrl.u32 %v3443, 7
    %v3445 = vsub.s32 %v3442, %v3444
    %v3446 = vrot.slane %v3439, %v3445
    %v3447 = vcombine.low %v3286, %v3376
    %v3449 = vunpack.c.l.s4 1983009808
    %v3450 = vunpack.c.0.s8 %v3449
    %v3451 = vlaneseq
    %v3452 = vshrl.u32 %v3451, 7
    %v3453 = vsub.s32 %v3450, %v3452
    %v3454 = vrot.slane %v3447, %v3453
    %v3455 = vcombine.low %v3331, %v3421
    %v3457 = vunpack.c.l.s4 1983009808
    %v3458 = vunpack.c.0.s8 %v3457
    %v3459 = vlaneseq
    %v3460 = vshrl.u32 %v3459, 7
    %v3461 = vsub.s32 %v3458, %v3460
    %v3462 = vrot.slane %v3455, %v3461
    %v3463 = vcombine.low %v3438, %v3446
    %v3465 = vunpack.c.l.s4 1934713408
    %v3466 = vunpack.c.0.s8 %v3465
    %v3467 = vlaneseq
    %v3468 = vshrl.u32 %v3467, 7
    %v3469 = vsub.s32 %v3466, %v3468
    %v3470 = vrot.slane %v3463, %v3469
    %v3471 = vcombine.low %v3454, %v3462
    %v3473 = vunpack.c.l.s4 1934713408
    %v3474 = vunpack.c.0.s8 %v3473
    %v3475 = vlaneseq
    %v3476 = vshrl.u32 %v3475, 7
    %v3477 = vsub.s32 %v3474, %v3476
    %v3478 = vrot.slane %v3471, %v3477
    %v3479 = vcombine.low %v3470, %v3478
    %v3480 = vcombine.high %v3470, %v3478
    %3482 = vrot.lane.b32.xlu0 %v3480, 64
    %v3483 = vpop.permute.xlu0 %3482
    %v3485 = vsel %vm442, %v3479, %v3483
    %v3486 = vadd.f32 %v3430, %v3485
    %v3487 = vpack.c.bf16 %v3486, %v2193
    %v3488 = vld [vmem:[#allocation8 + $0xc] sm:$0xf]
    %v3489 = vld [vmem:[#allocation8 + $0x24] sm:$0xf]
    %v3490 = vld [vmem:[#allocation8 + $0x3c] sm:$0xf]
    %v3491 = vld [vmem:[#allocation8 + $0x54] sm:$0xf]
    %v3492 = vld [vmem:[#allocation8 + $0x6c] sm:$0xf]
    %v3493 = vld [vmem:[#allocation8 + $0x84] sm:$0xf]
    %v3494 = vld [vmem:[#allocation8 + $0x9c] sm:$0xf]
    %v3495 = vld [vmem:[#allocation8 + $0xb4] sm:$0xf]
    %v3496 = vld [vmem:[#allocation8 + $0xcc] sm:$0xf]
    %v3497 = vld [vmem:[#allocation8 + $0xe4] sm:$0xf]
    %v3498 = vld [vmem:[#allocation8 + $0xfc] sm:$0xf]
    %v3499 = vld [vmem:[#allocation8 + $0x114] sm:$0xf]
    %v3500 = vld [vmem:[#allocation8 + $0x12c] sm:$0xf]
    %v3501 = vld [vmem:[#allocation8 + $0x144] sm:$0xf]
    %v3502 = vld [vmem:[#allocation8 + $0x15c] sm:$0xf]
    %v3503 = vld [vmem:[#allocation8 + $0x174] sm:$0xf]
    %v3504 = vlaneseq
    %v3505 = vshrl.u32 %v3504, 7
    %v3506 = vsub.s32 1, %v3505
    %v3507 = vrot.slane %v109, %v3506
    %v3524 = vunpack.c.l.b16 %v3488
    %v3525 = vunpack.c.l.b16 %v3489
    %v3526 = vunpack.c.l.b16 %v3490
    %v3527 = vunpack.c.l.b16 %v3491
    %v3528 = vunpack.c.l.b16 %v3492
    %v3529 = vunpack.c.l.b16 %v3493
    %v3530 = vunpack.c.l.b16 %v3494
    %v3531 = vunpack.c.l.b16 %v3495
    %v3532 = vunpack.c.l.b16 %v3496
    %v3533 = vunpack.c.l.b16 %v3497
    %v3534 = vunpack.c.l.b16 %v3498
    %v3535 = vunpack.c.l.b16 %v3499
    %v3536 = vunpack.c.l.b16 %v3500
    %v3537 = vunpack.c.l.b16 %v3501
    %v3538 = vunpack.c.l.b16 %v3502
    %v3539 = vunpack.c.l.b16 %v3503
    %v3540 = vpack.c.b16 %v3525, %v3524
    %v3541 = vpack.c.b16 %v3527, %v3526
    %v3542 = vpack.c.b16 %v3529, %v3528
    %v3543 = vpack.c.b16 %v3531, %v3530
    %v3544 = vpack.c.b16 %v3533, %v3532
    %v3545 = vpack.c.b16 %v3535, %v3534
    %v3546 = vpack.c.b16 %v3537, %v3536
    %v3547 = vpack.c.b16 %v3539, %v3538
    %3556 = vmatprep.subr.bf16.mxu0 0
    %3557 = vmatpush1.bf16.msra.mxu0 %v3547
    %3558 = vmatprep.subr.bf16.mxu0 0
    %3559 = vmatpush1.bf16.msra.mxu0 %v3546
    %3560 = vmatprep.subr.bf16.mxu0 0
    %3561 = vmatpush1.bf16.msra.mxu0 %v3545
    %3562 = vmatprep.subr.bf16.mxu0 0
    %3563 = vmatpush1.bf16.msra.mxu0 %v3544
    %3564 = vmatprep.subr.bf16.mxu0 0
    %3565 = vmatpush1.bf16.msra.mxu0 %v3543
    %3566 = vmatprep.subr.bf16.mxu0 0
    %3567 = vmatpush1.bf16.msra.mxu0 %v3542
    %3568 = vmatprep.subr.bf16.mxu0 0
    %3569 = vmatpush1.bf16.msra.mxu0 %v3541
    %3570 = vmatprep.subr.bf16.mxu0 0
    %3571 = vmatpush1.bf16.msra.mxu0 %v3540
    %3572 = vmatprep.subr.bf16.mxu0 0
    %3573 = vmatpush2.bf16.msra.mxu0 0
    %3574 = vmatprep.subr.bf16.mxu0 0
    %3575 = vmatpush2.bf16.msra.mxu0 0
    %3576 = vmatprep.subr.bf16.mxu0 0
    %3577 = vmatpush2.bf16.msra.mxu0 0
    %3578 = vmatprep.subr.bf16.mxu0 0
    %3579 = vmatpush2.bf16.msra.mxu0 0
    %3580 = vmatprep.subr.bf16.mxu0 0
    %3581 = vmatpush2.bf16.msra.mxu0 0
    %3582 = vmatprep.subr.bf16.mxu0 0
    %3583 = vmatpush2.bf16.msra.mxu0 0
    %3584 = vmatprep.subr.bf16.mxu0 0
    %3585 = vmatpush2.bf16.msra.mxu0 0
    %3586 = vmatprep.subr.bf16.mxu0 0
    %3587 = vmatpush2.bf16.msra.mxu0 0
    %3588 = vmatprep.mubr.bf16.mxu0 0
    %3589 = vmatmul.mubr.bf16.gmra.mxu0 %v3487
    %v3590 = vpop.f32.mrf.mxu0
    %v3591 = vadd.f32 %v3507, %v3590
    %v3592 = vpop.f32.mrf.mxu0
    %v3593 = vpop.f32.mrf.mxu0
    %v3594 = vadd.f32 %v3507, %v3593
    %v3595 = vpop.f32.mrf.mxu0
    %3596 = vdwg.mxu0
    %v3597 = vadd.f32 %v3591, %v107
    %v3598 = vadd.f32 %v3594, %v108
    %3599 = vadd.xlane.f32.xlu0 %v3597
    %v3600 = vpop.xlane.xlu0 %3599
    %3601 = vadd.xlane.f32.xlu0 %v3598
    %v3602 = vpop.xlane.xlu0 %3601
    %v3603 = vmul.f32 %v3600, %v117
    %v3604 = vmul.f32 %v3602, %v117
    %v3605 = vsub.f32 %v3597, %v3603
    %v3606 = vsub.f32 %v3598, %v3604
    %v3607 = vmul.f32 %v3605, %v3605
    %v3608 = vmul.f32 %v3606, %v3606
    %3609 = vadd.xlane.f32.xlu0 %v3607
    %v3610 = vpop.xlane.xlu0 %3609
    %3611 = vadd.xlane.f32.xlu0 %v3608
    %v3612 = vpop.xlane.xlu0 %3611
    %v3613 = vmul.f32 %v3610, %v117
    %v3614 = vmul.f32 %v3612, %v117
    %v3615 = vadd.f32 %v3613, 1e-06
    %v3616 = vadd.f32 %v3614, 1e-06
    %v3617 = vrsqrt.pop %v3615
    %v3618 = vrsqrt.pop %v3616
    %v3619 = vmul.f32 %v3605, %v3617
    %v3620 = vmul.f32 %v3606, %v3618
    %v3621 = vlaneseq
    %v3622 = vshrl.u32 %v3621, 7
    %v3623 = vsub.s32 6, %v3622
    %v3624 = vrot.slane %v109, %v3623
    %v3625 = vmul.f32 %v3619, %v3624
    %v3626 = vmul.f32 %v3620, %v3624
    %v3627 = vlaneseq
    %v3628 = vshrl.u32 %v3627, 7
    %v3629 = vsub.s32 7, %v3628
    %v3630 = vrot.slane %v109, %v3629
    %v3631 = vadd.f32 %v3625, %v3630
    %v3632 = vadd.f32 %v3626, %v3630
    %v3633 = vpack.c.bf16 %v3632, %v3631
    %v3634 = vld [vmem:[#allocation8 + $0x10] sm:$0xff]
    %v3635 = vld [vmem:[#allocation8 + $0x28] sm:$0xff]
    %v3636 = vld [vmem:[#allocation8 + $0x40] sm:$0xff]
    %v3637 = vld [vmem:[#allocation8 + $0x58] sm:$0xff]
    %v3638 = vld [vmem:[#allocation8 + $0x70] sm:$0xff]
    %v3639 = vld [vmem:[#allocation8 + $0x88] sm:$0xff]
    %v3640 = vld [vmem:[#allocation8 + $0xa0] sm:$0xff]
    %v3641 = vld [vmem:[#allocation8 + $0xb8] sm:$0xff]
    %v3642 = vld [vmem:[#allocation8 + $0xd0] sm:$0xff]
    %v3643 = vld [vmem:[#allocation8 + $0xe8] sm:$0xff]
    %v3644 = vld [vmem:[#allocation8 + $0x100] sm:$0xff]
    %v3645 = vld [vmem:[#allocation8 + $0x118] sm:$0xff]
    %v3646 = vld [vmem:[#allocation8 + $0x130] sm:$0xff]
    %v3647 = vld [vmem:[#allocation8 + $0x148] sm:$0xff]
    %v3648 = vld [vmem:[#allocation8 + $0x160] sm:$0xff]
    %v3649 = vld [vmem:[#allocation8 + $0x178] sm:$0xff]
    %v3650 = vlaneseq
    %v3651 = vshrl.u32 %v3650, 7
    %v3652 = vsub.s32 2, %v3651
    %v3653 = vrot.slane %v109, %v3652
    %v3654 = vlaneseq
    %v3655 = vshrl.u32 %v3654, 7
    %v3656 = vsub.s32 2, %v3655
    %v3657 = vrot.slane %v110, %v3656
    %v3674 = vunpack.c.l.b16 %v3634
    %v3675 = vunpack.c.h.b16 %v3634
    %v3676 = vunpack.c.l.b16 %v3635
    %v3677 = vunpack.c.h.b16 %v3635
    %v3678 = vunpack.c.l.b16 %v3636
    %v3679 = vunpack.c.h.b16 %v3636
    %v3680 = vunpack.c.l.b16 %v3637
    %v3681 = vunpack.c.h.b16 %v3637
    %v3682 = vunpack.c.l.b16 %v3638
    %v3683 = vunpack.c.h.b16 %v3638
    %v3684 = vunpack.c.l.b16 %v3639
    %v3685 = vunpack.c.h.b16 %v3639
    %v3686 = vunpack.c.l.b16 %v3640
    %v3687 = vunpack.c.h.b16 %v3640
    %v3688 = vunpack.c.l.b16 %v3641
    %v3689 = vunpack.c.h.b16 %v3641
    %v3690 = vunpack.c.l.b16 %v3642
    %v3691 = vunpack.c.h.b16 %v3642
    %v3692 = vunpack.c.l.b16 %v3643
    %v3693 = vunpack.c.h.b16 %v3643
    %v3694 = vunpack.c.l.b16 %v3644
    %v3695 = vunpack.c.h.b16 %v3644
    %v3696 = vunpack.c.l.b16 %v3645
    %v3697 = vunpack.c.h.b16 %v3645
    %v3698 = vunpack.c.l.b16 %v3646
    %v3699 = vunpack.c.h.b16 %v3646
    %v3700 = vunpack.c.l.b16 %v3647
    %v3701 = vunpack.c.h.b16 %v3647
    %v3702 = vunpack.c.l.b16 %v3648
    %v3703 = vunpack.c.h.b16 %v3648
    %v3704 = vunpack.c.l.b16 %v3649
    %v3705 = vunpack.c.h.b16 %v3649
    %v3706 = vpack.c.b16 %v3676, %v3674
    %v3707 = vpack.c.b16 %v3677, %v3675
    %v3708 = vpack.c.b16 %v3680, %v3678
    %v3709 = vpack.c.b16 %v3681, %v3679
    %v3710 = vpack.c.b16 %v3684, %v3682
    %v3711 = vpack.c.b16 %v3685, %v3683
    %v3712 = vpack.c.b16 %v3688, %v3686
    %v3713 = vpack.c.b16 %v3689, %v3687
    %v3714 = vpack.c.b16 %v3692, %v3690
    %v3715 = vpack.c.b16 %v3693, %v3691
    %v3716 = vpack.c.b16 %v3696, %v3694
    %v3717 = vpack.c.b16 %v3697, %v3695
    %v3718 = vpack.c.b16 %v3700, %v3698
    %v3719 = vpack.c.b16 %v3701, %v3699
    %v3720 = vpack.c.b16 %v3704, %v3702
    %v3721 = vpack.c.b16 %v3705, %v3703
    %3738 = vmatprep.subr.bf16.mxu0 %v3721
    %3739 = vmatpush1.bf16.msra.mxu0 %v3720
    %3740 = vmatprep.subr.bf16.mxu0 %v3719
    %3741 = vmatpush1.bf16.msra.mxu0 %v3718
    %3742 = vmatprep.subr.bf16.mxu0 %v3717
    %3743 = vmatpush1.bf16.msra.mxu0 %v3716
    %3744 = vmatprep.subr.bf16.mxu0 %v3715
    %3745 = vmatpush1.bf16.msra.mxu0 %v3714
    %3746 = vmatprep.subr.bf16.mxu0 %v3713
    %3747 = vmatpush1.bf16.msra.mxu0 %v3712
    %3748 = vmatprep.subr.bf16.mxu0 %v3711
    %3749 = vmatpush1.bf16.msra.mxu0 %v3710
    %3750 = vmatprep.subr.bf16.mxu0 %v3709
    %3751 = vmatpush1.bf16.msra.mxu0 %v3708
    %3752 = vmatprep.subr.bf16.mxu0 %v3707
    %3753 = vmatpush1.bf16.msra.mxu0 %v3706
    %3754 = vmatprep.subr.bf16.mxu0 0
    %3755 = vmatpush2.bf16.msra.mxu0 0
    %3756 = vmatprep.subr.bf16.mxu0 0
    %3757 = vmatpush2.bf16.msra.mxu0 0
    %3758 = vmatprep.subr.bf16.mxu0 0
    %3759 = vmatpush2.bf16.msra.mxu0 0
    %3760 = vmatprep.subr.bf16.mxu0 0
    %3761 = vmatpush2.bf16.msra.mxu0 0
    %3762 = vmatprep.subr.bf16.mxu0 0
    %3763 = vmatpush2.bf16.msra.mxu0 0
    %3764 = vmatprep.subr.bf16.mxu0 0
    %3765 = vmatpush2.bf16.msra.mxu0 0
    %3766 = vmatprep.subr.bf16.mxu0 0
    %3767 = vmatpush2.bf16.msra.mxu0 0
    %3768 = vmatprep.subr.bf16.mxu0 0
    %3769 = vmatpush2.bf16.msra.mxu0 0
    %3770 = vmatprep.mubr.bf16.mxu0 0
    %3771 = vmatmul.mubr.bf16.gmra.mxu0 %v3633
    %v3772 = vpop.f32.mrf.mxu0
    %v3773 = vadd.f32 %v3653, %v3772
    %v3774 = vpop.f32.mrf.mxu0
    %v3775 = vadd.f32 %v3657, %v3774
    %v3776 = vpop.f32.mrf.mxu0
    %v3777 = vadd.f32 %v3653, %v3776
    %v3778 = vpop.f32.mrf.mxu0
    %v3779 = vadd.f32 %v3657, %v3778
    %3780 = vdwg.mxu0
    %v3781 = vmax.f32 %v3773, 0.0
    %v3782 = vmax.f32 %v3775, 0.0
    %v3783 = vmax.f32 %v3777, 0.0
    %v3784 = vmax.f32 %v3779, 0.0
    %v3785 = vpack.c.bf16 %v3783, %v3781
    %v3786 = vpack.c.bf16 %v3784, %v3782
    %v3787 = vld [vmem:[#allocation10] sm:$0xf]
    %v3788 = vld [vmem:[#allocation10 + $0x4] sm:$0xf]
    %v3789 = vld [vmem:[#allocation10 + $0x8] sm:$0xf]
    %v3790 = vld [vmem:[#allocation10 + $0xc] sm:$0xf]
    %v3791 = vld [vmem:[#allocation10 + $0x10] sm:$0xf]
    %v3792 = vld [vmem:[#allocation10 + $0x14] sm:$0xf]
    %v3793 = vld [vmem:[#allocation10 + $0x18] sm:$0xf]
    %v3794 = vld [vmem:[#allocation10 + $0x1c] sm:$0xf]
    %v3795 = vld [vmem:[#allocation10 + $0x20] sm:$0xf]
    %v3796 = vld [vmem:[#allocation10 + $0x24] sm:$0xf]
    %v3797 = vld [vmem:[#allocation10 + $0x28] sm:$0xf]
    %v3798 = vld [vmem:[#allocation10 + $0x2c] sm:$0xf]
    %v3799 = vld [vmem:[#allocation10 + $0x30] sm:$0xf]
    %v3800 = vld [vmem:[#allocation10 + $0x34] sm:$0xf]
    %v3801 = vld [vmem:[#allocation10 + $0x38] sm:$0xf]
    %v3802 = vld [vmem:[#allocation10 + $0x3c] sm:$0xf]
    %v3803 = vld [vmem:[#allocation10 + $0x40] sm:$0xf]
    %v3804 = vld [vmem:[#allocation10 + $0x44] sm:$0xf]
    %v3805 = vld [vmem:[#allocation10 + $0x48] sm:$0xf]
    %v3806 = vld [vmem:[#allocation10 + $0x4c] sm:$0xf]
    %v3807 = vld [vmem:[#allocation10 + $0x50] sm:$0xf]
    %v3808 = vld [vmem:[#allocation10 + $0x54] sm:$0xf]
    %v3809 = vld [vmem:[#allocation10 + $0x58] sm:$0xf]
    %v3810 = vld [vmem:[#allocation10 + $0x5c] sm:$0xf]
    %v3811 = vld [vmem:[#allocation10 + $0x60] sm:$0xf]
    %v3812 = vld [vmem:[#allocation10 + $0x64] sm:$0xf]
    %v3813 = vld [vmem:[#allocation10 + $0x68] sm:$0xf]
    %v3814 = vld [vmem:[#allocation10 + $0x6c] sm:$0xf]
    %v3815 = vld [vmem:[#allocation10 + $0x70] sm:$0xf]
    %v3816 = vld [vmem:[#allocation10 + $0x74] sm:$0xf]
    %v3817 = vld [vmem:[#allocation10 + $0x78] sm:$0xf]
    %v3818 = vld [vmem:[#allocation10 + $0x7c] sm:$0xf]
    %v3819 = vlaneseq
    %v3820 = vshrl.u32 %v3819, 7
    %v3821 = vsub.s32 3, %v3820
    %v3822 = vrot.slane %v109, %v3821
    %v3855 = vunpack.c.l.b16 %v3787
    %v3856 = vunpack.c.l.b16 %v3788
    %v3857 = vunpack.c.l.b16 %v3789
    %v3858 = vunpack.c.l.b16 %v3790
    %v3859 = vunpack.c.l.b16 %v3791
    %v3860 = vunpack.c.l.b16 %v3792
    %v3861 = vunpack.c.l.b16 %v3793
    %v3862 = vunpack.c.l.b16 %v3794
    %v3863 = vunpack.c.l.b16 %v3795
    %v3864 = vunpack.c.l.b16 %v3796
    %v3865 = vunpack.c.l.b16 %v3797
    %v3866 = vunpack.c.l.b16 %v3798
    %v3867 = vunpack.c.l.b16 %v3799
    %v3868 = vunpack.c.l.b16 %v3800
    %v3869 = vunpack.c.l.b16 %v3801
    %v3870 = vunpack.c.l.b16 %v3802
    %v3871 = vunpack.c.l.b16 %v3803
    %v3872 = vunpack.c.l.b16 %v3804
    %v3873 = vunpack.c.l.b16 %v3805
    %v3874 = vunpack.c.l.b16 %v3806
    %v3875 = vunpack.c.l.b16 %v3807
    %v3876 = vunpack.c.l.b16 %v3808
    %v3877 = vunpack.c.l.b16 %v3809
    %v3878 = vunpack.c.l.b16 %v3810
    %v3879 = vunpack.c.l.b16 %v3811
    %v3880 = vunpack.c.l.b16 %v3812
    %v3881 = vunpack.c.l.b16 %v3813
    %v3882 = vunpack.c.l.b16 %v3814
    %v3883 = vunpack.c.l.b16 %v3815
    %v3884 = vunpack.c.l.b16 %v3816
    %v3885 = vunpack.c.l.b16 %v3817
    %v3886 = vunpack.c.l.b16 %v3818
    %v3887 = vpack.c.b16 %v3856, %v3855
    %v3888 = vpack.c.b16 %v3858, %v3857
    %v3889 = vpack.c.b16 %v3860, %v3859
    %v3890 = vpack.c.b16 %v3862, %v3861
    %v3891 = vpack.c.b16 %v3864, %v3863
    %v3892 = vpack.c.b16 %v3866, %v3865
    %v3893 = vpack.c.b16 %v3868, %v3867
    %v3894 = vpack.c.b16 %v3870, %v3869
    %v3895 = vpack.c.b16 %v3872, %v3871
    %v3896 = vpack.c.b16 %v3874, %v3873
    %v3897 = vpack.c.b16 %v3876, %v3875
    %v3898 = vpack.c.b16 %v3878, %v3877
    %v3899 = vpack.c.b16 %v3880, %v3879
    %v3900 = vpack.c.b16 %v3882, %v3881
    %v3901 = vpack.c.b16 %v3884, %v3883
    %v3902 = vpack.c.b16 %v3886, %v3885
    %3919 = vmatprep.subr.bf16.mxu0 0
    %3920 = vmatpush1.bf16.msra.mxu0 %v3894
    %3921 = vmatprep.subr.bf16.mxu0 0
    %3922 = vmatpush1.bf16.msra.mxu0 %v3893
    %3923 = vmatprep.subr.bf16.mxu0 0
    %3924 = vmatpush1.bf16.msra.mxu0 %v3892
    %3925 = vmatprep.subr.bf16.mxu0 0
    %3926 = vmatpush1.bf16.msra.mxu0 %v3891
    %3927 = vmatprep.subr.bf16.mxu0 0
    %3928 = vmatpush1.bf16.msra.mxu0 %v3890
    %3929 = vmatprep.subr.bf16.mxu0 0
    %3930 = vmatpush1.bf16.msra.mxu0 %v3889
    %3931 = vmatprep.subr.bf16.mxu0 0
    %3932 = vmatpush1.bf16.msra.mxu0 %v3888
    %3933 = vmatprep.subr.bf16.mxu0 0
    %3934 = vmatpush1.bf16.msra.mxu0 %v3887
    %3935 = vmatprep.subr.bf16.mxu0 0
    %3936 = vmatpush2.bf16.msra.mxu0 %v3902
    %3937 = vmatprep.subr.bf16.mxu0 0
    %3938 = vmatpush2.bf16.msra.mxu0 %v3901
    %3939 = vmatprep.subr.bf16.mxu0 0
    %3940 = vmatpush2.bf16.msra.mxu0 %v3900
    %3941 = vmatprep.subr.bf16.mxu0 0
    %3942 = vmatpush2.bf16.msra.mxu0 %v3899
    %3943 = vmatprep.subr.bf16.mxu0 0
    %3944 = vmatpush2.bf16.msra.mxu0 %v3898
    %3945 = vmatprep.subr.bf16.mxu0 0
    %3946 = vmatpush2.bf16.msra.mxu0 %v3897
    %3947 = vmatprep.subr.bf16.mxu0 0
    %3948 = vmatpush2.bf16.msra.mxu0 %v3896
    %3949 = vmatprep.subr.bf16.mxu0 0
    %3950 = vmatpush2.bf16.msra.mxu0 %v3895
    %3951 = vmatprep.mubr.bf16.mxu0 %v3786
    %3952 = vmatmul.mubr.bf16.gmra.mxu0 %v3785
    %v3953 = vpop.f32.mrf.mxu0
    %v3954 = vadd.f32 %v3822, %v3953
    %v3955 = vpop.f32.mrf.mxu0
    %v3956 = vpop.f32.mrf.mxu0
    %v3957 = vadd.f32 %v3822, %v3956
    %v3958 = vpop.f32.mrf.mxu0
    %3959 = vdwg.mxu0
    %v3960 = vadd.f32 %v3954, %v3597
    %v3961 = vadd.f32 %v3957, %v3598
    %3962 = vst [vmem:[#allocation13] sm:$0xff] %v3960
    %3963 = vst [vmem:[#allocation13 + $0x8] sm:$0xff] %v3961
    // Predicated region
    $region50: #{tpu_custom_call.1} parent=1 // pred_check
      _
    $region51: #{tpu_custom_call.1} parent=1 // pred_check_branch
      %3965 = sbr.rel (0) target = $region53
    $region52: #{tpu_custom_call.1} parent=1 // pred_region
      %s3967 = ssub.s32 256, 256
      %3968 = vsyncadd [#allocation4], %s3967
      %s3969 = sshll.u32 [#allocation13], 4
      %s3970 = int_to_ptr.vmem [resolvable:$true] %s3969
      %3975 = dma.vmem_to_hbm [thread:$0]  %s3970, 256, %s6, [#allocation4], 128, 128, 8
    $region53: #{tpu_custom_call.1} parent=1 // pred_fallthru
      _
    // Predicated region
    $region54: #{tpu_custom_call.1} parent=1 // pred_check
      _
    $region55: #{tpu_custom_call.1} parent=1 // pred_check_branch
      %3977 = sbr.rel (0) target = $region57
    $region56: #{tpu_custom_call.1} parent=1 // pred_region
      %3978 = dma.done [#allocation4], 256
    $region57: #{tpu_custom_call.1} parent=1 // pred_fallthru
      _
    %3979 = vsyncpa [#allocation3], 1
    %3980 = vsyncpa [#allocation6], 1
    %3981 = vsyncpa [#allocation9], 1
    %3982 = vsyncpa [#allocation12], 1
    %3983 = vsyncpa [#allocation4], 1

</llo_original>
